<compile_context>
chip_gen: v6e
topology: v6e:2x2x1
jax: 0.10.0
libtpu: 0.0.40
codegen_flags: <defaults>
</compile_context>

<pallas_src>
import functools

import jax
import jax.numpy as jnp
from jax import lax
from jax.experimental import pallas as pl
from jax.experimental.pallas import tpu as pltpu

BN_EPS = 1e-5


def _bn_batch(x):
    """BatchNorm1d, training-mode batch stats, identity affine. Single pass."""
    inv_b = 1.0 / x.shape[0]
    mean = jnp.sum(x, axis=0, keepdims=True) * inv_b
    mean_sq = jnp.sum(x * x, axis=0, keepdims=True) * inv_b
    var = mean_sq - mean * mean
    return (x - mean) * lax.rsqrt(var + BN_EPS)


# --------------------- Kernel 1: fused core-tensor contraction ---------------------

def _core_kernel(e1_ref, rt_ref, w_ref, x1_ref, x0_sc, acc_sc):
    k = pl.program_id(0)

    @pl.when(k == 0)
    def _init():
        x0_sc[...] = _bn_batch(e1_ref[...].astype(jnp.float32))   # bn0(e1)
        acc_sc[...] = jnp.zeros_like(acc_sc)
        # TODO(synk): input_dropout / hidden_dropout1 / hidden_dropout2 are
        # stochastic; treated as identity (p = 0 / eval mode) here.

    x0 = x0_sc[...]                                   # [B, D]  f32 (resident)
    r_t = rt_ref[...]                                 # [ti, B] f32 (this i-tile)

    # Outer-product slab p[a, b, j] = r[b, i0+a] * x0[b, j]; bf16 feed to the MXU.
    p = (r_t[:, :, None] * x0[None, :, :]).astype(jnp.bfloat16)        # [ti, B, D]
    # In-kernel cast of the streamed f32 W tile; hidden under the tile DMA.
    w = w_ref[...].astype(jnp.bfloat16)                                # [ti, D, D]
    # Batched contraction over j against the W tile, f32 accumulation.
    part = lax.dot_general(
        p, w,
        dimension_numbers=(((2,), (1,)), ((0,), (0,))),
        preferred_element_type=jnp.float32)                            # [ti, B, D]
    acc_sc[...] += jnp.sum(part, axis=0)

    @pl.when(k == pl.num_programs(0) - 1)
    def _finalize():
        x1_ref[...] = _bn_batch(acc_sc[...])          # bn1


# --------------------------- Kernel 2: entity scoring ---------------------------

def _score_kernel(x1_ref, e_ref, out_ref):
    x1 = x1_ref[...].astype(jnp.bfloat16)             # [B, D]  (tiny, resident)
    e = e_ref[...].astype(jnp.bfloat16)               # [tn, D] (streamed f32 tile)
    scores = lax.dot_general(                         # x1 @ E_tile^T, f32 accumulation
        x1, e,
        dimension_numbers=(((1,), (1,)), ((), ())),
        preferred_element_type=jnp.float32,
    )                                                 # [B, tn]
    out_ref[...] = jax.nn.sigmoid(scores)


# --------------------------------- tile choice ---------------------------------

def _pick_i_tile(D, target_bytes):
    """Largest ti dividing D (multiple of 8, or D itself) with an f32 W tile that fits."""
    cap = max(1, target_bytes // (D * D * 4))
    if cap >= D:
        return D
    for ti in range(min(D, cap), 0, -1):
        if D % ti == 0 and ti % 8 == 0:
            return ti
    return D


def _pick_entity_tile(NE, D, target_bytes):
    """Lane-dense (multiple of 128) entity tile that divides NE and fits the budget."""
    if NE * D * 4 <= target_bytes or NE <= 128:
        return NE
    tn = max(128, ((target_bytes // (D * 4)) // 128) * 128)
    tn = min(tn, NE)
    while tn > 128 and NE % tn != 0:
        tn -= 128
    return tn if NE % tn == 0 else NE


# ----------------------------------- wrapper -----------------------------------

def tucker_forward(e1_idx, r_idx, E_w, R_w, W_core,
                   *, w_tile_bytes=4 * 1024 * 1024,
                   e_tile_bytes=2 * 1024 * 1024):
    NE, D = E_w.shape
    B = e1_idx.shape[0]

    # Embedding gathers (tiny) stay in glue.
    # TODO(synk): could be folded into the kernel via scalar-prefetch row DMA.
    e1 = jnp.take(E_w, e1_idx, axis=0).astype(jnp.float32)    # [B, D]
    r = jnp.take(R_w, r_idx, axis=0).astype(jnp.float32)      # [B, D]
    r_t = r.T                                                 # [D, B] (tiny)

    # ---- Kernel 1: bn0 + fused core contraction + bn1  ->  x1 [B, D] ----
    ti = _pick_i_tile(D, w_tile_bytes)
    k_tiles = D // ti

    x1 = pl.pallas_call(
        _core_kernel,
        out_shape=jax.ShapeDtypeStruct((B, D), jnp.float32),
        grid_spec=pltpu.PrefetchScalarGridSpec(
            num_scalar_prefetch=0,
            grid=(k_tiles,),
            in_specs=[
                pl.BlockSpec((B, D), lambda k: (0, 0)),         # e1 (resident)
                pl.BlockSpec((ti, B), lambda k: (k, 0)),        # r^T i-tile
                pl.BlockSpec((ti, D, D), lambda k: (k, 0, 0)),  # W i-tile (f32 stream)
            ],
            out_specs=pl.BlockSpec((B, D), lambda k: (0, 0)),
            scratch_shapes=[
                pltpu.VMEM((B, D), jnp.float32),   # x0 = bn0(e1)
                pltpu.VMEM((B, D), jnp.float32),   # f32 accumulator
            ],
        ),
        compiler_params=pltpu.CompilerParams(
            dimension_semantics=("arbitrary",),
            vmem_limit_bytes=32 * 1024 * 1024,
        ),
    )(e1, r_t, W_core)

    # ---- Kernel 2: scoring x1 @ E^T + sigmoid, tiled over entities ----
    tn = _pick_entity_tile(NE, D, e_tile_bytes)
    n_tiles = NE // tn

    pred = pl.pallas_call(
        _score_kernel,
        out_shape=jax.ShapeDtypeStruct((B, NE), jnp.float32),
        grid_spec=pltpu.PrefetchScalarGridSpec(
            num_scalar_prefetch=0,
            grid=(n_tiles,),
            in_specs=[
                pl.BlockSpec((B, D), lambda n: (0, 0)),         # x1 (resident)
                pl.BlockSpec((tn, D), lambda n: (n, 0)),        # E tile (f32 stream)
            ],
            out_specs=pl.BlockSpec((B, tn), lambda n: (0, n)),  # lane-dense output
        ),
        compiler_params=pltpu.CompilerParams(
            dimension_semantics=("parallel",),
            vmem_limit_bytes=32 * 1024 * 1024,
        ),
    )(x1, E_w)
    return pred


# ------------------------------- pure-JAX reference -------------------------------

def tucker_reference(e1_idx, r_idx, E_w, R_w, W_core):
    e1 = jnp.take(E_w, e1_idx, axis=0)
    r = jnp.take(R_w, r_idx, axis=0)
    x0 = _bn_batch(e1)
    p = (r[:, :, None] * x0[:, None, :]).astype(jnp.bfloat16)         # [B, D, D]
    x1 = jnp.einsum("bij,ijk->bk", p, W_core.astype(jnp.bfloat16),
                    preferred_element_type=jnp.float32)
    x1 = _bn_batch(x1)
    scores = jnp.einsum("bd,nd->bn", x1.astype(jnp.bfloat16),
                        E_w.astype(jnp.bfloat16),
                        preferred_element_type=jnp.float32)
    return jax.nn.sigmoid(scores)


if __name__ == "__main__":
    # Small, TPU-friendly shapes consistent with the module.
    D, NE, NR, B = 128, 2048, 32, 8

    key = jax.random.PRNGKey(0)
    k1, k2, k3, k4, k5 = jax.random.split(key, 5)

    # xavier_normal_ init for embeddings; uniform(-1, 1) for the core tensor W.
    E_w = jax.random.normal(k1, (NE, D), jnp.float32) * (2.0 / (NE + D)) ** 0.5
    R_w = jax.random.normal(k2, (NR, D), jnp.float32) * (2.0 / (NR + D)) ** 0.5
    W_core = jax.random.uniform(k3, (D, D, D), jnp.float32, minval=-1.0, maxval=1.0)

    e1_idx = jax.random.randint(k4, (B,), 0, NE)
    r_idx = jax.random.randint(k5, (B,), 0, NR)

    # Tile budgets chosen so the test exercises both grids (4 W tiles, 4 E tiles).
    fwd = jax.jit(functools.partial(tucker_forward,
                                    w_tile_bytes=1 << 21,
                                    e_tile_bytes=1 << 18))
    pred = jax.block_until_ready(fwd(e1_idx, r_idx, E_w, R_w, W_core))

    assert pred.shape == (B, NE)
    assert bool(jnp.all(jnp.isfinite(pred)))
    assert bool(jnp.all((pred >= 0.0) & (pred <= 1.0)))

    ref = jax.block_until_ready(
        jax.jit(tucker_reference)(e1_idx, r_idx, E_w, R_w, W_core))
    max_err = float(jnp.max(jnp.abs(pred - ref)))
    assert bool(jnp.allclose(pred, ref, atol=5e-3, rtol=5e-3)), max_err

    print("KERNEL_OK")
</pallas_src>

<mosaic_0001>
module attributes {stable_mosaic.version = 11 : i64} {
  func.func @_core_kernel(%arg0: i32, %arg1: memref<8x128xf32, #tpu.memory_space<vmem>>, %arg2: memref<32x8xf32, #tpu.memory_space<vmem>>, %arg3: memref<32x128x128xf32, #tpu.memory_space<vmem>>, %arg4: memref<8x128xf32, #tpu.memory_space<vmem>>, %arg5: memref<8x128xf32, #tpu.memory_space<vmem>>, %arg6: memref<8x128xf32, #tpu.memory_space<vmem>>) attributes {dimension_semantics = [#tpu.dimension_semantics<arbitrary>], iteration_bounds = array<i64: 4>, scalar_prefetch = 0 : i64, scratch_operands = 2 : i64, tpu.core_type = #tpu.core_type<tc>, window_params = [{pipeline_mode = #tpu.pipeline_mode<synchronous>, transform_indices = @transform_0, window_bounds = array<i64: 8, 128>}, {transform_indices = @transform_1, window_bounds = array<i64: 32, 8>}, {transform_indices = @transform_2, window_bounds = array<i64: 32, 128, 128>}, {pipeline_mode = #tpu.pipeline_mode<synchronous>, transform_indices = @transform_3, window_bounds = array<i64: 8, 128>}]} {
    %c0_i32 = arith.constant 0 : i32
    %0 = arith.cmpi eq, %arg0, %c0_i32 : i32
    %1 = arith.extui %0 : i1 to i32
    %c0_i32_0 = arith.constant 0 : i32
    %2 = arith.cmpi ne, %1, %c0_i32_0 : i32
    scf.if %2 {
      %c0_13 = arith.constant 0 : index
      %c0_14 = arith.constant 0 : index
      %21 = vector.load %arg1[%c0_13, %c0_14] : memref<8x128xf32, #tpu.memory_space<vmem>>, vector<8x128xf32>
      %cst_15 = arith.constant dense<0.000000e+00> : vector<128xf32>
      %22 = vector.multi_reduction <add>, %21, %cst_15 [0] : vector<8x128xf32> to vector<128xf32>
      %23 = vector.shape_cast %22 : vector<128xf32> to vector<1x128xf32>
      %cst_16 = arith.constant 1.250000e-01 : f32
      %24 = vector.broadcast %cst_16 : f32 to vector<1x128xf32>
      %25 = arith.mulf %23, %24 : vector<1x128xf32>
      %26 = arith.mulf %21, %21 : vector<8x128xf32>
      %cst_17 = arith.constant dense<0.000000e+00> : vector<128xf32>
      %27 = vector.multi_reduction <add>, %26, %cst_17 [0] : vector<8x128xf32> to vector<128xf32>
      %28 = vector.shape_cast %27 : vector<128xf32> to vector<1x128xf32>
      %cst_18 = arith.constant 1.250000e-01 : f32
      %29 = vector.broadcast %cst_18 : f32 to vector<1x128xf32>
      %30 = arith.mulf %28, %29 : vector<1x128xf32>
      %31 = arith.mulf %25, %25 : vector<1x128xf32>
      %32 = arith.subf %30, %31 : vector<1x128xf32>
      %33 = vector.broadcast %25 : vector<1x128xf32> to vector<8x128xf32>
      %34 = arith.subf %21, %33 : vector<8x128xf32>
      %cst_19 = arith.constant 9.99999974E-6 : f32
      %35 = vector.broadcast %cst_19 : f32 to vector<1x128xf32>
      %36 = arith.addf %32, %35 : vector<1x128xf32>
      %37 = math.rsqrt %36 : vector<1x128xf32>
      %38 = vector.broadcast %37 : vector<1x128xf32> to vector<8x128xf32>
      %39 = arith.mulf %34, %38 : vector<8x128xf32>
      %c0_20 = arith.constant 0 : index
      %c0_21 = arith.constant 0 : index
      %40 = vector.load %arg5[%c0_20, %c0_21] : memref<8x128xf32, #tpu.memory_space<vmem>>, vector<8x128xf32>
      tpu.vector_store %arg5[%c0_20, %c0_21], %39 {strides = array<i32>} : memref<8x128xf32, #tpu.memory_space<vmem>>, vector<8x128xf32>,
      %cst_22 = arith.constant 0.000000e+00 : f32
      %41 = vector.broadcast %cst_22 : f32 to vector<8x128xf32>
      %c0_23 = arith.constant 0 : index
      %c0_24 = arith.constant 0 : index
      %42 = vector.load %arg6[%c0_23, %c0_24] : memref<8x128xf32, #tpu.memory_space<vmem>>, vector<8x128xf32>
      tpu.vector_store %arg6[%c0_23, %c0_24], %41 {strides = array<i32>} : memref<8x128xf32, #tpu.memory_space<vmem>>, vector<8x128xf32>,
    } else {
    }
    %c0 = arith.constant 0 : index
    %c0_1 = arith.constant 0 : index
    %3 = vector.load %arg5[%c0, %c0_1] : memref<8x128xf32, #tpu.memory_space<vmem>>, vector<8x128xf32>
    %c0_2 = arith.constant 0 : index
    %c0_3 = arith.constant 0 : index
    %4 = vector.load %arg2[%c0_2, %c0_3] : memref<32x8xf32, #tpu.memory_space<vmem>>, vector<32x8xf32>
    %5 = vector.shape_cast %4 : vector<32x8xf32> to vector<32x8x1xf32>
    %6 = vector.shape_cast %3 : vector<8x128xf32> to vector<1x8x128xf32>
    %7 = vector.broadcast %5 : vector<32x8x1xf32> to vector<32x8x128xf32>
    %8 = vector.broadcast %6 : vector<1x8x128xf32> to vector<32x8x128xf32>
    %9 = arith.mulf %7, %8 : vector<32x8x128xf32>
    %10 = arith.truncf %9 : vector<32x8x128xf32> to vector<32x8x128xbf16>
    %c0_4 = arith.constant 0 : index
    %c0_5 = arith.constant 0 : index
    %c0_6 = arith.constant 0 : index
    %11 = vector.load %arg3[%c0_4, %c0_5, %c0_6] : memref<32x128x128xf32, #tpu.memory_space<vmem>>, vector<32x128x128xf32>
    %12 = arith.truncf %11 : vector<32x128x128xf32> to vector<32x128x128xbf16>
    %cst = arith.constant dense<0.000000e+00> : vector<32x8x128xf32>
    %13 = tpu.matmul %10, %12, %cst {dimension_numbers = #tpu.dot_dimension_numbers<[2], [1], [1], [2], [0, 0, 0, 1, 1, 2], [0], [0]>} : vector<32x8x128xbf16>, vector<32x128x128xbf16>, vector<32x8x128xf32> -> vector<32x8x128xf32>
    %c0_7 = arith.constant 0 : index
    %c0_8 = arith.constant 0 : index
    %14 = vector.load %arg6[%c0_7, %c0_8] : memref<8x128xf32, #tpu.memory_space<vmem>>, vector<8x128xf32>
    %cst_9 = arith.constant dense<0.000000e+00> : vector<8x128xf32>
    %15 = vector.multi_reduction <add>, %13, %cst_9 [0] : vector<32x8x128xf32> to vector<8x128xf32>
    %16 = arith.addf %14, %15 : vector<8x128xf32>
    %c0_10 = arith.constant 0 : index
    %c0_11 = arith.constant 0 : index
    %17 = vector.load %arg6[%c0_10, %c0_11] : memref<8x128xf32, #tpu.memory_space<vmem>>, vector<8x128xf32>
    tpu.vector_store %arg6[%c0_10, %c0_11], %16 {strides = array<i32>} : memref<8x128xf32, #tpu.memory_space<vmem>>, vector<8x128xf32>,
    %c3_i32 = arith.constant 3 : i32
    %18 = arith.cmpi eq, %arg0, %c3_i32 : i32
    %19 = arith.extui %18 : i1 to i32
    %c0_i32_12 = arith.constant 0 : i32
    %20 = arith.cmpi ne, %19, %c0_i32_12 : i32
    scf.if %20 {
      %c0_13 = arith.constant 0 : index
      %c0_14 = arith.constant 0 : index
      %21 = vector.load %arg6[%c0_13, %c0_14] : memref<8x128xf32, #tpu.memory_space<vmem>>, vector<8x128xf32>
      %cst_15 = arith.constant dense<0.000000e+00> : vector<128xf32>
      %22 = vector.multi_reduction <add>, %21, %cst_15 [0] : vector<8x128xf32> to vector<128xf32>
      %23 = vector.shape_cast %22 : vector<128xf32> to vector<1x128xf32>
      %cst_16 = arith.constant 1.250000e-01 : f32
      %24 = vector.broadcast %cst_16 : f32 to vector<1x128xf32>
      %25 = arith.mulf %23, %24 : vector<1x128xf32>
      %26 = arith.mulf %21, %21 : vector<8x128xf32>
      %cst_17 = arith.constant dense<0.000000e+00> : vector<128xf32>
      %27 = vector.multi_reduction <add>, %26, %cst_17 [0] : vector<8x128xf32> to vector<128xf32>
      %28 = vector.shape_cast %27 : vector<128xf32> to vector<1x128xf32>
      %cst_18 = arith.constant 1.250000e-01 : f32
      %29 = vector.broadcast %cst_18 : f32 to vector<1x128xf32>
      %30 = arith.mulf %28, %29 : vector<1x128xf32>
      %31 = arith.mulf %25, %25 : vector<1x128xf32>
      %32 = arith.subf %30, %31 : vector<1x128xf32>
      %33 = vector.broadcast %25 : vector<1x128xf32> to vector<8x128xf32>
      %34 = arith.subf %21, %33 : vector<8x128xf32>
      %cst_19 = arith.constant 9.99999974E-6 : f32
      %35 = vector.broadcast %cst_19 : f32 to vector<1x128xf32>
      %36 = arith.addf %32, %35 : vector<1x128xf32>
      %37 = math.rsqrt %36 : vector<1x128xf32>
      %38 = vector.broadcast %37 : vector<1x128xf32> to vector<8x128xf32>
      %39 = arith.mulf %34, %38 : vector<8x128xf32>
      %c0_20 = arith.constant 0 : index
      %c0_21 = arith.constant 0 : index
      %40 = vector.load %arg4[%c0_20, %c0_21] : memref<8x128xf32, #tpu.memory_space<vmem>>, vector<8x128xf32>
      tpu.vector_store %arg4[%c0_20, %c0_21], %39 {strides = array<i32>} : memref<8x128xf32, #tpu.memory_space<vmem>>, vector<8x128xf32>,
    } else {
    }
    return
  }
  func.func @transform_0(%arg0: i32) -> (i32, i32) {
    %c0_i32 = arith.constant 0 : i32
    %c0_i32_0 = arith.constant 0 : i32
    %c0_i32_1 = arith.constant 0 : i32
    return %c0_i32, %c0_i32_0 : i32, i32
  }
  func.func @transform_1(%arg0: i32) -> (i32, i32) {
    %c0_i32 = arith.constant 0 : i32
    %c0_i32_0 = arith.constant 0 : i32
    return %arg0, %c0_i32 : i32, i32
  }
  func.func @transform_2(%arg0: i32) -> (i32, i32, i32) {
    %c0_i32 = arith.constant 0 : i32
    %c0_i32_0 = arith.constant 0 : i32
    %c0_i32_1 = arith.constant 0 : i32
    return %arg0, %c0_i32, %c0_i32_0 : i32, i32, i32
  }
  func.func @transform_3(%arg0: i32) -> (i32, i32) {
    %c0_i32 = arith.constant 0 : i32
    %c0_i32_0 = arith.constant 0 : i32
    %c0_i32_1 = arith.constant 0 : i32
    return %c0_i32, %c0_i32_0 : i32, i32
  }
}

module attributes {stable_mosaic.version = 11 : i64} {
  func.func @_score_kernel(%arg0: i32, %arg1: memref<8x128xf32, #tpu.memory_space<vmem>>, %arg2: memref<512x128xf32, #tpu.memory_space<vmem>>, %arg3: memref<8x512xf32, #tpu.memory_space<vmem>>) attributes {dimension_semantics = [#tpu.dimension_semantics<parallel>], iteration_bounds = array<i64: 4>, scalar_prefetch = 0 : i64, scratch_operands = 0 : i64, tpu.core_type = #tpu.core_type<tc>, window_params = [{pipeline_mode = #tpu.pipeline_mode<synchronous>, transform_indices = @transform_0, window_bounds = array<i64: 8, 128>}, {transform_indices = @transform_1, window_bounds = array<i64: 512, 128>}, {transform_indices = @transform_2, window_bounds = array<i64: 8, 512>}]} {
    %c0 = arith.constant 0 : index
    %c0_0 = arith.constant 0 : index
    %0 = vector.load %arg1[%c0, %c0_0] : memref<8x128xf32, #tpu.memory_space<vmem>>, vector<8x128xf32>
    %1 = arith.truncf %0 : vector<8x128xf32> to vector<8x128xbf16>
    %c0_1 = arith.constant 0 : index
    %c0_2 = arith.constant 0 : index
    %2 = vector.load %arg2[%c0_1, %c0_2] : memref<512x128xf32, #tpu.memory_space<vmem>>, vector<512x128xf32>
    %3 = arith.truncf %2 : vector<512x128xf32> to vector<512x128xbf16>
    %cst = arith.constant dense<0.000000e+00> : vector<8x512xf32>
    %4 = tpu.matmul %1, %3, %cst {dimension_numbers = #tpu.dot_dimension_numbers<[1], [1], [0], [0], [0, 0, 1, 0], [], []>} : vector<8x128xbf16>, vector<512x128xbf16>, vector<8x512xf32> -> vector<8x512xf32>
    %5 = arith.negf %4 : vector<8x512xf32>
    %6 = math.exp %5 : vector<8x512xf32>
    %cst_3 = arith.constant 1.000000e+00 : f32
    %7 = vector.broadcast %cst_3 : f32 to vector<8x512xf32>
    %8 = arith.addf %7, %6 : vector<8x512xf32>
    %9 = arith.divf %7, %8 : vector<8x512xf32>
    %c0_4 = arith.constant 0 : index
    %c0_5 = arith.constant 0 : index
    %10 = vector.load %arg3[%c0_4, %c0_5] : memref<8x512xf32, #tpu.memory_space<vmem>>, vector<8x512xf32>
    tpu.vector_store %arg3[%c0_4, %c0_5], %9 {strides = array<i32>} : memref<8x512xf32, #tpu.memory_space<vmem>>, vector<8x512xf32>,
    return
  }
  func.func @transform_0(%arg0: i32) -> (i32, i32) {
    %c0_i32 = arith.constant 0 : i32
    %c0_i32_0 = arith.constant 0 : i32
    %c0_i32_1 = arith.constant 0 : i32
    return %c0_i32, %c0_i32_0 : i32, i32
  }
  func.func @transform_1(%arg0: i32) -> (i32, i32) {
    %c0_i32 = arith.constant 0 : i32
    %c0_i32_0 = arith.constant 0 : i32
    return %arg0, %c0_i32 : i32, i32
  }
  func.func @transform_2(%arg0: i32) -> (i32, i32) {
    %c0_i32 = arith.constant 0 : i32
    %c0_i32_0 = arith.constant 0 : i32
    return %c0_i32, %arg0 : i32, i32
  }
}

</mosaic_0001>

<llo_original>
// kernel: tucker_forward.3
$region0: #{tucker_forward.3}
  #allocation0 [shape = 'u32[]', space=smem, size = 0x4, offset = 0x4, fixed_abs, tag = 'smem constant byte address 0x4 - core index']
  #allocation1 [shape = 'u32[144,128]{1,0:T(1,128)}', space=vmem, size = 0x12000, scoped, tag = 'internal scratch']
  %s0 = inlined_call_operand.vmem [shape: f32[8,128], index: 0, kind: input, shape index: {}]
  %s1 = inlined_call_operand.vmem [shape: f32[2048,128], index: 1, kind: input, shape index: {}]
  %s2 = inlined_call_operand.hbm [shape: f32[8,2048], index: 2, kind: output, shape index: {}]
  %s3 = sld [smem:[#allocation0]]
  $region41: #{tucker_forward.3} parent=0
    _
  %s5 = ssub.s32 1, %s3
  %s6 = scalar_select 0, %s5, %s3
  $region1: #{tucker_forward.3} parent=0
    #allocation2 [shape = 'u8[32768]{0}', space=vmem, size = 0x8000, scoped, tag = 'output window, operand 0']
    #allocation3 [shape = 's32[2]{0}', space=sflag, size = 0x8, scoped, tag = 'scoped memory for tucker_forward.3']
    %7 = vsyncpa [#allocation3], 0
    %s8 = scalar_lea.sflag [#allocation3], 1
    %9 = vsyncpa %s8, 0
    loop: start=0, step=1, limit=6
    $region2: #{tucker_forward.3} parent=1 // loop_pre_header
      _
    $region3: #{tucker_forward.3} parent=1 // loop_header
      %s11 = sphi 0, %s15
      %p12 = scmp.ge.s32.totalorder %s11, 6
      %s19 = sphi 0, %s19
      %s21 = sphi 0, %s19
      %s22 = sphi 0, %s21
      %s36 = sphi 0, %s22
      %s42 = sphi 0, %s44
      %s45 = sphi 0, %s42
      %s46 = sphi 0, %s45
      %s62 = sphi 0, %s46
      %s68 = sphi 0, %s70
      %s71 = sphi 0, %s68
      %s72 = sphi 0, %s71
      %s88 = sphi 0, %s72
    $region4: #{tucker_forward.3} parent=1 // loop_header_branch
      %14 = sbr.rel (%p12) target = $region8
    $region5: #{tucker_forward.3} parent=1 // loop_body
      %s16 = ssub.s32 %s11, 1
      %s17 = ssub.s32 %s11, 2
      %s18 = sadd.s32 %s11, 1
      %s20 = sadd.s32 %s19, 1
      %p23 = scmp.eq.s32.totalorder %s11, 3
      %p24 = scmp.ne.s32.totalorder %s19, %s21
      %p25 = scmp.eq.s32.totalorder %s11, 0
      %p26 = por %p24, %p25
      %p27 = scmp.ne.s32.totalorder %s19, %s21
      %p28 = scmp.eq.s32.totalorder %s16, 3
      %p29 = por %p27, %p28
      %p30 = scmp.ne.s32.totalorder %s21, %s22
      %p31 = scmp.eq.s32.totalorder %s16, 0
      %p32 = por %p30, %p31
      %p33 = scmp.ne.s32.totalorder %s21, %s22
      %p34 = scmp.eq.s32.totalorder %s17, 3
      %p35 = por %p33, %p34
      %p37 = scmp.ne.s32.totalorder %s22, %s36
      %p38 = scmp.eq.s32.totalorder %s17, 0
      %p39 = por %p37, %p38
      %s40 = ssub.s32 %s11, %s18
      %p41 = scmp.eq.s32.totalorder %s40, 0
      %s43 = sadd.s32 %s42, 1
      %s44 = scalar_select %p41, %s42, %s43
      %p47 = pneg %p41
      %p48 = scmp.eq.s32.totalorder %s11, 3
      %p49 = por %p47, %p48
      %p50 = scmp.ne.s32.totalorder %s42, %s45
      %p51 = scmp.eq.s32.totalorder %s11, 0
      %p52 = por %p50, %p51
      %p53 = scmp.ne.s32.totalorder %s42, %s45
      %p54 = scmp.eq.s32.totalorder %s16, 3
      %p55 = por %p53, %p54
      %p56 = scmp.ne.s32.totalorder %s45, %s46
      %p57 = scmp.eq.s32.totalorder %s16, 0
      %p58 = por %p56, %p57
      %p59 = scmp.ne.s32.totalorder %s45, %s46
      %p60 = scmp.eq.s32.totalorder %s17, 3
      %p61 = por %p59, %p60
      %p63 = scmp.ne.s32.totalorder %s46, %s62
      %p64 = scmp.eq.s32.totalorder %s17, 0
      %p65 = por %p63, %p64
      %s66 = ssub.s32 %s11, %s18
      %p67 = scmp.eq.s32.totalorder %s66, 0
      %s69 = sadd.s32 %s68, 1
      %s70 = scalar_select %p67, %s68, %s69
      %p73 = pneg %p67
      %p74 = scmp.eq.s32.totalorder %s11, 3
      %p75 = por %p73, %p74
      %p76 = scmp.ne.s32.totalorder %s68, %s71
      %p77 = scmp.eq.s32.totalorder %s11, 0
      %p78 = por %p76, %p77
      %p79 = scmp.ne.s32.totalorder %s68, %s71
      %p80 = scmp.eq.s32.totalorder %s16, 3
      %p81 = por %p79, %p80
      %p82 = scmp.ne.s32.totalorder %s71, %s72
      %p83 = scmp.eq.s32.totalorder %s16, 0
      %p84 = por %p82, %p83
      %p85 = scmp.ne.s32.totalorder %s71, %s72
      %p86 = scmp.eq.s32.totalorder %s17, 3
      %p87 = por %p85, %p86
      %p89 = scmp.ne.s32.totalorder %s72, %s88
      %p90 = scmp.eq.s32.totalorder %s17, 0
      %p91 = por %p89, %p90
      %p92 = scmp.le.s32.totalorder 1, %s11
      %p93 = scmp.lt.s32.totalorder %s11, 5
      %p94 = pnand %p92, %p93
      %p95 = pneg %p94
      // Predicated region
      $region9: #{tucker_forward.3} parent=5 // pred_check
        _
      $region10: #{tucker_forward.3} parent=5 // pred_check_branch
        %97 = sbr.rel (%p94) target = $region12
      $region11: #{tucker_forward.3} parent=5 // pred_region
        %s98 = ssub.s32 %s11, 1
        // Predicated region
        $region13: #{tucker_forward.3} parent=11 // pred_check
          %p99 = pneg %p32
        $region14: #{tucker_forward.3} parent=11 // pred_check_branch
          %101 = sbr.rel (%p99) target = $region16
        $region15: #{tucker_forward.3} parent=11 // pred_region
          _
        $region16: #{tucker_forward.3} parent=11 // pred_fallthru
          _
      $region12: #{tucker_forward.3} parent=5 // pred_fallthru
        _
      %p102 = scmp.lt.s32.totalorder %s11, 4
      // Predicated region
      $region17: #{tucker_forward.3} parent=5 // pred_check
        %p103 = pneg %p102
      $region18: #{tucker_forward.3} parent=5 // pred_check_branch
        %105 = sbr.rel (%p103) target = $region20
      $region19: #{tucker_forward.3} parent=5 // pred_region
        // Predicated region
        $region21: #{tucker_forward.3} parent=19 // pred_check
          %p106 = pneg %p52
        $region22: #{tucker_forward.3} parent=19 // pred_check_branch
          %108 = sbr.rel (%p106) target = $region24
        $region23: #{tucker_forward.3} parent=19 // pred_region
          %s109 = smul.u32 64, %s11
          %p110 = scmp.lt.s32.totalorder %s109, 255
          %s111 = scalar_select %p110, %s109, 255
          %s112 = smul.addr %s111, 8
          %s113 = scalar_lea.vmem %s1, %s112
          %s114 = smul.u32 64, %s11
        $region24: #{tucker_forward.3} parent=19 // pred_fallthru
          _
      $region20: #{tucker_forward.3} parent=5 // pred_fallthru
        _
      %p115 = scmp.le.s32.totalorder 1, %s11
      %p116 = scmp.lt.s32.totalorder %s11, 5
      %p117 = pnand %p115, %p116
      %p118 = pneg %p117
      // Predicated region
      $region25: #{tucker_forward.3} parent=5 // pred_check
        _
      $region26: #{tucker_forward.3} parent=5 // pred_check_branch
        %120 = sbr.rel (%p117) target = $region28
      $region27: #{tucker_forward.3} parent=5 // pred_region
        %s121 = ssub.s32 %s11, 1
        %p122 = pneg %p32
        %p123 = pneg %p29
        %s124 = smul.u32 64, %s16
        %p125 = scmp.lt.s32.totalorder %s124, 255
        %s126 = scalar_select %p125, %s124, 255
        %s127 = smul.addr %s126, 8
        %s128 = scalar_lea.vmem %s1, %s127
        %p129 = pneg %p58
        %p130 = pneg %p55
        %p131 = pneg %p84
        %p132 = pneg %p81
        %s133 = sand.u32 %s71, 1
        %s134 = scalar_lea.sflag [#allocation3], %s133
        %s135 = sand.u32 %s71, 1
        %s136 = smul.addr %s135, 32
        %s137 = scalar_lea.vmem [#allocation2], %s136
        %s138 = smul.u32 64, %s16
        %p139 = scmp.lt.s32.totalorder %s138, 255
        %s140 = scalar_select %p139, %s138, 255
        %s141 = smul.addr %s140, 8
        %s142 = scalar_lea.vmem %s1, %s141
        %s143 = smul.u32 64, %s16
        %s144 = smul.u32 4, %s16
        %v146 = vld [vmem:[%s0] sm:$0xff]
        %v147 = vpack.c.bf16 %v146, %v146
        %v148 = vld [vmem:[%s142] sm:$0xff]
        %v149 = vld [vmem:[%s142 + $0x8] sm:$0xff]
        %v150 = vld [vmem:[%s142 + $0x10] sm:$0xff]
        %v151 = vld [vmem:[%s142 + $0x18] sm:$0xff]
        %v152 = vld [vmem:[%s142 + $0x20] sm:$0xff]
        %v153 = vld [vmem:[%s142 + $0x28] sm:$0xff]
        %v154 = vld [vmem:[%s142 + $0x30] sm:$0xff]
        %v155 = vld [vmem:[%s142 + $0x38] sm:$0xff]
        %v156 = vld [vmem:[%s142 + $0x40] sm:$0xff]
        %v157 = vld [vmem:[%s142 + $0x48] sm:$0xff]
        %v158 = vld [vmem:[%s142 + $0x50] sm:$0xff]
        %v159 = vld [vmem:[%s142 + $0x58] sm:$0xff]
        %v160 = vld [vmem:[%s142 + $0x60] sm:$0xff]
        %v161 = vld [vmem:[%s142 + $0x68] sm:$0xff]
        %v162 = vld [vmem:[%s142 + $0x70] sm:$0xff]
        %v163 = vld [vmem:[%s142 + $0x78] sm:$0xff]
        %v164 = vld [vmem:[%s142 + $0x80] sm:$0xff]
        %v165 = vld [vmem:[%s142 + $0x88] sm:$0xff]
        %v166 = vld [vmem:[%s142 + $0x90] sm:$0xff]
        %v167 = vld [vmem:[%s142 + $0x98] sm:$0xff]
        %v168 = vld [vmem:[%s142 + $0xa0] sm:$0xff]
        %v169 = vld [vmem:[%s142 + $0xa8] sm:$0xff]
        %v170 = vld [vmem:[%s142 + $0xb0] sm:$0xff]
        %v171 = vld [vmem:[%s142 + $0xb8] sm:$0xff]
        %v172 = vld [vmem:[%s142 + $0xc0] sm:$0xff]
        %v173 = vld [vmem:[%s142 + $0xc8] sm:$0xff]
        %v174 = vld [vmem:[%s142 + $0xd0] sm:$0xff]
        %v175 = vld [vmem:[%s142 + $0xd8] sm:$0xff]
        %v176 = vld [vmem:[%s142 + $0xe0] sm:$0xff]
        %v177 = vld [vmem:[%s142 + $0xe8] sm:$0xff]
        %v178 = vld [vmem:[%s142 + $0xf0] sm:$0xff]
        %v179 = vld [vmem:[%s142 + $0xf8] sm:$0xff]
        %v180 = vld [vmem:[%s142 + $0x100] sm:$0xff]
        %v181 = vld [vmem:[%s142 + $0x108] sm:$0xff]
        %v182 = vld [vmem:[%s142 + $0x110] sm:$0xff]
        %v183 = vld [vmem:[%s142 + $0x118] sm:$0xff]
        %v184 = vld [vmem:[%s142 + $0x120] sm:$0xff]
        %v185 = vld [vmem:[%s142 + $0x128] sm:$0xff]
        %v186 = vld [vmem:[%s142 + $0x130] sm:$0xff]
        %v187 = vld [vmem:[%s142 + $0x138] sm:$0xff]
        %v188 = vld [vmem:[%s142 + $0x140] sm:$0xff]
        %v189 = vld [vmem:[%s142 + $0x148] sm:$0xff]
        %v190 = vld [vmem:[%s142 + $0x150] sm:$0xff]
        %v191 = vld [vmem:[%s142 + $0x158] sm:$0xff]
        %v192 = vld [vmem:[%s142 + $0x160] sm:$0xff]
        %v193 = vld [vmem:[%s142 + $0x168] sm:$0xff]
        %v194 = vld [vmem:[%s142 + $0x170] sm:$0xff]
        %v195 = vld [vmem:[%s142 + $0x178] sm:$0xff]
        %v196 = vld [vmem:[%s142 + $0x180] sm:$0xff]
        %v197 = vld [vmem:[%s142 + $0x188] sm:$0xff]
        %v198 = vld [vmem:[%s142 + $0x190] sm:$0xff]
        %v199 = vld [vmem:[%s142 + $0x198] sm:$0xff]
        %v200 = vld [vmem:[%s142 + $0x1a0] sm:$0xff]
        %v201 = vld [vmem:[%s142 + $0x1a8] sm:$0xff]
        %v202 = vld [vmem:[%s142 + $0x1b0] sm:$0xff]
        %v203 = vld [vmem:[%s142 + $0x1b8] sm:$0xff]
        %v204 = vld [vmem:[%s142 + $0x1c0] sm:$0xff]
        %v205 = vld [vmem:[%s142 + $0x1c8] sm:$0xff]
        %v206 = vld [vmem:[%s142 + $0x1d0] sm:$0xff]
        %v207 = vld [vmem:[%s142 + $0x1d8] sm:$0xff]
        %v208 = vld [vmem:[%s142 + $0x1e0] sm:$0xff]
        %v209 = vld [vmem:[%s142 + $0x1e8] sm:$0xff]
        %v210 = vld [vmem:[%s142 + $0x1f0] sm:$0xff]
        %v211 = vld [vmem:[%s142 + $0x1f8] sm:$0xff]
        %v212 = vpack.c.bf16 %v149, %v148
        %v213 = vpack.c.bf16 %v151, %v150
        %v214 = vpack.c.bf16 %v153, %v152
        %v215 = vpack.c.bf16 %v155, %v154
        %v216 = vpack.c.bf16 %v157, %v156
        %v217 = vpack.c.bf16 %v159, %v158
        %v218 = vpack.c.bf16 %v161, %v160
        %v219 = vpack.c.bf16 %v163, %v162
        %v220 = vpack.c.bf16 %v165, %v164
        %v221 = vpack.c.bf16 %v167, %v166
        %v222 = vpack.c.bf16 %v169, %v168
        %v223 = vpack.c.bf16 %v171, %v170
        %v224 = vpack.c.bf16 %v173, %v172
        %v225 = vpack.c.bf16 %v175, %v174
        %v226 = vpack.c.bf16 %v177, %v176
        %v227 = vpack.c.bf16 %v179, %v178
        %v228 = vpack.c.bf16 %v181, %v180
        %v229 = vpack.c.bf16 %v183, %v182
        %v230 = vpack.c.bf16 %v185, %v184
        %v231 = vpack.c.bf16 %v187, %v186
        %v232 = vpack.c.bf16 %v189, %v188
        %v233 = vpack.c.bf16 %v191, %v190
        %v234 = vpack.c.bf16 %v193, %v192
        %v235 = vpack.c.bf16 %v195, %v194
        %v236 = vpack.c.bf16 %v197, %v196
        %v237 = vpack.c.bf16 %v199, %v198
        %v238 = vpack.c.bf16 %v201, %v200
        %v239 = vpack.c.bf16 %v203, %v202
        %v240 = vpack.c.bf16 %v205, %v204
        %v241 = vpack.c.bf16 %v207, %v206
        %v242 = vpack.c.bf16 %v209, %v208
        %v243 = vpack.c.bf16 %v211, %v210
        %244 = vmatprep.subr.bf16.mxu0 0
        %245 = vmatpush1.bf16.xpose.msra.mxu0 %v219
        %246 = vmatprep.subr.bf16.mxu0 0
        %247 = vmatpush1.bf16.xpose.msra.mxu0 %v218
        %248 = vmatprep.subr.bf16.mxu0 0
        %249 = vmatpush1.bf16.xpose.msra.mxu0 %v217
        %250 = vmatprep.subr.bf16.mxu0 0
        %251 = vmatpush1.bf16.xpose.msra.mxu0 %v216
        %252 = vmatprep.subr.bf16.mxu0 0
        %253 = vmatpush1.bf16.xpose.msra.mxu0 %v215
        %254 = vmatprep.subr.bf16.mxu0 0
        %255 = vmatpush1.bf16.xpose.msra.mxu0 %v214
        %256 = vmatprep.subr.bf16.mxu0 0
        %257 = vmatpush1.bf16.xpose.msra.mxu0 %v213
        %258 = vmatprep.subr.bf16.mxu0 0
        %259 = vmatpush1.bf16.xpose.msra.mxu0 %v212
        %260 = vmatprep.subr.bf16.mxu0 0
        %261 = vmatpush2.bf16.xpose.msra.mxu0 %v227
        %262 = vmatprep.subr.bf16.mxu0 0
        %263 = vmatpush2.bf16.xpose.msra.mxu0 %v226
        %264 = vmatprep.subr.bf16.mxu0 0
        %265 = vmatpush2.bf16.xpose.msra.mxu0 %v225
        %266 = vmatprep.subr.bf16.mxu0 0
        %267 = vmatpush2.bf16.xpose.msra.mxu0 %v224
        %268 = vmatprep.subr.bf16.mxu0 0
        %269 = vmatpush2.bf16.xpose.msra.mxu0 %v223
        %270 = vmatprep.subr.bf16.mxu0 0
        %271 = vmatpush2.bf16.xpose.msra.mxu0 %v222
        %272 = vmatprep.subr.bf16.mxu0 0
        %273 = vmatpush2.bf16.xpose.msra.mxu0 %v221
        %274 = vmatprep.subr.bf16.mxu0 0
        %275 = vmatpush2.bf16.xpose.msra.mxu0 %v220
        %276 = vmatprep.mubr.bf16.mxu0 0
        %277 = vmatmul.mubr.bf16.gmra.mxu0 %v147
        %v278 = vpop.f32.mrf.mxu0
        %v279 = vadd.f32 0.0, %v278
        %v280 = vpop.f32.mrf.mxu0
        %v281 = vadd.f32 0.0, %v280
        %v282 = vpop.f32.mrf.mxu0
        %v283 = vpop.f32.mrf.mxu0
        %284 = vdwg.mxu0
        %285 = vmatprep.subr.bf16.mxu0 0
        %286 = vmatpush1.bf16.xpose.msra.mxu0 %v235
        %287 = vmatprep.subr.bf16.mxu0 0
        %288 = vmatpush1.bf16.xpose.msra.mxu0 %v234
        %289 = vmatprep.subr.bf16.mxu0 0
        %290 = vmatpush1.bf16.xpose.msra.mxu0 %v233
        %291 = vmatprep.subr.bf16.mxu0 0
        %292 = vmatpush1.bf16.xpose.msra.mxu0 %v232
        %293 = vmatprep.subr.bf16.mxu0 0
        %294 = vmatpush1.bf16.xpose.msra.mxu0 %v231
        %295 = vmatprep.subr.bf16.mxu0 0
        %296 = vmatpush1.bf16.xpose.msra.mxu0 %v230
        %297 = vmatprep.subr.bf16.mxu0 0
        %298 = vmatpush1.bf16.xpose.msra.mxu0 %v229
        %299 = vmatprep.subr.bf16.mxu0 0
        %300 = vmatpush1.bf16.xpose.msra.mxu0 %v228
        %301 = vmatprep.subr.bf16.mxu0 0
        %302 = vmatpush2.bf16.xpose.msra.mxu0 %v243
        %303 = vmatprep.subr.bf16.mxu0 0
        %304 = vmatpush2.bf16.xpose.msra.mxu0 %v242
        %305 = vmatprep.subr.bf16.mxu0 0
        %306 = vmatpush2.bf16.xpose.msra.mxu0 %v241
        %307 = vmatprep.subr.bf16.mxu0 0
        %308 = vmatpush2.bf16.xpose.msra.mxu0 %v240
        %309 = vmatprep.subr.bf16.mxu0 0
        %310 = vmatpush2.bf16.xpose.msra.mxu0 %v239
        %311 = vmatprep.subr.bf16.mxu0 0
        %312 = vmatpush2.bf16.xpose.msra.mxu0 %v238
        %313 = vmatprep.subr.bf16.mxu0 0
        %314 = vmatpush2.bf16.xpose.msra.mxu0 %v237
        %315 = vmatprep.subr.bf16.mxu0 0
        %316 = vmatpush2.bf16.xpose.msra.mxu0 %v236
        %317 = vmatprep.mubr.bf16.mxu0 0
        %318 = vmatmul.mubr.bf16.gmra.mxu0 %v147
        %v319 = vpop.f32.mrf.mxu0
        %v320 = vadd.f32 0.0, %v319
        %v321 = vpop.f32.mrf.mxu0
        %v322 = vadd.f32 0.0, %v321
        %v323 = vpop.f32.mrf.mxu0
        %v324 = vpop.f32.mrf.mxu0
        %325 = vdwg.mxu0
        %v326 = vxor.u32 %v279, 2147483648
        %v327 = vxor.u32 %v281, 2147483648
        %v328 = vxor.u32 %v320, 2147483648
        %v329 = vxor.u32 %v322, 2147483648
        %v330 = vmul.f32 %v326, 1.442695
        %v331 = vpow.pop %v330
        %v332 = vmul.f32 %v327, 1.442695
        %v333 = vpow.pop %v332
        %v334 = vmul.f32 %v328, 1.442695
        %v335 = vpow.pop %v334
        %v336 = vmul.f32 %v329, 1.442695
        %v337 = vpow.pop %v336
        %v338 = vadd.f32 %v331, 1.0
        %v339 = vadd.f32 %v333, 1.0
        %v340 = vadd.f32 %v335, 1.0
        %v341 = vadd.f32 %v337, 1.0
        %v342 = vrcp.pop %v338
        %v343 = vmul.f32 1.0, %v342
        %v344 = vrcp.pop %v339
        %v345 = vmul.f32 1.0, %v344
        %v346 = vrcp.pop %v340
        %v347 = vmul.f32 1.0, %v346
        %v348 = vrcp.pop %v341
        %v349 = vmul.f32 1.0, %v348
        %350 = vst [vmem:[%s137] sm:$0xff] %v343
        %351 = vst [vmem:[%s137 + $0x8] sm:$0xff] %v345
        %352 = vst [vmem:[%s137 + $0x10] sm:$0xff] %v347
        %353 = vst [vmem:[%s137 + $0x18] sm:$0xff] %v349
        %s354 = sand.u32 %s71, 1
        %s355 = scalar_lea.sflag [#allocation3], %s354
        %s356 = sand.u32 %s71, 1
        %s357 = smul.addr %s356, 32
        %s358 = scalar_lea.vmem [#allocation2], %s357
        // Predicated region
        $region29: #{tucker_forward.3} parent=27 // pred_check
          %p359 = pneg %p81
        $region30: #{tucker_forward.3} parent=27 // pred_check_branch
          %361 = sbr.rel (%p359) target = $region32
        $region31: #{tucker_forward.3} parent=27 // pred_region
          %s362 = smul.u32 4, %s16
          %s364 = ssub.s32 512, 512
          %365 = vsyncadd %s355, %s364
          %s366 = smul.addr %s362, 128
          %s367 = scalar_lea.hbm %s2, %s366
          %s369 = sshll.u32 %s358, 4
          %s370 = int_to_ptr.vmem [resolvable:$true] %s369
          %372 = dma.vmem_to_hbm [thread:$0]  %s370, 512, %s367, %s355
        $region32: #{tucker_forward.3} parent=27 // pred_fallthru
          _
      $region28: #{tucker_forward.3} parent=5 // pred_fallthru
        _
      %p373 = scmp.le.s32.totalorder 2, %s11
      // Predicated region
      $region33: #{tucker_forward.3} parent=5 // pred_check
        %p374 = pneg %p373
      $region34: #{tucker_forward.3} parent=5 // pred_check_branch
        %376 = sbr.rel (%p374) target = $region36
      $region35: #{tucker_forward.3} parent=5 // pred_region
        %s377 = ssub.s32 %s11, 2
        // Predicated region
        $region37: #{tucker_forward.3} parent=35 // pred_check
          %p378 = pneg %p87
        $region38: #{tucker_forward.3} parent=35 // pred_check_branch
          %380 = sbr.rel (%p378) target = $region40
        $region39: #{tucker_forward.3} parent=35 // pred_region
          %s381 = sand.u32 %s72, 1
          %s382 = scalar_lea.sflag [#allocation3], %s381
          %s383 = sand.u32 %s72, 1
          %s384 = smul.addr %s383, 32
          %s385 = scalar_lea.vmem [#allocation2], %s384
          %386 = dma.done %s382, 512
        $region40: #{tucker_forward.3} parent=35 // pred_fallthru
          _
      $region36: #{tucker_forward.3} parent=5 // pred_fallthru
        _
    $region6: #{tucker_forward.3} parent=1 // loop_footer
      %s15 = sadd.s32 1, %s11
    $region7: #{tucker_forward.3} parent=1 // loop_footer_branch
      %10 = sbr.rel target = $region3
    $region8: #{tucker_forward.3} parent=1 // loop_exit
      _
    %387 = vsyncpa [#allocation3], 1
    %s388 = scalar_lea.sflag [#allocation3], 1
    %389 = vsyncpa %s388, 1

// kernel: tucker_forward.2
$region0: #{tucker_forward.2}
  #allocation0 [shape = 'u32[]', space=smem, size = 0x4, offset = 0x4, fixed_abs, tag = 'smem constant byte address 0x4 - core index']
  #allocation1 [shape = 'u32[144,128]{1,0:T(1,128)}', space=vmem, size = 0x12000, scoped, tag = 'internal scratch']
  #allocation2 [shape = 'f32[8,128]{1,0:T(8,128)}', space=vmem, size = 0x1000, scoped, tag = 'scratch operand']
  #allocation3 [shape = 'f32[8,128]{1,0:T(8,128)}', space=vmem, size = 0x1000, scoped, tag = 'scratch operand']
  %s0 = inlined_call_operand.vmem [shape: f32[8,128], index: 0, kind: input, shape index: {}]
  %s1 = inlined_call_operand.vmem [shape: f32[128,8], index: 1, kind: input, shape index: {}]
  %s2 = inlined_call_operand.hbm [shape: f32[128,128,128], index: 2, kind: input, shape index: {}]
  %s3 = inlined_call_operand.vmem [shape: f32[8,128], index: 3, kind: output, shape index: {}]
  %s4 = sld [smem:[#allocation0]]
  $region57: #{tucker_forward.2} parent=0
    _
  %s6 = ssub.s32 1, %s4
  %s7 = scalar_select 0, %s6, %s4
  $region1: #{tucker_forward.2} parent=0
    #allocation4 [shape = 'u8[4194304]{0}', space=vmem, size = 0x400000, scoped, tag = 'input window, operand 2']
    #allocation5 [shape = 's32[2]{0}', space=sflag, size = 0x8, scoped, tag = 'scoped memory for tucker_forward.2']
    %8 = vsyncpa [#allocation5], 0
    %s9 = scalar_lea.sflag [#allocation5], 1
    %10 = vsyncpa %s9, 0
    loop: start=0, step=1, limit=6
    $region2: #{tucker_forward.2} parent=1 // loop_pre_header
      _
    $region3: #{tucker_forward.2} parent=1 // loop_header
      %s12 = sphi 0, %s16
      %p13 = scmp.ge.s32.totalorder %s12, 6
      %s20 = sphi 0, %s20
      %s22 = sphi 0, %s20
      %s23 = sphi 0, %s22
      %s37 = sphi 0, %s23
      %s43 = sphi 0, %s45
      %s46 = sphi 0, %s43
      %s47 = sphi 0, %s46
      %s63 = sphi 0, %s47
      %s69 = sphi 0, %s71
      %s72 = sphi 0, %s69
      %s73 = sphi 0, %s72
      %s89 = sphi 0, %s73
      %s93 = sphi 0, %s93
      %s95 = sphi 0, %s93
      %s96 = sphi 0, %s95
      %s110 = sphi 0, %s96
    $region4: #{tucker_forward.2} parent=1 // loop_header_branch
      %15 = sbr.rel (%p13) target = $region8
    $region5: #{tucker_forward.2} parent=1 // loop_body
      %s17 = ssub.s32 %s12, 1
      %s18 = ssub.s32 %s12, 2
      %s19 = sadd.s32 %s12, 1
      %s21 = sadd.s32 %s20, 1
      %p24 = scmp.eq.s32.totalorder %s12, 3
      %p25 = scmp.ne.s32.totalorder %s20, %s22
      %p26 = scmp.eq.s32.totalorder %s12, 0
      %p27 = por %p25, %p26
      %p28 = scmp.ne.s32.totalorder %s20, %s22
      %p29 = scmp.eq.s32.totalorder %s17, 3
      %p30 = por %p28, %p29
      %p31 = scmp.ne.s32.totalorder %s22, %s23
      %p32 = scmp.eq.s32.totalorder %s17, 0
      %p33 = por %p31, %p32
      %p34 = scmp.ne.s32.totalorder %s22, %s23
      %p35 = scmp.eq.s32.totalorder %s18, 3
      %p36 = por %p34, %p35
      %p38 = scmp.ne.s32.totalorder %s23, %s37
      %p39 = scmp.eq.s32.totalorder %s18, 0
      %p40 = por %p38, %p39
      %s41 = ssub.s32 %s12, %s19
      %p42 = scmp.eq.s32.totalorder %s41, 0
      %s44 = sadd.s32 %s43, 1
      %s45 = scalar_select %p42, %s43, %s44
      %p48 = pneg %p42
      %p49 = scmp.eq.s32.totalorder %s12, 3
      %p50 = por %p48, %p49
      %p51 = scmp.ne.s32.totalorder %s43, %s46
      %p52 = scmp.eq.s32.totalorder %s12, 0
      %p53 = por %p51, %p52
      %p54 = scmp.ne.s32.totalorder %s43, %s46
      %p55 = scmp.eq.s32.totalorder %s17, 3
      %p56 = por %p54, %p55
      %p57 = scmp.ne.s32.totalorder %s46, %s47
      %p58 = scmp.eq.s32.totalorder %s17, 0
      %p59 = por %p57, %p58
      %p60 = scmp.ne.s32.totalorder %s46, %s47
      %p61 = scmp.eq.s32.totalorder %s18, 3
      %p62 = por %p60, %p61
      %p64 = scmp.ne.s32.totalorder %s47, %s63
      %p65 = scmp.eq.s32.totalorder %s18, 0
      %p66 = por %p64, %p65
      %s67 = ssub.s32 %s12, %s19
      %p68 = scmp.eq.s32.totalorder %s67, 0
      %s70 = sadd.s32 %s69, 1
      %s71 = scalar_select %p68, %s69, %s70
      %p74 = pneg %p68
      %p75 = scmp.eq.s32.totalorder %s12, 3
      %p76 = por %p74, %p75
      %p77 = scmp.ne.s32.totalorder %s69, %s72
      %p78 = scmp.eq.s32.totalorder %s12, 0
      %p79 = por %p77, %p78
      %p80 = scmp.ne.s32.totalorder %s69, %s72
      %p81 = scmp.eq.s32.totalorder %s17, 3
      %p82 = por %p80, %p81
      %p83 = scmp.ne.s32.totalorder %s72, %s73
      %p84 = scmp.eq.s32.totalorder %s17, 0
      %p85 = por %p83, %p84
      %p86 = scmp.ne.s32.totalorder %s72, %s73
      %p87 = scmp.eq.s32.totalorder %s18, 3
      %p88 = por %p86, %p87
      %p90 = scmp.ne.s32.totalorder %s73, %s89
      %p91 = scmp.eq.s32.totalorder %s18, 0
      %p92 = por %p90, %p91
      %s94 = sadd.s32 %s93, 1
      %p97 = scmp.eq.s32.totalorder %s12, 3
      %p98 = scmp.ne.s32.totalorder %s93, %s95
      %p99 = scmp.eq.s32.totalorder %s12, 0
      %p100 = por %p98, %p99
      %p101 = scmp.ne.s32.totalorder %s93, %s95
      %p102 = scmp.eq.s32.totalorder %s17, 3
      %p103 = por %p101, %p102
      %p104 = scmp.ne.s32.totalorder %s95, %s96
      %p105 = scmp.eq.s32.totalorder %s17, 0
      %p106 = por %p104, %p105
      %p107 = scmp.ne.s32.totalorder %s95, %s96
      %p108 = scmp.eq.s32.totalorder %s18, 3
      %p109 = por %p107, %p108
      %p111 = scmp.ne.s32.totalorder %s96, %s110
      %p112 = scmp.eq.s32.totalorder %s18, 0
      %p113 = por %p111, %p112
      %p114 = scmp.le.s32.totalorder 1, %s12
      %p115 = scmp.lt.s32.totalorder %s12, 5
      %p116 = pnand %p114, %p115
      %p117 = pneg %p116
      // Predicated region
      $region9: #{tucker_forward.2} parent=5 // pred_check
        _
      $region10: #{tucker_forward.2} parent=5 // pred_check_branch
        %119 = sbr.rel (%p116) target = $region12
      $region11: #{tucker_forward.2} parent=5 // pred_region
        %s120 = ssub.s32 %s12, 1
        // Predicated region
        $region13: #{tucker_forward.2} parent=11 // pred_check
          %p121 = pneg %p33
        $region14: #{tucker_forward.2} parent=11 // pred_check_branch
          %123 = sbr.rel (%p121) target = $region16
        $region15: #{tucker_forward.2} parent=11 // pred_region
          _
        $region16: #{tucker_forward.2} parent=11 // pred_fallthru
          _
      $region12: #{tucker_forward.2} parent=5 // pred_fallthru
        _
      %p124 = scmp.lt.s32.totalorder %s12, 4
      // Predicated region
      $region17: #{tucker_forward.2} parent=5 // pred_check
        %p125 = pneg %p124
      $region18: #{tucker_forward.2} parent=5 // pred_check_branch
        %127 = sbr.rel (%p125) target = $region20
      $region19: #{tucker_forward.2} parent=5 // pred_region
        // Predicated region
        $region21: #{tucker_forward.2} parent=19 // pred_check
          %p128 = pneg %p53
        $region22: #{tucker_forward.2} parent=19 // pred_check_branch
          %130 = sbr.rel (%p128) target = $region24
        $region23: #{tucker_forward.2} parent=19 // pred_region
          %s131 = smul.u32 4, %s12
          %p132 = scmp.lt.s32.totalorder %s131, 15
          %s133 = scalar_select %p132, %s131, 15
          %s134 = smul.addr %s133, 8
          %s135 = scalar_lea.vmem %s1, %s134
          %s136 = smul.u32 4, %s12
        $region24: #{tucker_forward.2} parent=19 // pred_fallthru
          _
        // Predicated region
        $region25: #{tucker_forward.2} parent=19 // pred_check
          %p137 = pneg %p79
        $region26: #{tucker_forward.2} parent=19 // pred_check_branch
          %139 = sbr.rel (%p137) target = $region28
        $region27: #{tucker_forward.2} parent=19 // pred_region
          %s140 = sand.u32 %s69, 1
          %s141 = scalar_lea.sflag [#allocation5], %s140
          %s142 = sand.u32 %s69, 1
          %s143 = smul.addr %s142, 4096
          %s144 = scalar_lea.vmem [#allocation4], %s143
          %s145 = smul.u32 32, %s12
          %s147 = ssub.s32 65536, 65536
          %148 = vsyncadd %s141, %s147
          %s149 = smul.addr %s145, 16
          %s150 = smul.addr %s149, 128
          %s151 = scalar_lea.hbm %s2, %s150
          %s152 = sshll.u32 %s144, 4
          %s153 = int_to_ptr.vmem [resolvable:$true] %s152
          %158 = dma.hbm_to_vmem [thread:$0]  %s151, 65536, %s153, %s141, 128, 128, 8
        $region28: #{tucker_forward.2} parent=19 // pred_fallthru
          _
      $region20: #{tucker_forward.2} parent=5 // pred_fallthru
        _
      %p159 = scmp.le.s32.totalorder 1, %s12
      %p160 = scmp.lt.s32.totalorder %s12, 5
      %p161 = pnand %p159, %p160
      %p162 = pneg %p161
      // Predicated region
      $region29: #{tucker_forward.2} parent=5 // pred_check
        _
      $region30: #{tucker_forward.2} parent=5 // pred_check_branch
        %164 = sbr.rel (%p161) target = $region32
      $region31: #{tucker_forward.2} parent=5 // pred_region
        %s165 = ssub.s32 %s12, 1
        %s166 = sand.u32 %s72, 1
        %s167 = scalar_lea.sflag [#allocation5], %s166
        %s168 = sand.u32 %s72, 1
        %s169 = smul.addr %s168, 4096
        %s170 = scalar_lea.vmem [#allocation4], %s169
        // Predicated region
        $region33: #{tucker_forward.2} parent=31 // pred_check
          %p171 = pneg %p85
        $region34: #{tucker_forward.2} parent=31 // pred_check_branch
          %173 = sbr.rel (%p171) target = $region36
        $region35: #{tucker_forward.2} parent=31 // pred_region
          %174 = dma.done %s167, 65536
        $region36: #{tucker_forward.2} parent=31 // pred_fallthru
          _
        %p175 = pneg %p33
        %p176 = pneg %p30
        %s177 = smul.u32 4, %s17
        %p178 = scmp.lt.s32.totalorder %s177, 15
        %s179 = scalar_select %p178, %s177, 15
        %s180 = smul.addr %s179, 8
        %s181 = scalar_lea.vmem %s1, %s180
        %p182 = pneg %p59
        %p183 = pneg %p56
        %s184 = sand.u32 %s72, 1
        %s185 = scalar_lea.sflag [#allocation5], %s184
        %s186 = sand.u32 %s72, 1
        %s187 = smul.addr %s186, 4096
        %s188 = scalar_lea.vmem [#allocation4], %s187
        %p189 = pneg %p85
        %p190 = pneg %p82
        %p191 = pneg %p106
        %p192 = pneg %p103
        %s193 = smul.u32 4, %s17
        %p194 = scmp.lt.s32.totalorder %s193, 15
        %s195 = scalar_select %p194, %s193, 15
        %s196 = smul.addr %s195, 8
        %s197 = scalar_lea.vmem %s1, %s196
        %s198 = smul.u32 4, %s17
        %s199 = smul.u32 32, %s17
        %p201 = scmp.eq.s32.totalorder %s17, 0
        // Predicated region
        $region37: #{tucker_forward.2} parent=31 // pred_check
          %p202 = pneg %p201
        $region38: #{tucker_forward.2} parent=31 // pred_check_branch
          %204 = sbr.rel (%p202) target = $region40
        $region39: #{tucker_forward.2} parent=31 // pred_region
          %v205 = vld [vmem:[%s0] sm:$0xff]
          %v206 = vrot.slane %v205, 4
          %v207 = vadd.f32 %v205, %v206
          %v208 = vrot.slane %v207, 2
          %v209 = vadd.f32 %v207, %v208
          %v210 = vrot.slane %v209, 1
          %v211 = vadd.f32 %v209, %v210
          %v212 = vmul.f32 %v211, 0.125
          %v213 = vmul.f32 %v205, %v205
          %v214 = vrot.slane %v213, 4
          %v215 = vadd.f32 %v213, %v214
          %v216 = vrot.slane %v215, 2
          %v217 = vadd.f32 %v215, %v216
          %v218 = vrot.slane %v217, 1
          %v219 = vadd.f32 %v217, %v218
          %v220 = vmul.f32 %v219, 0.125
          %v221 = vmul.f32 %v212, %v212
          %v222 = vsub.f32 %v220, %v221
          %v223 = vsub.f32 %v205, %v212
          %v224 = vadd.f32 %v222, 1e-05
          %v225 = vrsqrt.pop %v224
          %v226 = vmul.f32 %v223, %v225
          %227 = vst [vmem:[#allocation2] sm:$0xff] %v226
          %228 = vst [vmem:[#allocation3] sm:$0xff] 0.0
        $region40: #{tucker_forward.2} parent=31 // pred_fallthru
          _
        %v229 = vld [vmem:[#allocation2] sm:$0xff]
        %v230 = vld [vmem:[%s197] sm:$0xff]
        %v231 = vld [vmem:[%s197 + $0x8] sm:$0xff]
        %v232 = vld [vmem:[%s197 + $0x10] sm:$0xff]
        %v233 = vld [vmem:[%s197 + $0x18] sm:$0xff]
        %v234 = vlaneseq
        %v235 = vshrl.u32 %v234, 7
        %v236 = vsub.s32 0, %v235
        %v237 = vrot.slane %v230, %v236
        %239 = vbcast.lane.b32.xlu0 %v237, 256
        %v240 = vpop.permute.xlu0 %239
        %v241 = vlaneseq
        %v242 = vshrl.u32 %v241, 7
        %v243 = vsub.s32 1, %v242
        %v244 = vrot.slane %v230, %v243
        %246 = vbcast.lane.b32.xlu0 %v244, 256
        %v247 = vpop.permute.xlu0 %246
        %v248 = vlaneseq
        %v249 = vshrl.u32 %v248, 7
        %v250 = vsub.s32 2, %v249
        %v251 = vrot.slane %v230, %v250
        %253 = vbcast.lane.b32.xlu0 %v251, 256
        %v254 = vpop.permute.xlu0 %253
        %v255 = vlaneseq
        %v256 = vshrl.u32 %v255, 7
        %v257 = vsub.s32 3, %v256
        %v258 = vrot.slane %v230, %v257
        %260 = vbcast.lane.b32.xlu0 %v258, 256
        %v261 = vpop.permute.xlu0 %260
        %v262 = vlaneseq
        %v263 = vshrl.u32 %v262, 7
        %v264 = vsub.s32 4, %v263
        %v265 = vrot.slane %v230, %v264
        %267 = vbcast.lane.b32.xlu0 %v265, 256
        %v268 = vpop.permute.xlu0 %267
        %v269 = vlaneseq
        %v270 = vshrl.u32 %v269, 7
        %v271 = vsub.s32 5, %v270
        %v272 = vrot.slane %v230, %v271
        %274 = vbcast.lane.b32.xlu0 %v272, 256
        %v275 = vpop.permute.xlu0 %274
        %v276 = vlaneseq
        %v277 = vshrl.u32 %v276, 7
        %v278 = vsub.s32 6, %v277
        %v279 = vrot.slane %v230, %v278
        %281 = vbcast.lane.b32.xlu0 %v279, 256
        %v282 = vpop.permute.xlu0 %281
        %v283 = vlaneseq
        %v284 = vshrl.u32 %v283, 7
        %v285 = vsub.s32 7, %v284
        %v286 = vrot.slane %v230, %v285
        %288 = vbcast.lane.b32.xlu0 %v286, 256
        %v289 = vpop.permute.xlu0 %288
        %v290 = vlaneseq
        %v291 = vshrl.u32 %v290, 7
        %v292 = vsub.s32 0, %v291
        %v293 = vrot.slane %v231, %v292
        %295 = vbcast.lane.b32.xlu0 %v293, 256
        %v296 = vpop.permute.xlu0 %295
        %v297 = vlaneseq
        %v298 = vshrl.u32 %v297, 7
        %v299 = vsub.s32 1, %v298
        %v300 = vrot.slane %v231, %v299
        %302 = vbcast.lane.b32.xlu0 %v300, 256
        %v303 = vpop.permute.xlu0 %302
        %v304 = vlaneseq
        %v305 = vshrl.u32 %v304, 7
        %v306 = vsub.s32 2, %v305
        %v307 = vrot.slane %v231, %v306
        %309 = vbcast.lane.b32.xlu0 %v307, 256
        %v310 = vpop.permute.xlu0 %309
        %v311 = vlaneseq
        %v312 = vshrl.u32 %v311, 7
        %v313 = vsub.s32 3, %v312
        %v314 = vrot.slane %v231, %v313
        %316 = vbcast.lane.b32.xlu0 %v314, 256
        %v317 = vpop.permute.xlu0 %316
        %v318 = vlaneseq
        %v319 = vshrl.u32 %v318, 7
        %v320 = vsub.s32 4, %v319
        %v321 = vrot.slane %v231, %v320
        %323 = vbcast.lane.b32.xlu0 %v321, 256
        %v324 = vpop.permute.xlu0 %323
        %v325 = vlaneseq
        %v326 = vshrl.u32 %v325, 7
        %v327 = vsub.s32 5, %v326
        %v328 = vrot.slane %v231, %v327
        %330 = vbcast.lane.b32.xlu0 %v328, 256
        %v331 = vpop.permute.xlu0 %330
        %v332 = vlaneseq
        %v333 = vshrl.u32 %v332, 7
        %v334 = vsub.s32 6, %v333
        %v335 = vrot.slane %v231, %v334
        %337 = vbcast.lane.b32.xlu0 %v335, 256
        %v338 = vpop.permute.xlu0 %337
        %v339 = vlaneseq
        %v340 = vshrl.u32 %v339, 7
        %v341 = vsub.s32 7, %v340
        %v342 = vrot.slane %v231, %v341
        %344 = vbcast.lane.b32.xlu0 %v342, 256
        %v345 = vpop.permute.xlu0 %344
        %v346 = vlaneseq
        %v347 = vshrl.u32 %v346, 7
        %v348 = vsub.s32 0, %v347
        %v349 = vrot.slane %v232, %v348
        %351 = vbcast.lane.b32.xlu0 %v349, 256
        %v352 = vpop.permute.xlu0 %351
        %v353 = vlaneseq
        %v354 = vshrl.u32 %v353, 7
        %v355 = vsub.s32 1, %v354
        %v356 = vrot.slane %v232, %v355
        %358 = vbcast.lane.b32.xlu0 %v356, 256
        %v359 = vpop.permute.xlu0 %358
        %v360 = vlaneseq
        %v361 = vshrl.u32 %v360, 7
        %v362 = vsub.s32 2, %v361
        %v363 = vrot.slane %v232, %v362
        %365 = vbcast.lane.b32.xlu0 %v363, 256
        %v366 = vpop.permute.xlu0 %365
        %v367 = vlaneseq
        %v368 = vshrl.u32 %v367, 7
        %v369 = vsub.s32 3, %v368
        %v370 = vrot.slane %v232, %v369
        %372 = vbcast.lane.b32.xlu0 %v370, 256
        %v373 = vpop.permute.xlu0 %372
        %v374 = vlaneseq
        %v375 = vshrl.u32 %v374, 7
        %v376 = vsub.s32 4, %v375
        %v377 = vrot.slane %v232, %v376
        %379 = vbcast.lane.b32.xlu0 %v377, 256
        %v380 = vpop.permute.xlu0 %379
        %v381 = vlaneseq
        %v382 = vshrl.u32 %v381, 7
        %v383 = vsub.s32 5, %v382
        %v384 = vrot.slane %v232, %v383
        %386 = vbcast.lane.b32.xlu0 %v384, 256
        %v387 = vpop.permute.xlu0 %386
        %v388 = vlaneseq
        %v389 = vshrl.u32 %v388, 7
        %v390 = vsub.s32 6, %v389
        %v391 = vrot.slane %v232, %v390
        %393 = vbcast.lane.b32.xlu0 %v391, 256
        %v394 = vpop.permute.xlu0 %393
        %v395 = vlaneseq
        %v396 = vshrl.u32 %v395, 7
        %v397 = vsub.s32 7, %v396
        %v398 = vrot.slane %v232, %v397
        %400 = vbcast.lane.b32.xlu0 %v398, 256
        %v401 = vpop.permute.xlu0 %400
        %v402 = vlaneseq
        %v403 = vshrl.u32 %v402, 7
        %v404 = vsub.s32 0, %v403
        %v405 = vrot.slane %v233, %v404
        %407 = vbcast.lane.b32.xlu0 %v405, 256
        %v408 = vpop.permute.xlu0 %407
        %v409 = vlaneseq
        %v410 = vshrl.u32 %v409, 7
        %v411 = vsub.s32 1, %v410
        %v412 = vrot.slane %v233, %v411
        %414 = vbcast.lane.b32.xlu0 %v412, 256
        %v415 = vpop.permute.xlu0 %414
        %v416 = vlaneseq
        %v417 = vshrl.u32 %v416, 7
        %v418 = vsub.s32 2, %v417
        %v419 = vrot.slane %v233, %v418
        %421 = vbcast.lane.b32.xlu0 %v419, 256
        %v422 = vpop.permute.xlu0 %421
        %v423 = vlaneseq
        %v424 = vshrl.u32 %v423, 7
        %v425 = vsub.s32 3, %v424
        %v426 = vrot.slane %v233, %v425
        %428 = vbcast.lane.b32.xlu0 %v426, 256
        %v429 = vpop.permute.xlu0 %428
        %v430 = vlaneseq
        %v431 = vshrl.u32 %v430, 7
        %v432 = vsub.s32 4, %v431
        %v433 = vrot.slane %v233, %v432
        %435 = vbcast.lane.b32.xlu0 %v433, 256
        %v436 = vpop.permute.xlu0 %435
        %v437 = vlaneseq
        %v438 = vshrl.u32 %v437, 7
        %v439 = vsub.s32 5, %v438
        %v440 = vrot.slane %v233, %v439
        %442 = vbcast.lane.b32.xlu0 %v440, 256
        %v443 = vpop.permute.xlu0 %442
        %v444 = vlaneseq
        %v445 = vshrl.u32 %v444, 7
        %v446 = vsub.s32 6, %v445
        %v447 = vrot.slane %v233, %v446
        %449 = vbcast.lane.b32.xlu0 %v447, 256
        %v450 = vpop.permute.xlu0 %449
        %v451 = vlaneseq
        %v452 = vshrl.u32 %v451, 7
        %v453 = vsub.s32 7, %v452
        %v454 = vrot.slane %v233, %v453
        %456 = vbcast.lane.b32.xlu0 %v454, 256
        %v457 = vpop.permute.xlu0 %456
        %v458 = vmul.f32 %v240, %v229
        %v459 = vmul.f32 %v247, %v229
        %v460 = vmul.f32 %v254, %v229
        %v461 = vmul.f32 %v261, %v229
        %v462 = vmul.f32 %v268, %v229
        %v463 = vmul.f32 %v275, %v229
        %v464 = vmul.f32 %v282, %v229
        %v465 = vmul.f32 %v289, %v229
        %v466 = vmul.f32 %v296, %v229
        %v467 = vmul.f32 %v303, %v229
        %v468 = vmul.f32 %v310, %v229
        %v469 = vmul.f32 %v317, %v229
        %v470 = vmul.f32 %v324, %v229
        %v471 = vmul.f32 %v331, %v229
        %v472 = vmul.f32 %v338, %v229
        %v473 = vmul.f32 %v345, %v229
        %v474 = vmul.f32 %v352, %v229
        %v475 = vmul.f32 %v359, %v229
        %v476 = vmul.f32 %v366, %v229
        %v477 = vmul.f32 %v373, %v229
        %v478 = vmul.f32 %v380, %v229
        %v479 = vmul.f32 %v387, %v229
        %v480 = vmul.f32 %v394, %v229
        %v481 = vmul.f32 %v401, %v229
        %v482 = vmul.f32 %v408, %v229
        %v483 = vmul.f32 %v415, %v229
        %v484 = vmul.f32 %v422, %v229
        %v485 = vmul.f32 %v429, %v229
        %v486 = vmul.f32 %v436, %v229
        %v487 = vmul.f32 %v443, %v229
        %v488 = vmul.f32 %v450, %v229
        %v489 = vmul.f32 %v457, %v229
        %v490 = vpack.c.bf16 %v458, %v458
        %v491 = vpack.c.bf16 %v459, %v459
        %v492 = vpack.c.bf16 %v460, %v460
        %v493 = vpack.c.bf16 %v461, %v461
        %v494 = vpack.c.bf16 %v462, %v462
        %v495 = vpack.c.bf16 %v463, %v463
        %v496 = vpack.c.bf16 %v464, %v464
        %v497 = vpack.c.bf16 %v465, %v465
        %v498 = vpack.c.bf16 %v466, %v466
        %v499 = vpack.c.bf16 %v467, %v467
        %v500 = vpack.c.bf16 %v468, %v468
        %v501 = vpack.c.bf16 %v469, %v469
        %v502 = vpack.c.bf16 %v470, %v470
        %v503 = vpack.c.bf16 %v471, %v471
        %v504 = vpack.c.bf16 %v472, %v472
        %v505 = vpack.c.bf16 %v473, %v473
        %v506 = vpack.c.bf16 %v474, %v474
        %v507 = vpack.c.bf16 %v475, %v475
        %v508 = vpack.c.bf16 %v476, %v476
        %v509 = vpack.c.bf16 %v477, %v477
        %v510 = vpack.c.bf16 %v478, %v478
        %v511 = vpack.c.bf16 %v479, %v479
        %v512 = vpack.c.bf16 %v480, %v480
        %v513 = vpack.c.bf16 %v481, %v481
        %v514 = vpack.c.bf16 %v482, %v482
        %v515 = vpack.c.bf16 %v483, %v483
        %v516 = vpack.c.bf16 %v484, %v484
        %v517 = vpack.c.bf16 %v485, %v485
        %v518 = vpack.c.bf16 %v486, %v486
        %v519 = vpack.c.bf16 %v487, %v487
        %v520 = vpack.c.bf16 %v488, %v488
        %v521 = vpack.c.bf16 %v489, %v489
        %v522 = vld [vmem:[%s170] sm:$0xff]
        %v523 = vld [vmem:[%s170 + $0x8] sm:$0xff]
        %v524 = vld [vmem:[%s170 + $0x10] sm:$0xff]
        %v525 = vld [vmem:[%s170 + $0x18] sm:$0xff]
        %v526 = vld [vmem:[%s170 + $0x20] sm:$0xff]
        %v527 = vld [vmem:[%s170 + $0x28] sm:$0xff]
        %v528 = vld [vmem:[%s170 + $0x30] sm:$0xff]
        %v529 = vld [vmem:[%s170 + $0x38] sm:$0xff]
        %v530 = vld [vmem:[%s170 + $0x40] sm:$0xff]
        %v531 = vld [vmem:[%s170 + $0x48] sm:$0xff]
        %v532 = vld [vmem:[%s170 + $0x50] sm:$0xff]
        %v533 = vld [vmem:[%s170 + $0x58] sm:$0xff]
        %v534 = vld [vmem:[%s170 + $0x60] sm:$0xff]
        %v535 = vld [vmem:[%s170 + $0x68] sm:$0xff]
        %v536 = vld [vmem:[%s170 + $0x70] sm:$0xff]
        %v537 = vld [vmem:[%s170 + $0x78] sm:$0xff]
        %v538 = vld [vmem:[%s170 + $0x80] sm:$0xff]
        %v539 = vld [vmem:[%s170 + $0x88] sm:$0xff]
        %v540 = vld [vmem:[%s170 + $0x90] sm:$0xff]
        %v541 = vld [vmem:[%s170 + $0x98] sm:$0xff]
        %v542 = vld [vmem:[%s170 + $0xa0] sm:$0xff]
        %v543 = vld [vmem:[%s170 + $0xa8] sm:$0xff]
        %v544 = vld [vmem:[%s170 + $0xb0] sm:$0xff]
        %v545 = vld [vmem:[%s170 + $0xb8] sm:$0xff]
        %v546 = vld [vmem:[%s170 + $0xc0] sm:$0xff]
        %v547 = vld [vmem:[%s170 + $0xc8] sm:$0xff]
        %v548 = vld [vmem:[%s170 + $0xd0] sm:$0xff]
        %v549 = vld [vmem:[%s170 + $0xd8] sm:$0xff]
        %v550 = vld [vmem:[%s170 + $0xe0] sm:$0xff]
        %v551 = vld [vmem:[%s170 + $0xe8] sm:$0xff]
        %v552 = vld [vmem:[%s170 + $0xf0] sm:$0xff]
        %v553 = vld [vmem:[%s170 + $0xf8] sm:$0xff]
        %v554 = vld [vmem:[%s170 + $0x100] sm:$0xff]
        %v555 = vld [vmem:[%s170 + $0x108] sm:$0xff]
        %v556 = vld [vmem:[%s170 + $0x110] sm:$0xff]
        %v557 = vld [vmem:[%s170 + $0x118] sm:$0xff]
        %v558 = vld [vmem:[%s170 + $0x120] sm:$0xff]
        %v559 = vld [vmem:[%s170 + $0x128] sm:$0xff]
        %v560 = vld [vmem:[%s170 + $0x130] sm:$0xff]
        %v561 = vld [vmem:[%s170 + $0x138] sm:$0xff]
        %v562 = vld [vmem:[%s170 + $0x140] sm:$0xff]
        %v563 = vld [vmem:[%s170 + $0x148] sm:$0xff]
        %v564 = vld [vmem:[%s170 + $0x150] sm:$0xff]
        %v565 = vld [vmem:[%s170 + $0x158] sm:$0xff]
        %v566 = vld [vmem:[%s170 + $0x160] sm:$0xff]
        %v567 = vld [vmem:[%s170 + $0x168] sm:$0xff]
        %v568 = vld [vmem:[%s170 + $0x170] sm:$0xff]
        %v569 = vld [vmem:[%s170 + $0x178] sm:$0xff]
        %v570 = vld [vmem:[%s170 + $0x180] sm:$0xff]
        %v571 = vld [vmem:[%s170 + $0x188] sm:$0xff]
        %v572 = vld [vmem:[%s170 + $0x190] sm:$0xff]
        %v573 = vld [vmem:[%s170 + $0x198] sm:$0xff]
        %v574 = vld [vmem:[%s170 + $0x1a0] sm:$0xff]
        %v575 = vld [vmem:[%s170 + $0x1a8] sm:$0xff]
        %v576 = vld [vmem:[%s170 + $0x1b0] sm:$0xff]
        %v577 = vld [vmem:[%s170 + $0x1b8] sm:$0xff]
        %v578 = vld [vmem:[%s170 + $0x1c0] sm:$0xff]
        %v579 = vld [vmem:[%s170 + $0x1c8] sm:$0xff]
        %v580 = vld [vmem:[%s170 + $0x1d0] sm:$0xff]
        %v581 = vld [vmem:[%s170 + $0x1d8] sm:$0xff]
        %v582 = vld [vmem:[%s170 + $0x1e0] sm:$0xff]
        %v583 = vld [vmem:[%s170 + $0x1e8] sm:$0xff]
        %v584 = vld [vmem:[%s170 + $0x1f0] sm:$0xff]
        %v585 = vld [vmem:[%s170 + $0x1f8] sm:$0xff]
        %v586 = vld [vmem:[%s170 + $0x200] sm:$0xff]
        %v587 = vld [vmem:[%s170 + $0x208] sm:$0xff]
        %v588 = vld [vmem:[%s170 + $0x210] sm:$0xff]
        %v589 = vld [vmem:[%s170 + $0x218] sm:$0xff]
        %v590 = vld [vmem:[%s170 + $0x220] sm:$0xff]
        %v591 = vld [vmem:[%s170 + $0x228] sm:$0xff]
        %v592 = vld [vmem:[%s170 + $0x230] sm:$0xff]
        %v593 = vld [vmem:[%s170 + $0x238] sm:$0xff]
        %v594 = vld [vmem:[%s170 + $0x240] sm:$0xff]
        %v595 = vld [vmem:[%s170 + $0x248] sm:$0xff]
        %v596 = vld [vmem:[%s170 + $0x250] sm:$0xff]
        %v597 = vld [vmem:[%s170 + $0x258] sm:$0xff]
        %v598 = vld [vmem:[%s170 + $0x260] sm:$0xff]
        %v599 = vld [vmem:[%s170 + $0x268] sm:$0xff]
        %v600 = vld [vmem:[%s170 + $0x270] sm:$0xff]
        %v601 = vld [vmem:[%s170 + $0x278] sm:$0xff]
        %v602 = vld [vmem:[%s170 + $0x280] sm:$0xff]
        %v603 = vld [vmem:[%s170 + $0x288] sm:$0xff]
        %v604 = vld [vmem:[%s170 + $0x290] sm:$0xff]
        %v605 = vld [vmem:[%s170 + $0x298] sm:$0xff]
        %v606 = vld [vmem:[%s170 + $0x2a0] sm:$0xff]
        %v607 = vld [vmem:[%s170 + $0x2a8] sm:$0xff]
        %v608 = vld [vmem:[%s170 + $0x2b0] sm:$0xff]
        %v609 = vld [vmem:[%s170 + $0x2b8] sm:$0xff]
        %v610 = vld [vmem:[%s170 + $0x2c0] sm:$0xff]
        %v611 = vld [vmem:[%s170 + $0x2c8] sm:$0xff]
        %v612 = vld [vmem:[%s170 + $0x2d0] sm:$0xff]
        %v613 = vld [vmem:[%s170 + $0x2d8] sm:$0xff]
        %v614 = vld [vmem:[%s170 + $0x2e0] sm:$0xff]
        %v615 = vld [vmem:[%s170 + $0x2e8] sm:$0xff]
        %v616 = vld [vmem:[%s170 + $0x2f0] sm:$0xff]
        %v617 = vld [vmem:[%s170 + $0x2f8] sm:$0xff]
        %v618 = vld [vmem:[%s170 + $0x300] sm:$0xff]
        %v619 = vld [vmem:[%s170 + $0x308] sm:$0xff]
        %v620 = vld [vmem:[%s170 + $0x310] sm:$0xff]
        %v621 = vld [vmem:[%s170 + $0x318] sm:$0xff]
        %v622 = vld [vmem:[%s170 + $0x320] sm:$0xff]
        %v623 = vld [vmem:[%s170 + $0x328] sm:$0xff]
        %v624 = vld [vmem:[%s170 + $0x330] sm:$0xff]
        %v625 = vld [vmem:[%s170 + $0x338] sm:$0xff]
        %v626 = vld [vmem:[%s170 + $0x340] sm:$0xff]
        %v627 = vld [vmem:[%s170 + $0x348] sm:$0xff]
        %v628 = vld [vmem:[%s170 + $0x350] sm:$0xff]
        %v629 = vld [vmem:[%s170 + $0x358] sm:$0xff]
        %v630 = vld [vmem:[%s170 + $0x360] sm:$0xff]
        %v631 = vld [vmem:[%s170 + $0x368] sm:$0xff]
        %v632 = vld [vmem:[%s170 + $0x370] sm:$0xff]
        %v633 = vld [vmem:[%s170 + $0x378] sm:$0xff]
        %v634 = vld [vmem:[%s170 + $0x380] sm:$0xff]
        %v635 = vld [vmem:[%s170 + $0x388] sm:$0xff]
        %v636 = vld [vmem:[%s170 + $0x390] sm:$0xff]
        %v637 = vld [vmem:[%s170 + $0x398] sm:$0xff]
        %v638 = vld [vmem:[%s170 + $0x3a0] sm:$0xff]
        %v639 = vld [vmem:[%s170 + $0x3a8] sm:$0xff]
        %v640 = vld [vmem:[%s170 + $0x3b0] sm:$0xff]
        %v641 = vld [vmem:[%s170 + $0x3b8] sm:$0xff]
        %v642 = vld [vmem:[%s170 + $0x3c0] sm:$0xff]
        %v643 = vld [vmem:[%s170 + $0x3c8] sm:$0xff]
        %v644 = vld [vmem:[%s170 + $0x3d0] sm:$0xff]
        %v645 = vld [vmem:[%s170 + $0x3d8] sm:$0xff]
        %v646 = vld [vmem:[%s170 + $0x3e0] sm:$0xff]
        %v647 = vld [vmem:[%s170 + $0x3e8] sm:$0xff]
        %v648 = vld [vmem:[%s170 + $0x3f0] sm:$0xff]
        %v649 = vld [vmem:[%s170 + $0x3f8] sm:$0xff]
        %v650 = vld [vmem:[%s170 + $0x400] sm:$0xff]
        %v651 = vld [vmem:[%s170 + $0x408] sm:$0xff]
        %v652 = vld [vmem:[%s170 + $0x410] sm:$0xff]
        %v653 = vld [vmem:[%s170 + $0x418] sm:$0xff]
        %v654 = vld [vmem:[%s170 + $0x420] sm:$0xff]
        %v655 = vld [vmem:[%s170 + $0x428] sm:$0xff]
        %v656 = vld [vmem:[%s170 + $0x430] sm:$0xff]
        %v657 = vld [vmem:[%s170 + $0x438] sm:$0xff]
        %v658 = vld [vmem:[%s170 + $0x440] sm:$0xff]
        %v659 = vld [vmem:[%s170 + $0x448] sm:$0xff]
        %v660 = vld [vmem:[%s170 + $0x450] sm:$0xff]
        %v661 = vld [vmem:[%s170 + $0x458] sm:$0xff]
        %v662 = vld [vmem:[%s170 + $0x460] sm:$0xff]
        %v663 = vld [vmem:[%s170 + $0x468] sm:$0xff]
        %v664 = vld [vmem:[%s170 + $0x470] sm:$0xff]
        %v665 = vld [vmem:[%s170 + $0x478] sm:$0xff]
        %v666 = vld [vmem:[%s170 + $0x480] sm:$0xff]
        %v667 = vld [vmem:[%s170 + $0x488] sm:$0xff]
        %v668 = vld [vmem:[%s170 + $0x490] sm:$0xff]
        %v669 = vld [vmem:[%s170 + $0x498] sm:$0xff]
        %v670 = vld [vmem:[%s170 + $0x4a0] sm:$0xff]
        %v671 = vld [vmem:[%s170 + $0x4a8] sm:$0xff]
        %v672 = vld [vmem:[%s170 + $0x4b0] sm:$0xff]
        %v673 = vld [vmem:[%s170 + $0x4b8] sm:$0xff]
        %v674 = vld [vmem:[%s170 + $0x4c0] sm:$0xff]
        %v675 = vld [vmem:[%s170 + $0x4c8] sm:$0xff]
        %v676 = vld [vmem:[%s170 + $0x4d0] sm:$0xff]
        %v677 = vld [vmem:[%s170 + $0x4d8] sm:$0xff]
        %v678 = vld [vmem:[%s170 + $0x4e0] sm:$0xff]
        %v679 = vld [vmem:[%s170 + $0x4e8] sm:$0xff]
        %v680 = vld [vmem:[%s170 + $0x4f0] sm:$0xff]
        %v681 = vld [vmem:[%s170 + $0x4f8] sm:$0xff]
        %v682 = vld [vmem:[%s170 + $0x500] sm:$0xff]
        %v683 = vld [vmem:[%s170 + $0x508] sm:$0xff]
        %v684 = vld [vmem:[%s170 + $0x510] sm:$0xff]
        %v685 = vld [vmem:[%s170 + $0x518] sm:$0xff]
        %v686 = vld [vmem:[%s170 + $0x520] sm:$0xff]
        %v687 = vld [vmem:[%s170 + $0x528] sm:$0xff]
        %v688 = vld [vmem:[%s170 + $0x530] sm:$0xff]
        %v689 = vld [vmem:[%s170 + $0x538] sm:$0xff]
        %v690 = vld [vmem:[%s170 + $0x540] sm:$0xff]
        %v691 = vld [vmem:[%s170 + $0x548] sm:$0xff]
        %v692 = vld [vmem:[%s170 + $0x550] sm:$0xff]
        %v693 = vld [vmem:[%s170 + $0x558] sm:$0xff]
        %v694 = vld [vmem:[%s170 + $0x560] sm:$0xff]
        %v695 = vld [vmem:[%s170 + $0x568] sm:$0xff]
        %v696 = vld [vmem:[%s170 + $0x570] sm:$0xff]
        %v697 = vld [vmem:[%s170 + $0x578] sm:$0xff]
        %v698 = vld [vmem:[%s170 + $0x580] sm:$0xff]
        %v699 = vld [vmem:[%s170 + $0x588] sm:$0xff]
        %v700 = vld [vmem:[%s170 + $0x590] sm:$0xff]
        %v701 = vld [vmem:[%s170 + $0x598] sm:$0xff]
        %v702 = vld [vmem:[%s170 + $0x5a0] sm:$0xff]
        %v703 = vld [vmem:[%s170 + $0x5a8] sm:$0xff]
        %v704 = vld [vmem:[%s170 + $0x5b0] sm:$0xff]
        %v705 = vld [vmem:[%s170 + $0x5b8] sm:$0xff]
        %v706 = vld [vmem:[%s170 + $0x5c0] sm:$0xff]
        %v707 = vld [vmem:[%s170 + $0x5c8] sm:$0xff]
        %v708 = vld [vmem:[%s170 + $0x5d0] sm:$0xff]
        %v709 = vld [vmem:[%s170 + $0x5d8] sm:$0xff]
        %v710 = vld [vmem:[%s170 + $0x5e0] sm:$0xff]
        %v711 = vld [vmem:[%s170 + $0x5e8] sm:$0xff]
        %v712 = vld [vmem:[%s170 + $0x5f0] sm:$0xff]
        %v713 = vld [vmem:[%s170 + $0x5f8] sm:$0xff]
        %v714 = vld [vmem:[%s170 + $0x600] sm:$0xff]
        %v715 = vld [vmem:[%s170 + $0x608] sm:$0xff]
        %v716 = vld [vmem:[%s170 + $0x610] sm:$0xff]
        %v717 = vld [vmem:[%s170 + $0x618] sm:$0xff]
        %v718 = vld [vmem:[%s170 + $0x620] sm:$0xff]
        %v719 = vld [vmem:[%s170 + $0x628] sm:$0xff]
        %v720 = vld [vmem:[%s170 + $0x630] sm:$0xff]
        %v721 = vld [vmem:[%s170 + $0x638] sm:$0xff]
        %v722 = vld [vmem:[%s170 + $0x640] sm:$0xff]
        %v723 = vld [vmem:[%s170 + $0x648] sm:$0xff]
        %v724 = vld [vmem:[%s170 + $0x650] sm:$0xff]
        %v725 = vld [vmem:[%s170 + $0x658] sm:$0xff]
        %v726 = vld [vmem:[%s170 + $0x660] sm:$0xff]
        %v727 = vld [vmem:[%s170 + $0x668] sm:$0xff]
        %v728 = vld [vmem:[%s170 + $0x670] sm:$0xff]
        %v729 = vld [vmem:[%s170 + $0x678] sm:$0xff]
        %v730 = vld [vmem:[%s170 + $0x680] sm:$0xff]
        %v731 = vld [vmem:[%s170 + $0x688] sm:$0xff]
        %v732 = vld [vmem:[%s170 + $0x690] sm:$0xff]
        %v733 = vld [vmem:[%s170 + $0x698] sm:$0xff]
        %v734 = vld [vmem:[%s170 + $0x6a0] sm:$0xff]
        %v735 = vld [vmem:[%s170 + $0x6a8] sm:$0xff]
        %v736 = vld [vmem:[%s170 + $0x6b0] sm:$0xff]
        %v737 = vld [vmem:[%s170 + $0x6b8] sm:$0xff]
        %v738 = vld [vmem:[%s170 + $0x6c0] sm:$0xff]
        %v739 = vld [vmem:[%s170 + $0x6c8] sm:$0xff]
        %v740 = vld [vmem:[%s170 + $0x6d0] sm:$0xff]
        %v741 = vld [vmem:[%s170 + $0x6d8] sm:$0xff]
        %v742 = vld [vmem:[%s170 + $0x6e0] sm:$0xff]
        %v743 = vld [vmem:[%s170 + $0x6e8] sm:$0xff]
        %v744 = vld [vmem:[%s170 + $0x6f0] sm:$0xff]
        %v745 = vld [vmem:[%s170 + $0x6f8] sm:$0xff]
        %v746 = vld [vmem:[%s170 + $0x700] sm:$0xff]
        %v747 = vld [vmem:[%s170 + $0x708] sm:$0xff]
        %v748 = vld [vmem:[%s170 + $0x710] sm:$0xff]
        %v749 = vld [vmem:[%s170 + $0x718] sm:$0xff]
        %v750 = vld [vmem:[%s170 + $0x720] sm:$0xff]
        %v751 = vld [vmem:[%s170 + $0x728] sm:$0xff]
        %v752 = vld [vmem:[%s170 + $0x730] sm:$0xff]
        %v753 = vld [vmem:[%s170 + $0x738] sm:$0xff]
        %v754 = vld [vmem:[%s170 + $0x740] sm:$0xff]
        %v755 = vld [vmem:[%s170 + $0x748] sm:$0xff]
        %v756 = vld [vmem:[%s170 + $0x750] sm:$0xff]
        %v757 = vld [vmem:[%s170 + $0x758] sm:$0xff]
        %v758 = vld [vmem:[%s170 + $0x760] sm:$0xff]
        %v759 = vld [vmem:[%s170 + $0x768] sm:$0xff]
        %v760 = vld [vmem:[%s170 + $0x770] sm:$0xff]
        %v761 = vld [vmem:[%s170 + $0x778] sm:$0xff]
        %v762 = vld [vmem:[%s170 + $0x780] sm:$0xff]
        %v763 = vld [vmem:[%s170 + $0x788] sm:$0xff]
        %v764 = vld [vmem:[%s170 + $0x790] sm:$0xff]
        %v765 = vld [vmem:[%s170 + $0x798] sm:$0xff]
        %v766 = vld [vmem:[%s170 + $0x7a0] sm:$0xff]
        %v767 = vld [vmem:[%s170 + $0x7a8] sm:$0xff]
        %v768 = vld [vmem:[%s170 + $0x7b0] sm:$0xff]
        %v769 = vld [vmem:[%s170 + $0x7b8] sm:$0xff]
        %v770 = vld [vmem:[%s170 + $0x7c0] sm:$0xff]
        %v771 = vld [vmem:[%s170 + $0x7c8] sm:$0xff]
        %v772 = vld [vmem:[%s170 + $0x7d0] sm:$0xff]
        %v773 = vld [vmem:[%s170 + $0x7d8] sm:$0xff]
        %v774 = vld [vmem:[%s170 + $0x7e0] sm:$0xff]
        %v775 = vld [vmem:[%s170 + $0x7e8] sm:$0xff]
        %v776 = vld [vmem:[%s170 + $0x7f0] sm:$0xff]
        %v777 = vld [vmem:[%s170 + $0x7f8] sm:$0xff]
        %v778 = vld [vmem:[%s170 + $0x800] sm:$0xff]
        %v779 = vld [vmem:[%s170 + $0x808] sm:$0xff]
        %v780 = vld [vmem:[%s170 + $0x810] sm:$0xff]
        %v781 = vld [vmem:[%s170 + $0x818] sm:$0xff]
        %v782 = vld [vmem:[%s170 + $0x820] sm:$0xff]
        %v783 = vld [vmem:[%s170 + $0x828] sm:$0xff]
        %v784 = vld [vmem:[%s170 + $0x830] sm:$0xff]
        %v785 = vld [vmem:[%s170 + $0x838] sm:$0xff]
        %v786 = vld [vmem:[%s170 + $0x840] sm:$0xff]
        %v787 = vld [vmem:[%s170 + $0x848] sm:$0xff]
        %v788 = vld [vmem:[%s170 + $0x850] sm:$0xff]
        %v789 = vld [vmem:[%s170 + $0x858] sm:$0xff]
        %v790 = vld [vmem:[%s170 + $0x860] sm:$0xff]
        %v791 = vld [vmem:[%s170 + $0x868] sm:$0xff]
        %v792 = vld [vmem:[%s170 + $0x870] sm:$0xff]
        %v793 = vld [vmem:[%s170 + $0x878] sm:$0xff]
        %v794 = vld [vmem:[%s170 + $0x880] sm:$0xff]
        %v795 = vld [vmem:[%s170 + $0x888] sm:$0xff]
        %v796 = vld [vmem:[%s170 + $0x890] sm:$0xff]
        %v797 = vld [vmem:[%s170 + $0x898] sm:$0xff]
        %v798 = vld [vmem:[%s170 + $0x8a0] sm:$0xff]
        %v799 = vld [vmem:[%s170 + $0x8a8] sm:$0xff]
        %v800 = vld [vmem:[%s170 + $0x8b0] sm:$0xff]
        %v801 = vld [vmem:[%s170 + $0x8b8] sm:$0xff]
        %v802 = vld [vmem:[%s170 + $0x8c0] sm:$0xff]
        %v803 = vld [vmem:[%s170 + $0x8c8] sm:$0xff]
        %v804 = vld [vmem:[%s170 + $0x8d0] sm:$0xff]
        %v805 = vld [vmem:[%s170 + $0x8d8] sm:$0xff]
        %v806 = vld [vmem:[%s170 + $0x8e0] sm:$0xff]
        %v807 = vld [vmem:[%s170 + $0x8e8] sm:$0xff]
        %v808 = vld [vmem:[%s170 + $0x8f0] sm:$0xff]
        %v809 = vld [vmem:[%s170 + $0x8f8] sm:$0xff]
        %v810 = vld [vmem:[%s170 + $0x900] sm:$0xff]
        %v811 = vld [vmem:[%s170 + $0x908] sm:$0xff]
        %v812 = vld [vmem:[%s170 + $0x910] sm:$0xff]
        %v813 = vld [vmem:[%s170 + $0x918] sm:$0xff]
        %v814 = vld [vmem:[%s170 + $0x920] sm:$0xff]
        %v815 = vld [vmem:[%s170 + $0x928] sm:$0xff]
        %v816 = vld [vmem:[%s170 + $0x930] sm:$0xff]
        %v817 = vld [vmem:[%s170 + $0x938] sm:$0xff]
        %v818 = vld [vmem:[%s170 + $0x940] sm:$0xff]
        %v819 = vld [vmem:[%s170 + $0x948] sm:$0xff]
        %v820 = vld [vmem:[%s170 + $0x950] sm:$0xff]
        %v821 = vld [vmem:[%s170 + $0x958] sm:$0xff]
        %v822 = vld [vmem:[%s170 + $0x960] sm:$0xff]
        %v823 = vld [vmem:[%s170 + $0x968] sm:$0xff]
        %v824 = vld [vmem:[%s170 + $0x970] sm:$0xff]
        %v825 = vld [vmem:[%s170 + $0x978] sm:$0xff]
        %v826 = vld [vmem:[%s170 + $0x980] sm:$0xff]
        %v827 = vld [vmem:[%s170 + $0x988] sm:$0xff]
        %v828 = vld [vmem:[%s170 + $0x990] sm:$0xff]
        %v829 = vld [vmem:[%s170 + $0x998] sm:$0xff]
        %v830 = vld [vmem:[%s170 + $0x9a0] sm:$0xff]
        %v831 = vld [vmem:[%s170 + $0x9a8] sm:$0xff]
        %v832 = vld [vmem:[%s170 + $0x9b0] sm:$0xff]
        %v833 = vld [vmem:[%s170 + $0x9b8] sm:$0xff]
        %v834 = vld [vmem:[%s170 + $0x9c0] sm:$0xff]
        %v835 = vld [vmem:[%s170 + $0x9c8] sm:$0xff]
        %v836 = vld [vmem:[%s170 + $0x9d0] sm:$0xff]
        %v837 = vld [vmem:[%s170 + $0x9d8] sm:$0xff]
        %v838 = vld [vmem:[%s170 + $0x9e0] sm:$0xff]
        %v839 = vld [vmem:[%s170 + $0x9e8] sm:$0xff]
        %v840 = vld [vmem:[%s170 + $0x9f0] sm:$0xff]
        %v841 = vld [vmem:[%s170 + $0x9f8] sm:$0xff]
        %v842 = vld [vmem:[%s170 + $0xa00] sm:$0xff]
        %v843 = vld [vmem:[%s170 + $0xa08] sm:$0xff]
        %v844 = vld [vmem:[%s170 + $0xa10] sm:$0xff]
        %v845 = vld [vmem:[%s170 + $0xa18] sm:$0xff]
        %v846 = vld [vmem:[%s170 + $0xa20] sm:$0xff]
        %v847 = vld [vmem:[%s170 + $0xa28] sm:$0xff]
        %v848 = vld [vmem:[%s170 + $0xa30] sm:$0xff]
        %v849 = vld [vmem:[%s170 + $0xa38] sm:$0xff]
        %v850 = vld [vmem:[%s170 + $0xa40] sm:$0xff]
        %v851 = vld [vmem:[%s170 + $0xa48] sm:$0xff]
        %v852 = vld [vmem:[%s170 + $0xa50] sm:$0xff]
        %v853 = vld [vmem:[%s170 + $0xa58] sm:$0xff]
        %v854 = vld [vmem:[%s170 + $0xa60] sm:$0xff]
        %v855 = vld [vmem:[%s170 + $0xa68] sm:$0xff]
        %v856 = vld [vmem:[%s170 + $0xa70] sm:$0xff]
        %v857 = vld [vmem:[%s170 + $0xa78] sm:$0xff]
        %v858 = vld [vmem:[%s170 + $0xa80] sm:$0xff]
        %v859 = vld [vmem:[%s170 + $0xa88] sm:$0xff]
        %v860 = vld [vmem:[%s170 + $0xa90] sm:$0xff]
        %v861 = vld [vmem:[%s170 + $0xa98] sm:$0xff]
        %v862 = vld [vmem:[%s170 + $0xaa0] sm:$0xff]
        %v863 = vld [vmem:[%s170 + $0xaa8] sm:$0xff]
        %v864 = vld [vmem:[%s170 + $0xab0] sm:$0xff]
        %v865 = vld [vmem:[%s170 + $0xab8] sm:$0xff]
        %v866 = vld [vmem:[%s170 + $0xac0] sm:$0xff]
        %v867 = vld [vmem:[%s170 + $0xac8] sm:$0xff]
        %v868 = vld [vmem:[%s170 + $0xad0] sm:$0xff]
        %v869 = vld [vmem:[%s170 + $0xad8] sm:$0xff]
        %v870 = vld [vmem:[%s170 + $0xae0] sm:$0xff]
        %v871 = vld [vmem:[%s170 + $0xae8] sm:$0xff]
        %v872 = vld [vmem:[%s170 + $0xaf0] sm:$0xff]
        %v873 = vld [vmem:[%s170 + $0xaf8] sm:$0xff]
        %v874 = vld [vmem:[%s170 + $0xb00] sm:$0xff]
        %v875 = vld [vmem:[%s170 + $0xb08] sm:$0xff]
        %v876 = vld [vmem:[%s170 + $0xb10] sm:$0xff]
        %v877 = vld [vmem:[%s170 + $0xb18] sm:$0xff]
        %v878 = vld [vmem:[%s170 + $0xb20] sm:$0xff]
        %v879 = vld [vmem:[%s170 + $0xb28] sm:$0xff]
        %v880 = vld [vmem:[%s170 + $0xb30] sm:$0xff]
        %v881 = vld [vmem:[%s170 + $0xb38] sm:$0xff]
        %v882 = vld [vmem:[%s170 + $0xb40] sm:$0xff]
        %v883 = vld [vmem:[%s170 + $0xb48] sm:$0xff]
        %v884 = vld [vmem:[%s170 + $0xb50] sm:$0xff]
        %v885 = vld [vmem:[%s170 + $0xb58] sm:$0xff]
        %v886 = vld [vmem:[%s170 + $0xb60] sm:$0xff]
        %v887 = vld [vmem:[%s170 + $0xb68] sm:$0xff]
        %v888 = vld [vmem:[%s170 + $0xb70] sm:$0xff]
        %v889 = vld [vmem:[%s170 + $0xb78] sm:$0xff]
        %v890 = vld [vmem:[%s170 + $0xb80] sm:$0xff]
        %v891 = vld [vmem:[%s170 + $0xb88] sm:$0xff]
        %v892 = vld [vmem:[%s170 + $0xb90] sm:$0xff]
        %v893 = vld [vmem:[%s170 + $0xb98] sm:$0xff]
        %v894 = vld [vmem:[%s170 + $0xba0] sm:$0xff]
        %v895 = vld [vmem:[%s170 + $0xba8] sm:$0xff]
        %v896 = vld [vmem:[%s170 + $0xbb0] sm:$0xff]
        %v897 = vld [vmem:[%s170 + $0xbb8] sm:$0xff]
        %v898 = vld [vmem:[%s170 + $0xbc0] sm:$0xff]
        %v899 = vld [vmem:[%s170 + $0xbc8] sm:$0xff]
        %v900 = vld [vmem:[%s170 + $0xbd0] sm:$0xff]
        %v901 = vld [vmem:[%s170 + $0xbd8] sm:$0xff]
        %v902 = vld [vmem:[%s170 + $0xbe0] sm:$0xff]
        %v903 = vld [vmem:[%s170 + $0xbe8] sm:$0xff]
        %v904 = vld [vmem:[%s170 + $0xbf0] sm:$0xff]
        %v905 = vld [vmem:[%s170 + $0xbf8] sm:$0xff]
        %v906 = vld [vmem:[%s170 + $0xc00] sm:$0xff]
        %v907 = vld [vmem:[%s170 + $0xc08] sm:$0xff]
        %v908 = vld [vmem:[%s170 + $0xc10] sm:$0xff]
        %v909 = vld [vmem:[%s170 + $0xc18] sm:$0xff]
        %v910 = vld [vmem:[%s170 + $0xc20] sm:$0xff]
        %v911 = vld [vmem:[%s170 + $0xc28] sm:$0xff]
        %v912 = vld [vmem:[%s170 + $0xc30] sm:$0xff]
        %v913 = vld [vmem:[%s170 + $0xc38] sm:$0xff]
        %v914 = vld [vmem:[%s170 + $0xc40] sm:$0xff]
        %v915 = vld [vmem:[%s170 + $0xc48] sm:$0xff]
        %v916 = vld [vmem:[%s170 + $0xc50] sm:$0xff]
        %v917 = vld [vmem:[%s170 + $0xc58] sm:$0xff]
        %v918 = vld [vmem:[%s170 + $0xc60] sm:$0xff]
        %v919 = vld [vmem:[%s170 + $0xc68] sm:$0xff]
        %v920 = vld [vmem:[%s170 + $0xc70] sm:$0xff]
        %v921 = vld [vmem:[%s170 + $0xc78] sm:$0xff]
        %v922 = vld [vmem:[%s170 + $0xc80] sm:$0xff]
        %v923 = vld [vmem:[%s170 + $0xc88] sm:$0xff]
        %v924 = vld [vmem:[%s170 + $0xc90] sm:$0xff]
        %v925 = vld [vmem:[%s170 + $0xc98] sm:$0xff]
        %v926 = vld [vmem:[%s170 + $0xca0] sm:$0xff]
        %v927 = vld [vmem:[%s170 + $0xca8] sm:$0xff]
        %v928 = vld [vmem:[%s170 + $0xcb0] sm:$0xff]
        %v929 = vld [vmem:[%s170 + $0xcb8] sm:$0xff]
        %v930 = vld [vmem:[%s170 + $0xcc0] sm:$0xff]
        %v931 = vld [vmem:[%s170 + $0xcc8] sm:$0xff]
        %v932 = vld [vmem:[%s170 + $0xcd0] sm:$0xff]
        %v933 = vld [vmem:[%s170 + $0xcd8] sm:$0xff]
        %v934 = vld [vmem:[%s170 + $0xce0] sm:$0xff]
        %v935 = vld [vmem:[%s170 + $0xce8] sm:$0xff]
        %v936 = vld [vmem:[%s170 + $0xcf0] sm:$0xff]
        %v937 = vld [vmem:[%s170 + $0xcf8] sm:$0xff]
        %v938 = vld [vmem:[%s170 + $0xd00] sm:$0xff]
        %v939 = vld [vmem:[%s170 + $0xd08] sm:$0xff]
        %v940 = vld [vmem:[%s170 + $0xd10] sm:$0xff]
        %v941 = vld [vmem:[%s170 + $0xd18] sm:$0xff]
        %v942 = vld [vmem:[%s170 + $0xd20] sm:$0xff]
        %v943 = vld [vmem:[%s170 + $0xd28] sm:$0xff]
        %v944 = vld [vmem:[%s170 + $0xd30] sm:$0xff]
        %v945 = vld [vmem:[%s170 + $0xd38] sm:$0xff]
        %v946 = vld [vmem:[%s170 + $0xd40] sm:$0xff]
        %v947 = vld [vmem:[%s170 + $0xd48] sm:$0xff]
        %v948 = vld [vmem:[%s170 + $0xd50] sm:$0xff]
        %v949 = vld [vmem:[%s170 + $0xd58] sm:$0xff]
        %v950 = vld [vmem:[%s170 + $0xd60] sm:$0xff]
        %v951 = vld [vmem:[%s170 + $0xd68] sm:$0xff]
        %v952 = vld [vmem:[%s170 + $0xd70] sm:$0xff]
        %v953 = vld [vmem:[%s170 + $0xd78] sm:$0xff]
        %v954 = vld [vmem:[%s170 + $0xd80] sm:$0xff]
        %v955 = vld [vmem:[%s170 + $0xd88] sm:$0xff]
        %v956 = vld [vmem:[%s170 + $0xd90] sm:$0xff]
        %v957 = vld [vmem:[%s170 + $0xd98] sm:$0xff]
        %v958 = vld [vmem:[%s170 + $0xda0] sm:$0xff]
        %v959 = vld [vmem:[%s170 + $0xda8] sm:$0xff]
        %v960 = vld [vmem:[%s170 + $0xdb0] sm:$0xff]
        %v961 = vld [vmem:[%s170 + $0xdb8] sm:$0xff]
        %v962 = vld [vmem:[%s170 + $0xdc0] sm:$0xff]
        %v963 = vld [vmem:[%s170 + $0xdc8] sm:$0xff]
        %v964 = vld [vmem:[%s170 + $0xdd0] sm:$0xff]
        %v965 = vld [vmem:[%s170 + $0xdd8] sm:$0xff]
        %v966 = vld [vmem:[%s170 + $0xde0] sm:$0xff]
        %v967 = vld [vmem:[%s170 + $0xde8] sm:$0xff]
        %v968 = vld [vmem:[%s170 + $0xdf0] sm:$0xff]
        %v969 = vld [vmem:[%s170 + $0xdf8] sm:$0xff]
        %v970 = vld [vmem:[%s170 + $0xe00] sm:$0xff]
        %v971 = vld [vmem:[%s170 + $0xe08] sm:$0xff]
        %v972 = vld [vmem:[%s170 + $0xe10] sm:$0xff]
        %v973 = vld [vmem:[%s170 + $0xe18] sm:$0xff]
        %v974 = vld [vmem:[%s170 + $0xe20] sm:$0xff]
        %v975 = vld [vmem:[%s170 + $0xe28] sm:$0xff]
        %v976 = vld [vmem:[%s170 + $0xe30] sm:$0xff]
        %v977 = vld [vmem:[%s170 + $0xe38] sm:$0xff]
        %v978 = vld [vmem:[%s170 + $0xe40] sm:$0xff]
        %v979 = vld [vmem:[%s170 + $0xe48] sm:$0xff]
        %v980 = vld [vmem:[%s170 + $0xe50] sm:$0xff]
        %v981 = vld [vmem:[%s170 + $0xe58] sm:$0xff]
        %v982 = vld [vmem:[%s170 + $0xe60] sm:$0xff]
        %v983 = vld [vmem:[%s170 + $0xe68] sm:$0xff]
        %v984 = vld [vmem:[%s170 + $0xe70] sm:$0xff]
        %v985 = vld [vmem:[%s170 + $0xe78] sm:$0xff]
        %v986 = vld [vmem:[%s170 + $0xe80] sm:$0xff]
        %v987 = vld [vmem:[%s170 + $0xe88] sm:$0xff]
        %v988 = vld [vmem:[%s170 + $0xe90] sm:$0xff]
        %v989 = vld [vmem:[%s170 + $0xe98] sm:$0xff]
        %v990 = vld [vmem:[%s170 + $0xea0] sm:$0xff]
        %v991 = vld [vmem:[%s170 + $0xea8] sm:$0xff]
        %v992 = vld [vmem:[%s170 + $0xeb0] sm:$0xff]
        %v993 = vld [vmem:[%s170 + $0xeb8] sm:$0xff]
        %v994 = vld [vmem:[%s170 + $0xec0] sm:$0xff]
        %v995 = vld [vmem:[%s170 + $0xec8] sm:$0xff]
        %v996 = vld [vmem:[%s170 + $0xed0] sm:$0xff]
        %v997 = vld [vmem:[%s170 + $0xed8] sm:$0xff]
        %v998 = vld [vmem:[%s170 + $0xee0] sm:$0xff]
        %v999 = vld [vmem:[%s170 + $0xee8] sm:$0xff]
        %v1000 = vld [vmem:[%s170 + $0xef0] sm:$0xff]
        %v1001 = vld [vmem:[%s170 + $0xef8] sm:$0xff]
        %v1002 = vld [vmem:[%s170 + $0xf00] sm:$0xff]
        %v1003 = vld [vmem:[%s170 + $0xf08] sm:$0xff]
        %v1004 = vld [vmem:[%s170 + $0xf10] sm:$0xff]
        %v1005 = vld [vmem:[%s170 + $0xf18] sm:$0xff]
        %v1006 = vld [vmem:[%s170 + $0xf20] sm:$0xff]
        %v1007 = vld [vmem:[%s170 + $0xf28] sm:$0xff]
        %v1008 = vld [vmem:[%s170 + $0xf30] sm:$0xff]
        %v1009 = vld [vmem:[%s170 + $0xf38] sm:$0xff]
        %v1010 = vld [vmem:[%s170 + $0xf40] sm:$0xff]
        %v1011 = vld [vmem:[%s170 + $0xf48] sm:$0xff]
        %v1012 = vld [vmem:[%s170 + $0xf50] sm:$0xff]
        %v1013 = vld [vmem:[%s170 + $0xf58] sm:$0xff]
        %v1014 = vld [vmem:[%s170 + $0xf60] sm:$0xff]
        %v1015 = vld [vmem:[%s170 + $0xf68] sm:$0xff]
        %v1016 = vld [vmem:[%s170 + $0xf70] sm:$0xff]
        %v1017 = vld [vmem:[%s170 + $0xf78] sm:$0xff]
        %v1018 = vld [vmem:[%s170 + $0xf80] sm:$0xff]
        %v1019 = vld [vmem:[%s170 + $0xf88] sm:$0xff]
        %v1020 = vld [vmem:[%s170 + $0xf90] sm:$0xff]
        %v1021 = vld [vmem:[%s170 + $0xf98] sm:$0xff]
        %v1022 = vld [vmem:[%s170 + $0xfa0] sm:$0xff]
        %v1023 = vld [vmem:[%s170 + $0xfa8] sm:$0xff]
        %v1024 = vld [vmem:[%s170 + $0xfb0] sm:$0xff]
        %v1025 = vld [vmem:[%s170 + $0xfb8] sm:$0xff]
        %v1026 = vld [vmem:[%s170 + $0xfc0] sm:$0xff]
        %v1027 = vld [vmem:[%s170 + $0xfc8] sm:$0xff]
        %v1028 = vld [vmem:[%s170 + $0xfd0] sm:$0xff]
        %v1029 = vld [vmem:[%s170 + $0xfd8] sm:$0xff]
        %v1030 = vld [vmem:[%s170 + $0xfe0] sm:$0xff]
        %v1031 = vld [vmem:[%s170 + $0xfe8] sm:$0xff]
        %v1032 = vld [vmem:[%s170 + $0xff0] sm:$0xff]
        %v1033 = vld [vmem:[%s170 + $0xff8] sm:$0xff]
        %v1034 = vpack.c.bf16 %v523, %v522
        %v1035 = vpack.c.bf16 %v525, %v524
        %v1036 = vpack.c.bf16 %v527, %v526
        %v1037 = vpack.c.bf16 %v529, %v528
        %v1038 = vpack.c.bf16 %v531, %v530
        %v1039 = vpack.c.bf16 %v533, %v532
        %v1040 = vpack.c.bf16 %v535, %v534
        %v1041 = vpack.c.bf16 %v537, %v536
        %v1042 = vpack.c.bf16 %v539, %v538
        %v1043 = vpack.c.bf16 %v541, %v540
        %v1044 = vpack.c.bf16 %v543, %v542
        %v1045 = vpack.c.bf16 %v545, %v544
        %v1046 = vpack.c.bf16 %v547, %v546
        %v1047 = vpack.c.bf16 %v549, %v548
        %v1048 = vpack.c.bf16 %v551, %v550
        %v1049 = vpack.c.bf16 %v553, %v552
        %v1050 = vpack.c.bf16 %v555, %v554
        %v1051 = vpack.c.bf16 %v557, %v556
        %v1052 = vpack.c.bf16 %v559, %v558
        %v1053 = vpack.c.bf16 %v561, %v560
        %v1054 = vpack.c.bf16 %v563, %v562
        %v1055 = vpack.c.bf16 %v565, %v564
        %v1056 = vpack.c.bf16 %v567, %v566
        %v1057 = vpack.c.bf16 %v569, %v568
        %v1058 = vpack.c.bf16 %v571, %v570
        %v1059 = vpack.c.bf16 %v573, %v572
        %v1060 = vpack.c.bf16 %v575, %v574
        %v1061 = vpack.c.bf16 %v577, %v576
        %v1062 = vpack.c.bf16 %v579, %v578
        %v1063 = vpack.c.bf16 %v581, %v580
        %v1064 = vpack.c.bf16 %v583, %v582
        %v1065 = vpack.c.bf16 %v585, %v584
        %v1066 = vpack.c.bf16 %v587, %v586
        %v1067 = vpack.c.bf16 %v589, %v588
        %v1068 = vpack.c.bf16 %v591, %v590
        %v1069 = vpack.c.bf16 %v593, %v592
        %v1070 = vpack.c.bf16 %v595, %v594
        %v1071 = vpack.c.bf16 %v597, %v596
        %v1072 = vpack.c.bf16 %v599, %v598
        %v1073 = vpack.c.bf16 %v601, %v600
        %v1074 = vpack.c.bf16 %v603, %v602
        %v1075 = vpack.c.bf16 %v605, %v604
        %v1076 = vpack.c.bf16 %v607, %v606
        %v1077 = vpack.c.bf16 %v609, %v608
        %v1078 = vpack.c.bf16 %v611, %v610
        %v1079 = vpack.c.bf16 %v613, %v612
        %v1080 = vpack.c.bf16 %v615, %v614
        %v1081 = vpack.c.bf16 %v617, %v616
        %v1082 = vpack.c.bf16 %v619, %v618
        %v1083 = vpack.c.bf16 %v621, %v620
        %v1084 = vpack.c.bf16 %v623, %v622
        %v1085 = vpack.c.bf16 %v625, %v624
        %v1086 = vpack.c.bf16 %v627, %v626
        %v1087 = vpack.c.bf16 %v629, %v628
        %v1088 = vpack.c.bf16 %v631, %v630
        %v1089 = vpack.c.bf16 %v633, %v632
        %v1090 = vpack.c.bf16 %v635, %v634
        %v1091 = vpack.c.bf16 %v637, %v636
        %v1092 = vpack.c.bf16 %v639, %v638
        %v1093 = vpack.c.bf16 %v641, %v640
        %v1094 = vpack.c.bf16 %v643, %v642
        %v1095 = vpack.c.bf16 %v645, %v644
        %v1096 = vpack.c.bf16 %v647, %v646
        %v1097 = vpack.c.bf16 %v649, %v648
        %v1098 = vpack.c.bf16 %v651, %v650
        %v1099 = vpack.c.bf16 %v653, %v652
        %v1100 = vpack.c.bf16 %v655, %v654
        %v1101 = vpack.c.bf16 %v657, %v656
        %v1102 = vpack.c.bf16 %v659, %v658
        %v1103 = vpack.c.bf16 %v661, %v660
        %v1104 = vpack.c.bf16 %v663, %v662
        %v1105 = vpack.c.bf16 %v665, %v664
        %v1106 = vpack.c.bf16 %v667, %v666
        %v1107 = vpack.c.bf16 %v669, %v668
        %v1108 = vpack.c.bf16 %v671, %v670
        %v1109 = vpack.c.bf16 %v673, %v672
        %v1110 = vpack.c.bf16 %v675, %v674
        %v1111 = vpack.c.bf16 %v677, %v676
        %v1112 = vpack.c.bf16 %v679, %v678
        %v1113 = vpack.c.bf16 %v681, %v680
        %v1114 = vpack.c.bf16 %v683, %v682
        %v1115 = vpack.c.bf16 %v685, %v684
        %v1116 = vpack.c.bf16 %v687, %v686
        %v1117 = vpack.c.bf16 %v689, %v688
        %v1118 = vpack.c.bf16 %v691, %v690
        %v1119 = vpack.c.bf16 %v693, %v692
        %v1120 = vpack.c.bf16 %v695, %v694
        %v1121 = vpack.c.bf16 %v697, %v696
        %v1122 = vpack.c.bf16 %v699, %v698
        %v1123 = vpack.c.bf16 %v701, %v700
        %v1124 = vpack.c.bf16 %v703, %v702
        %v1125 = vpack.c.bf16 %v705, %v704
        %v1126 = vpack.c.bf16 %v707, %v706
        %v1127 = vpack.c.bf16 %v709, %v708
        %v1128 = vpack.c.bf16 %v711, %v710
        %v1129 = vpack.c.bf16 %v713, %v712
        %v1130 = vpack.c.bf16 %v715, %v714
        %v1131 = vpack.c.bf16 %v717, %v716
        %v1132 = vpack.c.bf16 %v719, %v718
        %v1133 = vpack.c.bf16 %v721, %v720
        %v1134 = vpack.c.bf16 %v723, %v722
        %v1135 = vpack.c.bf16 %v725, %v724
        %v1136 = vpack.c.bf16 %v727, %v726
        %v1137 = vpack.c.bf16 %v729, %v728
        %v1138 = vpack.c.bf16 %v731, %v730
        %v1139 = vpack.c.bf16 %v733, %v732
        %v1140 = vpack.c.bf16 %v735, %v734
        %v1141 = vpack.c.bf16 %v737, %v736
        %v1142 = vpack.c.bf16 %v739, %v738
        %v1143 = vpack.c.bf16 %v741, %v740
        %v1144 = vpack.c.bf16 %v743, %v742
        %v1145 = vpack.c.bf16 %v745, %v744
        %v1146 = vpack.c.bf16 %v747, %v746
        %v1147 = vpack.c.bf16 %v749, %v748
        %v1148 = vpack.c.bf16 %v751, %v750
        %v1149 = vpack.c.bf16 %v753, %v752
        %v1150 = vpack.c.bf16 %v755, %v754
        %v1151 = vpack.c.bf16 %v757, %v756
        %v1152 = vpack.c.bf16 %v759, %v758
        %v1153 = vpack.c.bf16 %v761, %v760
        %v1154 = vpack.c.bf16 %v763, %v762
        %v1155 = vpack.c.bf16 %v765, %v764
        %v1156 = vpack.c.bf16 %v767, %v766
        %v1157 = vpack.c.bf16 %v769, %v768
        %v1158 = vpack.c.bf16 %v771, %v770
        %v1159 = vpack.c.bf16 %v773, %v772
        %v1160 = vpack.c.bf16 %v775, %v774
        %v1161 = vpack.c.bf16 %v777, %v776
        %v1162 = vpack.c.bf16 %v779, %v778
        %v1163 = vpack.c.bf16 %v781, %v780
        %v1164 = vpack.c.bf16 %v783, %v782
        %v1165 = vpack.c.bf16 %v785, %v784
        %v1166 = vpack.c.bf16 %v787, %v786
        %v1167 = vpack.c.bf16 %v789, %v788
        %v1168 = vpack.c.bf16 %v791, %v790
        %v1169 = vpack.c.bf16 %v793, %v792
        %v1170 = vpack.c.bf16 %v795, %v794
        %v1171 = vpack.c.bf16 %v797, %v796
        %v1172 = vpack.c.bf16 %v799, %v798
        %v1173 = vpack.c.bf16 %v801, %v800
        %v1174 = vpack.c.bf16 %v803, %v802
        %v1175 = vpack.c.bf16 %v805, %v804
        %v1176 = vpack.c.bf16 %v807, %v806
        %v1177 = vpack.c.bf16 %v809, %v808
        %v1178 = vpack.c.bf16 %v811, %v810
        %v1179 = vpack.c.bf16 %v813, %v812
        %v1180 = vpack.c.bf16 %v815, %v814
        %v1181 = vpack.c.bf16 %v817, %v816
        %v1182 = vpack.c.bf16 %v819, %v818
        %v1183 = vpack.c.bf16 %v821, %v820
        %v1184 = vpack.c.bf16 %v823, %v822
        %v1185 = vpack.c.bf16 %v825, %v824
        %v1186 = vpack.c.bf16 %v827, %v826
        %v1187 = vpack.c.bf16 %v829, %v828
        %v1188 = vpack.c.bf16 %v831, %v830
        %v1189 = vpack.c.bf16 %v833, %v832
        %v1190 = vpack.c.bf16 %v835, %v834
        %v1191 = vpack.c.bf16 %v837, %v836
        %v1192 = vpack.c.bf16 %v839, %v838
        %v1193 = vpack.c.bf16 %v841, %v840
        %v1194 = vpack.c.bf16 %v843, %v842
        %v1195 = vpack.c.bf16 %v845, %v844
        %v1196 = vpack.c.bf16 %v847, %v846
        %v1197 = vpack.c.bf16 %v849, %v848
        %v1198 = vpack.c.bf16 %v851, %v850
        %v1199 = vpack.c.bf16 %v853, %v852
        %v1200 = vpack.c.bf16 %v855, %v854
        %v1201 = vpack.c.bf16 %v857, %v856
        %v1202 = vpack.c.bf16 %v859, %v858
        %v1203 = vpack.c.bf16 %v861, %v860
        %v1204 = vpack.c.bf16 %v863, %v862
        %v1205 = vpack.c.bf16 %v865, %v864
        %v1206 = vpack.c.bf16 %v867, %v866
        %v1207 = vpack.c.bf16 %v869, %v868
        %v1208 = vpack.c.bf16 %v871, %v870
        %v1209 = vpack.c.bf16 %v873, %v872
        %v1210 = vpack.c.bf16 %v875, %v874
        %v1211 = vpack.c.bf16 %v877, %v876
        %v1212 = vpack.c.bf16 %v879, %v878
        %v1213 = vpack.c.bf16 %v881, %v880
        %v1214 = vpack.c.bf16 %v883, %v882
        %v1215 = vpack.c.bf16 %v885, %v884
        %v1216 = vpack.c.bf16 %v887, %v886
        %v1217 = vpack.c.bf16 %v889, %v888
        %v1218 = vpack.c.bf16 %v891, %v890
        %v1219 = vpack.c.bf16 %v893, %v892
        %v1220 = vpack.c.bf16 %v895, %v894
        %v1221 = vpack.c.bf16 %v897, %v896
        %v1222 = vpack.c.bf16 %v899, %v898
        %v1223 = vpack.c.bf16 %v901, %v900
        %v1224 = vpack.c.bf16 %v903, %v902
        %v1225 = vpack.c.bf16 %v905, %v904
        %v1226 = vpack.c.bf16 %v907, %v906
        %v1227 = vpack.c.bf16 %v909, %v908
        %v1228 = vpack.c.bf16 %v911, %v910
        %v1229 = vpack.c.bf16 %v913, %v912
        %v1230 = vpack.c.bf16 %v915, %v914
        %v1231 = vpack.c.bf16 %v917, %v916
        %v1232 = vpack.c.bf16 %v919, %v918
        %v1233 = vpack.c.bf16 %v921, %v920
        %v1234 = vpack.c.bf16 %v923, %v922
        %v1235 = vpack.c.bf16 %v925, %v924
        %v1236 = vpack.c.bf16 %v927, %v926
        %v1237 = vpack.c.bf16 %v929, %v928
        %v1238 = vpack.c.bf16 %v931, %v930
        %v1239 = vpack.c.bf16 %v933, %v932
        %v1240 = vpack.c.bf16 %v935, %v934
        %v1241 = vpack.c.bf16 %v937, %v936
        %v1242 = vpack.c.bf16 %v939, %v938
        %v1243 = vpack.c.bf16 %v941, %v940
        %v1244 = vpack.c.bf16 %v943, %v942
        %v1245 = vpack.c.bf16 %v945, %v944
        %v1246 = vpack.c.bf16 %v947, %v946
        %v1247 = vpack.c.bf16 %v949, %v948
        %v1248 = vpack.c.bf16 %v951, %v950
        %v1249 = vpack.c.bf16 %v953, %v952
        %v1250 = vpack.c.bf16 %v955, %v954
        %v1251 = vpack.c.bf16 %v957, %v956
        %v1252 = vpack.c.bf16 %v959, %v958
        %v1253 = vpack.c.bf16 %v961, %v960
        %v1254 = vpack.c.bf16 %v963, %v962
        %v1255 = vpack.c.bf16 %v965, %v964
        %v1256 = vpack.c.bf16 %v967, %v966
        %v1257 = vpack.c.bf16 %v969, %v968
        %v1258 = vpack.c.bf16 %v971, %v970
        %v1259 = vpack.c.bf16 %v973, %v972
        %v1260 = vpack.c.bf16 %v975, %v974
        %v1261 = vpack.c.bf16 %v977, %v976
        %v1262 = vpack.c.bf16 %v979, %v978
        %v1263 = vpack.c.bf16 %v981, %v980
        %v1264 = vpack.c.bf16 %v983, %v982
        %v1265 = vpack.c.bf16 %v985, %v984
        %v1266 = vpack.c.bf16 %v987, %v986
        %v1267 = vpack.c.bf16 %v989, %v988
        %v1268 = vpack.c.bf16 %v991, %v990
        %v1269 = vpack.c.bf16 %v993, %v992
        %v1270 = vpack.c.bf16 %v995, %v994
        %v1271 = vpack.c.bf16 %v997, %v996
        %v1272 = vpack.c.bf16 %v999, %v998
        %v1273 = vpack.c.bf16 %v1001, %v1000
        %v1274 = vpack.c.bf16 %v1003, %v1002
        %v1275 = vpack.c.bf16 %v1005, %v1004
        %v1276 = vpack.c.bf16 %v1007, %v1006
        %v1277 = vpack.c.bf16 %v1009, %v1008
        %v1278 = vpack.c.bf16 %v1011, %v1010
        %v1279 = vpack.c.bf16 %v1013, %v1012
        %v1280 = vpack.c.bf16 %v1015, %v1014
        %v1281 = vpack.c.bf16 %v1017, %v1016
        %v1282 = vpack.c.bf16 %v1019, %v1018
        %v1283 = vpack.c.bf16 %v1021, %v1020
        %v1284 = vpack.c.bf16 %v1023, %v1022
        %v1285 = vpack.c.bf16 %v1025, %v1024
        %v1286 = vpack.c.bf16 %v1027, %v1026
        %v1287 = vpack.c.bf16 %v1029, %v1028
        %v1288 = vpack.c.bf16 %v1031, %v1030
        %v1289 = vpack.c.bf16 %v1033, %v1032
        %1290 = vmatprep.subr.bf16.mxu0 0
        %1291 = vmatpush1.bf16.msra.mxu0 %v1041
        %1292 = vmatprep.subr.bf16.mxu0 0
        %1293 = vmatpush1.bf16.msra.mxu0 %v1040
        %1294 = vmatprep.subr.bf16.mxu0 0
        %1295 = vmatpush1.bf16.msra.mxu0 %v1039
        %1296 = vmatprep.subr.bf16.mxu0 0
        %1297 = vmatpush1.bf16.msra.mxu0 %v1038
        %1298 = vmatprep.subr.bf16.mxu0 0
        %1299 = vmatpush1.bf16.msra.mxu0 %v1037
        %1300 = vmatprep.subr.bf16.mxu0 0
        %1301 = vmatpush1.bf16.msra.mxu0 %v1036
        %1302 = vmatprep.subr.bf16.mxu0 0
        %1303 = vmatpush1.bf16.msra.mxu0 %v1035
        %1304 = vmatprep.subr.bf16.mxu0 0
        %1305 = vmatpush1.bf16.msra.mxu0 %v1034
        %1306 = vmatprep.subr.bf16.mxu0 0
        %1307 = vmatpush2.bf16.msra.mxu0 0
        %1308 = vmatprep.subr.bf16.mxu0 0
        %1309 = vmatpush2.bf16.msra.mxu0 0
        %1310 = vmatprep.subr.bf16.mxu0 0
        %1311 = vmatpush2.bf16.msra.mxu0 0
        %1312 = vmatprep.subr.bf16.mxu0 0
        %1313 = vmatpush2.bf16.msra.mxu0 0
        %1314 = vmatprep.subr.bf16.mxu0 0
        %1315 = vmatpush2.bf16.msra.mxu0 0
        %1316 = vmatprep.subr.bf16.mxu0 0
        %1317 = vmatpush2.bf16.msra.mxu0 0
        %1318 = vmatprep.subr.bf16.mxu0 0
        %1319 = vmatpush2.bf16.msra.mxu0 0
        %1320 = vmatprep.subr.bf16.mxu0 0
        %1321 = vmatpush2.bf16.msra.mxu0 0
        %1322 = vmatprep.mubr.bf16.mxu0 0
        %1323 = vmatmul.mubr.bf16.gmra.mxu0 %v490
        %v1324 = vpop.f32.mrf.mxu0
        %v1325 = vadd.f32 0.0, %v1324
        %v1326 = vpop.f32.mrf.mxu0
        %v1327 = vpop.f32.mrf.mxu0
        %v1328 = vpop.f32.mrf.mxu0
        %1329 = vdwg.mxu0
        %1330 = vmatprep.subr.bf16.mxu0 0
        %1331 = vmatpush1.bf16.msra.mxu0 %v1049
        %1332 = vmatprep.subr.bf16.mxu0 0
        %1333 = vmatpush1.bf16.msra.mxu0 %v1048
        %1334 = vmatprep.subr.bf16.mxu0 0
        %1335 = vmatpush1.bf16.msra.mxu0 %v1047
        %1336 = vmatprep.subr.bf16.mxu0 0
        %1337 = vmatpush1.bf16.msra.mxu0 %v1046
        %1338 = vmatprep.subr.bf16.mxu0 0
        %1339 = vmatpush1.bf16.msra.mxu0 %v1045
        %1340 = vmatprep.subr.bf16.mxu0 0
        %1341 = vmatpush1.bf16.msra.mxu0 %v1044
        %1342 = vmatprep.subr.bf16.mxu0 0
        %1343 = vmatpush1.bf16.msra.mxu0 %v1043
        %1344 = vmatprep.subr.bf16.mxu0 0
        %1345 = vmatpush1.bf16.msra.mxu0 %v1042
        %1346 = vmatprep.subr.bf16.mxu0 0
        %1347 = vmatpush2.bf16.msra.mxu0 0
        %1348 = vmatprep.subr.bf16.mxu0 0
        %1349 = vmatpush2.bf16.msra.mxu0 0
        %1350 = vmatprep.subr.bf16.mxu0 0
        %1351 = vmatpush2.bf16.msra.mxu0 0
        %1352 = vmatprep.subr.bf16.mxu0 0
        %1353 = vmatpush2.bf16.msra.mxu0 0
        %1354 = vmatprep.subr.bf16.mxu0 0
        %1355 = vmatpush2.bf16.msra.mxu0 0
        %1356 = vmatprep.subr.bf16.mxu0 0
        %1357 = vmatpush2.bf16.msra.mxu0 0
        %1358 = vmatprep.subr.bf16.mxu0 0
        %1359 = vmatpush2.bf16.msra.mxu0 0
        %1360 = vmatprep.subr.bf16.mxu0 0
        %1361 = vmatpush2.bf16.msra.mxu0 0
        %1362 = vmatprep.mubr.bf16.mxu0 0
        %1363 = vmatmul.mubr.bf16.gmra.mxu0 %v491
        %v1364 = vpop.f32.mrf.mxu0
        %v1365 = vadd.f32 0.0, %v1364
        %v1366 = vpop.f32.mrf.mxu0
        %v1367 = vpop.f32.mrf.mxu0
        %v1368 = vpop.f32.mrf.mxu0
        %1369 = vdwg.mxu0
        %1370 = vmatprep.subr.bf16.mxu0 0
        %1371 = vmatpush1.bf16.msra.mxu0 %v1057
        %1372 = vmatprep.subr.bf16.mxu0 0
        %1373 = vmatpush1.bf16.msra.mxu0 %v1056
        %1374 = vmatprep.subr.bf16.mxu0 0
        %1375 = vmatpush1.bf16.msra.mxu0 %v1055
        %1376 = vmatprep.subr.bf16.mxu0 0
        %1377 = vmatpush1.bf16.msra.mxu0 %v1054
        %1378 = vmatprep.subr.bf16.mxu0 0
        %1379 = vmatpush1.bf16.msra.mxu0 %v1053
        %1380 = vmatprep.subr.bf16.mxu0 0
        %1381 = vmatpush1.bf16.msra.mxu0 %v1052
        %1382 = vmatprep.subr.bf16.mxu0 0
        %1383 = vmatpush1.bf16.msra.mxu0 %v1051
        %1384 = vmatprep.subr.bf16.mxu0 0
        %1385 = vmatpush1.bf16.msra.mxu0 %v1050
        %1386 = vmatprep.subr.bf16.mxu0 0
        %1387 = vmatpush2.bf16.msra.mxu0 0
        %1388 = vmatprep.subr.bf16.mxu0 0
        %1389 = vmatpush2.bf16.msra.mxu0 0
        %1390 = vmatprep.subr.bf16.mxu0 0
        %1391 = vmatpush2.bf16.msra.mxu0 0
        %1392 = vmatprep.subr.bf16.mxu0 0
        %1393 = vmatpush2.bf16.msra.mxu0 0
        %1394 = vmatprep.subr.bf16.mxu0 0
        %1395 = vmatpush2.bf16.msra.mxu0 0
        %1396 = vmatprep.subr.bf16.mxu0 0
        %1397 = vmatpush2.bf16.msra.mxu0 0
        %1398 = vmatprep.subr.bf16.mxu0 0
        %1399 = vmatpush2.bf16.msra.mxu0 0
        %1400 = vmatprep.subr.bf16.mxu0 0
        %1401 = vmatpush2.bf16.msra.mxu0 0
        %1402 = vmatprep.mubr.bf16.mxu0 0
        %1403 = vmatmul.mubr.bf16.gmra.mxu0 %v492
        %v1404 = vpop.f32.mrf.mxu0
        %v1405 = vadd.f32 0.0, %v1404
        %v1406 = vpop.f32.mrf.mxu0
        %v1407 = vpop.f32.mrf.mxu0
        %v1408 = vpop.f32.mrf.mxu0
        %1409 = vdwg.mxu0
        %1410 = vmatprep.subr.bf16.mxu0 0
        %1411 = vmatpush1.bf16.msra.mxu0 %v1065
        %1412 = vmatprep.subr.bf16.mxu0 0
        %1413 = vmatpush1.bf16.msra.mxu0 %v1064
        %1414 = vmatprep.subr.bf16.mxu0 0
        %1415 = vmatpush1.bf16.msra.mxu0 %v1063
        %1416 = vmatprep.subr.bf16.mxu0 0
        %1417 = vmatpush1.bf16.msra.mxu0 %v1062
        %1418 = vmatprep.subr.bf16.mxu0 0
        %1419 = vmatpush1.bf16.msra.mxu0 %v1061
        %1420 = vmatprep.subr.bf16.mxu0 0
        %1421 = vmatpush1.bf16.msra.mxu0 %v1060
        %1422 = vmatprep.subr.bf16.mxu0 0
        %1423 = vmatpush1.bf16.msra.mxu0 %v1059
        %1424 = vmatprep.subr.bf16.mxu0 0
        %1425 = vmatpush1.bf16.msra.mxu0 %v1058
        %1426 = vmatprep.subr.bf16.mxu0 0
        %1427 = vmatpush2.bf16.msra.mxu0 0
        %1428 = vmatprep.subr.bf16.mxu0 0
        %1429 = vmatpush2.bf16.msra.mxu0 0
        %1430 = vmatprep.subr.bf16.mxu0 0
        %1431 = vmatpush2.bf16.msra.mxu0 0
        %1432 = vmatprep.subr.bf16.mxu0 0
        %1433 = vmatpush2.bf16.msra.mxu0 0
        %1434 = vmatprep.subr.bf16.mxu0 0
        %1435 = vmatpush2.bf16.msra.mxu0 0
        %1436 = vmatprep.subr.bf16.mxu0 0
        %1437 = vmatpush2.bf16.msra.mxu0 0
        %1438 = vmatprep.subr.bf16.mxu0 0
        %1439 = vmatpush2.bf16.msra.mxu0 0
        %1440 = vmatprep.subr.bf16.mxu0 0
        %1441 = vmatpush2.bf16.msra.mxu0 0
        %1442 = vmatprep.mubr.bf16.mxu0 0
        %1443 = vmatmul.mubr.bf16.gmra.mxu0 %v493
        %v1444 = vpop.f32.mrf.mxu0
        %v1445 = vadd.f32 0.0, %v1444
        %v1446 = vpop.f32.mrf.mxu0
        %v1447 = vpop.f32.mrf.mxu0
        %v1448 = vpop.f32.mrf.mxu0
        %1449 = vdwg.mxu0
        %1450 = vmatprep.subr.bf16.mxu0 0
        %1451 = vmatpush1.bf16.msra.mxu0 %v1073
        %1452 = vmatprep.subr.bf16.mxu0 0
        %1453 = vmatpush1.bf16.msra.mxu0 %v1072
        %1454 = vmatprep.subr.bf16.mxu0 0
        %1455 = vmatpush1.bf16.msra.mxu0 %v1071
        %1456 = vmatprep.subr.bf16.mxu0 0
        %1457 = vmatpush1.bf16.msra.mxu0 %v1070
        %1458 = vmatprep.subr.bf16.mxu0 0
        %1459 = vmatpush1.bf16.msra.mxu0 %v1069
        %1460 = vmatprep.subr.bf16.mxu0 0
        %1461 = vmatpush1.bf16.msra.mxu0 %v1068
        %1462 = vmatprep.subr.bf16.mxu0 0
        %1463 = vmatpush1.bf16.msra.mxu0 %v1067
        %1464 = vmatprep.subr.bf16.mxu0 0
        %1465 = vmatpush1.bf16.msra.mxu0 %v1066
        %1466 = vmatprep.subr.bf16.mxu0 0
        %1467 = vmatpush2.bf16.msra.mxu0 0
        %1468 = vmatprep.subr.bf16.mxu0 0
        %1469 = vmatpush2.bf16.msra.mxu0 0
        %1470 = vmatprep.subr.bf16.mxu0 0
        %1471 = vmatpush2.bf16.msra.mxu0 0
        %1472 = vmatprep.subr.bf16.mxu0 0
        %1473 = vmatpush2.bf16.msra.mxu0 0
        %1474 = vmatprep.subr.bf16.mxu0 0
        %1475 = vmatpush2.bf16.msra.mxu0 0
        %1476 = vmatprep.subr.bf16.mxu0 0
        %1477 = vmatpush2.bf16.msra.mxu0 0
        %1478 = vmatprep.subr.bf16.mxu0 0
        %1479 = vmatpush2.bf16.msra.mxu0 0
        %1480 = vmatprep.subr.bf16.mxu0 0
        %1481 = vmatpush2.bf16.msra.mxu0 0
        %1482 = vmatprep.mubr.bf16.mxu0 0
        %1483 = vmatmul.mubr.bf16.gmra.mxu0 %v494
        %v1484 = vpop.f32.mrf.mxu0
        %v1485 = vadd.f32 0.0, %v1484
        %v1486 = vpop.f32.mrf.mxu0
        %v1487 = vpop.f32.mrf.mxu0
        %v1488 = vpop.f32.mrf.mxu0
        %1489 = vdwg.mxu0
        %1490 = vmatprep.subr.bf16.mxu0 0
        %1491 = vmatpush1.bf16.msra.mxu0 %v1081
        %1492 = vmatprep.subr.bf16.mxu0 0
        %1493 = vmatpush1.bf16.msra.mxu0 %v1080
        %1494 = vmatprep.subr.bf16.mxu0 0
        %1495 = vmatpush1.bf16.msra.mxu0 %v1079
        %1496 = vmatprep.subr.bf16.mxu0 0
        %1497 = vmatpush1.bf16.msra.mxu0 %v1078
        %1498 = vmatprep.subr.bf16.mxu0 0
        %1499 = vmatpush1.bf16.msra.mxu0 %v1077
        %1500 = vmatprep.subr.bf16.mxu0 0
        %1501 = vmatpush1.bf16.msra.mxu0 %v1076
        %1502 = vmatprep.subr.bf16.mxu0 0
        %1503 = vmatpush1.bf16.msra.mxu0 %v1075
        %1504 = vmatprep.subr.bf16.mxu0 0
        %1505 = vmatpush1.bf16.msra.mxu0 %v1074
        %1506 = vmatprep.subr.bf16.mxu0 0
        %1507 = vmatpush2.bf16.msra.mxu0 0
        %1508 = vmatprep.subr.bf16.mxu0 0
        %1509 = vmatpush2.bf16.msra.mxu0 0
        %1510 = vmatprep.subr.bf16.mxu0 0
        %1511 = vmatpush2.bf16.msra.mxu0 0
        %1512 = vmatprep.subr.bf16.mxu0 0
        %1513 = vmatpush2.bf16.msra.mxu0 0
        %1514 = vmatprep.subr.bf16.mxu0 0
        %1515 = vmatpush2.bf16.msra.mxu0 0
        %1516 = vmatprep.subr.bf16.mxu0 0
        %1517 = vmatpush2.bf16.msra.mxu0 0
        %1518 = vmatprep.subr.bf16.mxu0 0
        %1519 = vmatpush2.bf16.msra.mxu0 0
        %1520 = vmatprep.subr.bf16.mxu0 0
        %1521 = vmatpush2.bf16.msra.mxu0 0
        %1522 = vmatprep.mubr.bf16.mxu0 0
        %1523 = vmatmul.mubr.bf16.gmra.mxu0 %v495
        %v1524 = vpop.f32.mrf.mxu0
        %v1525 = vadd.f32 0.0, %v1524
        %v1526 = vpop.f32.mrf.mxu0
        %v1527 = vpop.f32.mrf.mxu0
        %v1528 = vpop.f32.mrf.mxu0
        %1529 = vdwg.mxu0
        %1530 = vmatprep.subr.bf16.mxu0 0
        %1531 = vmatpush1.bf16.msra.mxu0 %v1089
        %1532 = vmatprep.subr.bf16.mxu0 0
        %1533 = vmatpush1.bf16.msra.mxu0 %v1088
        %1534 = vmatprep.subr.bf16.mxu0 0
        %1535 = vmatpush1.bf16.msra.mxu0 %v1087
        %1536 = vmatprep.subr.bf16.mxu0 0
        %1537 = vmatpush1.bf16.msra.mxu0 %v1086
        %1538 = vmatprep.subr.bf16.mxu0 0
        %1539 = vmatpush1.bf16.msra.mxu0 %v1085
        %1540 = vmatprep.subr.bf16.mxu0 0
        %1541 = vmatpush1.bf16.msra.mxu0 %v1084
        %1542 = vmatprep.subr.bf16.mxu0 0
        %1543 = vmatpush1.bf16.msra.mxu0 %v1083
        %1544 = vmatprep.subr.bf16.mxu0 0
        %1545 = vmatpush1.bf16.msra.mxu0 %v1082
        %1546 = vmatprep.subr.bf16.mxu0 0
        %1547 = vmatpush2.bf16.msra.mxu0 0
        %1548 = vmatprep.subr.bf16.mxu0 0
        %1549 = vmatpush2.bf16.msra.mxu0 0
        %1550 = vmatprep.subr.bf16.mxu0 0
        %1551 = vmatpush2.bf16.msra.mxu0 0
        %1552 = vmatprep.subr.bf16.mxu0 0
        %1553 = vmatpush2.bf16.msra.mxu0 0
        %1554 = vmatprep.subr.bf16.mxu0 0
        %1555 = vmatpush2.bf16.msra.mxu0 0
        %1556 = vmatprep.subr.bf16.mxu0 0
        %1557 = vmatpush2.bf16.msra.mxu0 0
        %1558 = vmatprep.subr.bf16.mxu0 0
        %1559 = vmatpush2.bf16.msra.mxu0 0
        %1560 = vmatprep.subr.bf16.mxu0 0
        %1561 = vmatpush2.bf16.msra.mxu0 0
        %1562 = vmatprep.mubr.bf16.mxu0 0
        %1563 = vmatmul.mubr.bf16.gmra.mxu0 %v496
        %v1564 = vpop.f32.mrf.mxu0
        %v1565 = vadd.f32 0.0, %v1564
        %v1566 = vpop.f32.mrf.mxu0
        %v1567 = vpop.f32.mrf.mxu0
        %v1568 = vpop.f32.mrf.mxu0
        %1569 = vdwg.mxu0
        %1570 = vmatprep.subr.bf16.mxu0 0
        %1571 = vmatpush1.bf16.msra.mxu0 %v1097
        %1572 = vmatprep.subr.bf16.mxu0 0
        %1573 = vmatpush1.bf16.msra.mxu0 %v1096
        %1574 = vmatprep.subr.bf16.mxu0 0
        %1575 = vmatpush1.bf16.msra.mxu0 %v1095
        %1576 = vmatprep.subr.bf16.mxu0 0
        %1577 = vmatpush1.bf16.msra.mxu0 %v1094
        %1578 = vmatprep.subr.bf16.mxu0 0
        %1579 = vmatpush1.bf16.msra.mxu0 %v1093
        %1580 = vmatprep.subr.bf16.mxu0 0
        %1581 = vmatpush1.bf16.msra.mxu0 %v1092
        %1582 = vmatprep.subr.bf16.mxu0 0
        %1583 = vmatpush1.bf16.msra.mxu0 %v1091
        %1584 = vmatprep.subr.bf16.mxu0 0
        %1585 = vmatpush1.bf16.msra.mxu0 %v1090
        %1586 = vmatprep.subr.bf16.mxu0 0
        %1587 = vmatpush2.bf16.msra.mxu0 0
        %1588 = vmatprep.subr.bf16.mxu0 0
        %1589 = vmatpush2.bf16.msra.mxu0 0
        %1590 = vmatprep.subr.bf16.mxu0 0
        %1591 = vmatpush2.bf16.msra.mxu0 0
        %1592 = vmatprep.subr.bf16.mxu0 0
        %1593 = vmatpush2.bf16.msra.mxu0 0
        %1594 = vmatprep.subr.bf16.mxu0 0
        %1595 = vmatpush2.bf16.msra.mxu0 0
        %1596 = vmatprep.subr.bf16.mxu0 0
        %1597 = vmatpush2.bf16.msra.mxu0 0
        %1598 = vmatprep.subr.bf16.mxu0 0
        %1599 = vmatpush2.bf16.msra.mxu0 0
        %1600 = vmatprep.subr.bf16.mxu0 0
        %1601 = vmatpush2.bf16.msra.mxu0 0
        %1602 = vmatprep.mubr.bf16.mxu0 0
        %1603 = vmatmul.mubr.bf16.gmra.mxu0 %v497
        %v1604 = vpop.f32.mrf.mxu0
        %v1605 = vadd.f32 0.0, %v1604
        %v1606 = vpop.f32.mrf.mxu0
        %v1607 = vpop.f32.mrf.mxu0
        %v1608 = vpop.f32.mrf.mxu0
        %1609 = vdwg.mxu0
        %1610 = vmatprep.subr.bf16.mxu0 0
        %1611 = vmatpush1.bf16.msra.mxu0 %v1105
        %1612 = vmatprep.subr.bf16.mxu0 0
        %1613 = vmatpush1.bf16.msra.mxu0 %v1104
        %1614 = vmatprep.subr.bf16.mxu0 0
        %1615 = vmatpush1.bf16.msra.mxu0 %v1103
        %1616 = vmatprep.subr.bf16.mxu0 0
        %1617 = vmatpush1.bf16.msra.mxu0 %v1102
        %1618 = vmatprep.subr.bf16.mxu0 0
        %1619 = vmatpush1.bf16.msra.mxu0 %v1101
        %1620 = vmatprep.subr.bf16.mxu0 0
        %1621 = vmatpush1.bf16.msra.mxu0 %v1100
        %1622 = vmatprep.subr.bf16.mxu0 0
        %1623 = vmatpush1.bf16.msra.mxu0 %v1099
        %1624 = vmatprep.subr.bf16.mxu0 0
        %1625 = vmatpush1.bf16.msra.mxu0 %v1098
        %1626 = vmatprep.subr.bf16.mxu0 0
        %1627 = vmatpush2.bf16.msra.mxu0 0
        %1628 = vmatprep.subr.bf16.mxu0 0
        %1629 = vmatpush2.bf16.msra.mxu0 0
        %1630 = vmatprep.subr.bf16.mxu0 0
        %1631 = vmatpush2.bf16.msra.mxu0 0
        %1632 = vmatprep.subr.bf16.mxu0 0
        %1633 = vmatpush2.bf16.msra.mxu0 0
        %1634 = vmatprep.subr.bf16.mxu0 0
        %1635 = vmatpush2.bf16.msra.mxu0 0
        %1636 = vmatprep.subr.bf16.mxu0 0
        %1637 = vmatpush2.bf16.msra.mxu0 0
        %1638 = vmatprep.subr.bf16.mxu0 0
        %1639 = vmatpush2.bf16.msra.mxu0 0
        %1640 = vmatprep.subr.bf16.mxu0 0
        %1641 = vmatpush2.bf16.msra.mxu0 0
        %1642 = vmatprep.mubr.bf16.mxu0 0
        %1643 = vmatmul.mubr.bf16.gmra.mxu0 %v498
        %v1644 = vpop.f32.mrf.mxu0
        %v1645 = vadd.f32 0.0, %v1644
        %v1646 = vpop.f32.mrf.mxu0
        %v1647 = vpop.f32.mrf.mxu0
        %v1648 = vpop.f32.mrf.mxu0
        %1649 = vdwg.mxu0
        %1650 = vmatprep.subr.bf16.mxu0 0
        %1651 = vmatpush1.bf16.msra.mxu0 %v1113
        %1652 = vmatprep.subr.bf16.mxu0 0
        %1653 = vmatpush1.bf16.msra.mxu0 %v1112
        %1654 = vmatprep.subr.bf16.mxu0 0
        %1655 = vmatpush1.bf16.msra.mxu0 %v1111
        %1656 = vmatprep.subr.bf16.mxu0 0
        %1657 = vmatpush1.bf16.msra.mxu0 %v1110
        %1658 = vmatprep.subr.bf16.mxu0 0
        %1659 = vmatpush1.bf16.msra.mxu0 %v1109
        %1660 = vmatprep.subr.bf16.mxu0 0
        %1661 = vmatpush1.bf16.msra.mxu0 %v1108
        %1662 = vmatprep.subr.bf16.mxu0 0
        %1663 = vmatpush1.bf16.msra.mxu0 %v1107
        %1664 = vmatprep.subr.bf16.mxu0 0
        %1665 = vmatpush1.bf16.msra.mxu0 %v1106
        %1666 = vmatprep.subr.bf16.mxu0 0
        %1667 = vmatpush2.bf16.msra.mxu0 0
        %1668 = vmatprep.subr.bf16.mxu0 0
        %1669 = vmatpush2.bf16.msra.mxu0 0
        %1670 = vmatprep.subr.bf16.mxu0 0
        %1671 = vmatpush2.bf16.msra.mxu0 0
        %1672 = vmatprep.subr.bf16.mxu0 0
        %1673 = vmatpush2.bf16.msra.mxu0 0
        %1674 = vmatprep.subr.bf16.mxu0 0
        %1675 = vmatpush2.bf16.msra.mxu0 0
        %1676 = vmatprep.subr.bf16.mxu0 0
        %1677 = vmatpush2.bf16.msra.mxu0 0
        %1678 = vmatprep.subr.bf16.mxu0 0
        %1679 = vmatpush2.bf16.msra.mxu0 0
        %1680 = vmatprep.subr.bf16.mxu0 0
        %1681 = vmatpush2.bf16.msra.mxu0 0
        %1682 = vmatprep.mubr.bf16.mxu0 0
        %1683 = vmatmul.mubr.bf16.gmra.mxu0 %v499
        %v1684 = vpop.f32.mrf.mxu0
        %v1685 = vadd.f32 0.0, %v1684
        %v1686 = vpop.f32.mrf.mxu0
        %v1687 = vpop.f32.mrf.mxu0
        %v1688 = vpop.f32.mrf.mxu0
        %1689 = vdwg.mxu0
        %1690 = vmatprep.subr.bf16.mxu0 0
        %1691 = vmatpush1.bf16.msra.mxu0 %v1121
        %1692 = vmatprep.subr.bf16.mxu0 0
        %1693 = vmatpush1.bf16.msra.mxu0 %v1120
        %1694 = vmatprep.subr.bf16.mxu0 0
        %1695 = vmatpush1.bf16.msra.mxu0 %v1119
        %1696 = vmatprep.subr.bf16.mxu0 0
        %1697 = vmatpush1.bf16.msra.mxu0 %v1118
        %1698 = vmatprep.subr.bf16.mxu0 0
        %1699 = vmatpush1.bf16.msra.mxu0 %v1117
        %1700 = vmatprep.subr.bf16.mxu0 0
        %1701 = vmatpush1.bf16.msra.mxu0 %v1116
        %1702 = vmatprep.subr.bf16.mxu0 0
        %1703 = vmatpush1.bf16.msra.mxu0 %v1115
        %1704 = vmatprep.subr.bf16.mxu0 0
        %1705 = vmatpush1.bf16.msra.mxu0 %v1114
        %1706 = vmatprep.subr.bf16.mxu0 0
        %1707 = vmatpush2.bf16.msra.mxu0 0
        %1708 = vmatprep.subr.bf16.mxu0 0
        %1709 = vmatpush2.bf16.msra.mxu0 0
        %1710 = vmatprep.subr.bf16.mxu0 0
        %1711 = vmatpush2.bf16.msra.mxu0 0
        %1712 = vmatprep.subr.bf16.mxu0 0
        %1713 = vmatpush2.bf16.msra.mxu0 0
        %1714 = vmatprep.subr.bf16.mxu0 0
        %1715 = vmatpush2.bf16.msra.mxu0 0
        %1716 = vmatprep.subr.bf16.mxu0 0
        %1717 = vmatpush2.bf16.msra.mxu0 0
        %1718 = vmatprep.subr.bf16.mxu0 0
        %1719 = vmatpush2.bf16.msra.mxu0 0
        %1720 = vmatprep.subr.bf16.mxu0 0
        %1721 = vmatpush2.bf16.msra.mxu0 0
        %1722 = vmatprep.mubr.bf16.mxu0 0
        %1723 = vmatmul.mubr.bf16.gmra.mxu0 %v500
        %v1724 = vpop.f32.mrf.mxu0
        %v1725 = vadd.f32 0.0, %v1724
        %v1726 = vpop.f32.mrf.mxu0
        %v1727 = vpop.f32.mrf.mxu0
        %v1728 = vpop.f32.mrf.mxu0
        %1729 = vdwg.mxu0
        %1730 = vmatprep.subr.bf16.mxu0 0
        %1731 = vmatpush1.bf16.msra.mxu0 %v1129
        %1732 = vmatprep.subr.bf16.mxu0 0
        %1733 = vmatpush1.bf16.msra.mxu0 %v1128
        %1734 = vmatprep.subr.bf16.mxu0 0
        %1735 = vmatpush1.bf16.msra.mxu0 %v1127
        %1736 = vmatprep.subr.bf16.mxu0 0
        %1737 = vmatpush1.bf16.msra.mxu0 %v1126
        %1738 = vmatprep.subr.bf16.mxu0 0
        %1739 = vmatpush1.bf16.msra.mxu0 %v1125
        %1740 = vmatprep.subr.bf16.mxu0 0
        %1741 = vmatpush1.bf16.msra.mxu0 %v1124
        %1742 = vmatprep.subr.bf16.mxu0 0
        %1743 = vmatpush1.bf16.msra.mxu0 %v1123
        %1744 = vmatprep.subr.bf16.mxu0 0
        %1745 = vmatpush1.bf16.msra.mxu0 %v1122
        %1746 = vmatprep.subr.bf16.mxu0 0
        %1747 = vmatpush2.bf16.msra.mxu0 0
        %1748 = vmatprep.subr.bf16.mxu0 0
        %1749 = vmatpush2.bf16.msra.mxu0 0
        %1750 = vmatprep.subr.bf16.mxu0 0
        %1751 = vmatpush2.bf16.msra.mxu0 0
        %1752 = vmatprep.subr.bf16.mxu0 0
        %1753 = vmatpush2.bf16.msra.mxu0 0
        %1754 = vmatprep.subr.bf16.mxu0 0
        %1755 = vmatpush2.bf16.msra.mxu0 0
        %1756 = vmatprep.subr.bf16.mxu0 0
        %1757 = vmatpush2.bf16.msra.mxu0 0
        %1758 = vmatprep.subr.bf16.mxu0 0
        %1759 = vmatpush2.bf16.msra.mxu0 0
        %1760 = vmatprep.subr.bf16.mxu0 0
        %1761 = vmatpush2.bf16.msra.mxu0 0
        %1762 = vmatprep.mubr.bf16.mxu0 0
        %1763 = vmatmul.mubr.bf16.gmra.mxu0 %v501
        %v1764 = vpop.f32.mrf.mxu0
        %v1765 = vadd.f32 0.0, %v1764
        %v1766 = vpop.f32.mrf.mxu0
        %v1767 = vpop.f32.mrf.mxu0
        %v1768 = vpop.f32.mrf.mxu0
        %1769 = vdwg.mxu0
        %1770 = vmatprep.subr.bf16.mxu0 0
        %1771 = vmatpush1.bf16.msra.mxu0 %v1137
        %1772 = vmatprep.subr.bf16.mxu0 0
        %1773 = vmatpush1.bf16.msra.mxu0 %v1136
        %1774 = vmatprep.subr.bf16.mxu0 0
        %1775 = vmatpush1.bf16.msra.mxu0 %v1135
        %1776 = vmatprep.subr.bf16.mxu0 0
        %1777 = vmatpush1.bf16.msra.mxu0 %v1134
        %1778 = vmatprep.subr.bf16.mxu0 0
        %1779 = vmatpush1.bf16.msra.mxu0 %v1133
        %1780 = vmatprep.subr.bf16.mxu0 0
        %1781 = vmatpush1.bf16.msra.mxu0 %v1132
        %1782 = vmatprep.subr.bf16.mxu0 0
        %1783 = vmatpush1.bf16.msra.mxu0 %v1131
        %1784 = vmatprep.subr.bf16.mxu0 0
        %1785 = vmatpush1.bf16.msra.mxu0 %v1130
        %1786 = vmatprep.subr.bf16.mxu0 0
        %1787 = vmatpush2.bf16.msra.mxu0 0
        %1788 = vmatprep.subr.bf16.mxu0 0
        %1789 = vmatpush2.bf16.msra.mxu0 0
        %1790 = vmatprep.subr.bf16.mxu0 0
        %1791 = vmatpush2.bf16.msra.mxu0 0
        %1792 = vmatprep.subr.bf16.mxu0 0
        %1793 = vmatpush2.bf16.msra.mxu0 0
        %1794 = vmatprep.subr.bf16.mxu0 0
        %1795 = vmatpush2.bf16.msra.mxu0 0
        %1796 = vmatprep.subr.bf16.mxu0 0
        %1797 = vmatpush2.bf16.msra.mxu0 0
        %1798 = vmatprep.subr.bf16.mxu0 0
        %1799 = vmatpush2.bf16.msra.mxu0 0
        %1800 = vmatprep.subr.bf16.mxu0 0
        %1801 = vmatpush2.bf16.msra.mxu0 0
        %1802 = vmatprep.mubr.bf16.mxu0 0
        %1803 = vmatmul.mubr.bf16.gmra.mxu0 %v502
        %v1804 = vpop.f32.mrf.mxu0
        %v1805 = vadd.f32 0.0, %v1804
        %v1806 = vpop.f32.mrf.mxu0
        %v1807 = vpop.f32.mrf.mxu0
        %v1808 = vpop.f32.mrf.mxu0
        %1809 = vdwg.mxu0
        %1810 = vmatprep.subr.bf16.mxu0 0
        %1811 = vmatpush1.bf16.msra.mxu0 %v1145
        %1812 = vmatprep.subr.bf16.mxu0 0
        %1813 = vmatpush1.bf16.msra.mxu0 %v1144
        %1814 = vmatprep.subr.bf16.mxu0 0
        %1815 = vmatpush1.bf16.msra.mxu0 %v1143
        %1816 = vmatprep.subr.bf16.mxu0 0
        %1817 = vmatpush1.bf16.msra.mxu0 %v1142
        %1818 = vmatprep.subr.bf16.mxu0 0
        %1819 = vmatpush1.bf16.msra.mxu0 %v1141
        %1820 = vmatprep.subr.bf16.mxu0 0
        %1821 = vmatpush1.bf16.msra.mxu0 %v1140
        %1822 = vmatprep.subr.bf16.mxu0 0
        %1823 = vmatpush1.bf16.msra.mxu0 %v1139
        %1824 = vmatprep.subr.bf16.mxu0 0
        %1825 = vmatpush1.bf16.msra.mxu0 %v1138
        %1826 = vmatprep.subr.bf16.mxu0 0
        %1827 = vmatpush2.bf16.msra.mxu0 0
        %1828 = vmatprep.subr.bf16.mxu0 0
        %1829 = vmatpush2.bf16.msra.mxu0 0
        %1830 = vmatprep.subr.bf16.mxu0 0
        %1831 = vmatpush2.bf16.msra.mxu0 0
        %1832 = vmatprep.subr.bf16.mxu0 0
        %1833 = vmatpush2.bf16.msra.mxu0 0
        %1834 = vmatprep.subr.bf16.mxu0 0
        %1835 = vmatpush2.bf16.msra.mxu0 0
        %1836 = vmatprep.subr.bf16.mxu0 0
        %1837 = vmatpush2.bf16.msra.mxu0 0
        %1838 = vmatprep.subr.bf16.mxu0 0
        %1839 = vmatpush2.bf16.msra.mxu0 0
        %1840 = vmatprep.subr.bf16.mxu0 0
        %1841 = vmatpush2.bf16.msra.mxu0 0
        %1842 = vmatprep.mubr.bf16.mxu0 0
        %1843 = vmatmul.mubr.bf16.gmra.mxu0 %v503
        %v1844 = vpop.f32.mrf.mxu0
        %v1845 = vadd.f32 0.0, %v1844
        %v1846 = vpop.f32.mrf.mxu0
        %v1847 = vpop.f32.mrf.mxu0
        %v1848 = vpop.f32.mrf.mxu0
        %1849 = vdwg.mxu0
        %1850 = vmatprep.subr.bf16.mxu0 0
        %1851 = vmatpush1.bf16.msra.mxu0 %v1153
        %1852 = vmatprep.subr.bf16.mxu0 0
        %1853 = vmatpush1.bf16.msra.mxu0 %v1152
        %1854 = vmatprep.subr.bf16.mxu0 0
        %1855 = vmatpush1.bf16.msra.mxu0 %v1151
        %1856 = vmatprep.subr.bf16.mxu0 0
        %1857 = vmatpush1.bf16.msra.mxu0 %v1150
        %1858 = vmatprep.subr.bf16.mxu0 0
        %1859 = vmatpush1.bf16.msra.mxu0 %v1149
        %1860 = vmatprep.subr.bf16.mxu0 0
        %1861 = vmatpush1.bf16.msra.mxu0 %v1148
        %1862 = vmatprep.subr.bf16.mxu0 0
        %1863 = vmatpush1.bf16.msra.mxu0 %v1147
        %1864 = vmatprep.subr.bf16.mxu0 0
        %1865 = vmatpush1.bf16.msra.mxu0 %v1146
        %1866 = vmatprep.subr.bf16.mxu0 0
        %1867 = vmatpush2.bf16.msra.mxu0 0
        %1868 = vmatprep.subr.bf16.mxu0 0
        %1869 = vmatpush2.bf16.msra.mxu0 0
        %1870 = vmatprep.subr.bf16.mxu0 0
        %1871 = vmatpush2.bf16.msra.mxu0 0
        %1872 = vmatprep.subr.bf16.mxu0 0
        %1873 = vmatpush2.bf16.msra.mxu0 0
        %1874 = vmatprep.subr.bf16.mxu0 0
        %1875 = vmatpush2.bf16.msra.mxu0 0
        %1876 = vmatprep.subr.bf16.mxu0 0
        %1877 = vmatpush2.bf16.msra.mxu0 0
        %1878 = vmatprep.subr.bf16.mxu0 0
        %1879 = vmatpush2.bf16.msra.mxu0 0
        %1880 = vmatprep.subr.bf16.mxu0 0
        %1881 = vmatpush2.bf16.msra.mxu0 0
        %1882 = vmatprep.mubr.bf16.mxu0 0
        %1883 = vmatmul.mubr.bf16.gmra.mxu0 %v504
        %v1884 = vpop.f32.mrf.mxu0
        %v1885 = vadd.f32 0.0, %v1884
        %v1886 = vpop.f32.mrf.mxu0
        %v1887 = vpop.f32.mrf.mxu0
        %v1888 = vpop.f32.mrf.mxu0
        %1889 = vdwg.mxu0
        %1890 = vmatprep.subr.bf16.mxu0 0
        %1891 = vmatpush1.bf16.msra.mxu0 %v1161
        %1892 = vmatprep.subr.bf16.mxu0 0
        %1893 = vmatpush1.bf16.msra.mxu0 %v1160
        %1894 = vmatprep.subr.bf16.mxu0 0
        %1895 = vmatpush1.bf16.msra.mxu0 %v1159
        %1896 = vmatprep.subr.bf16.mxu0 0
        %1897 = vmatpush1.bf16.msra.mxu0 %v1158
        %1898 = vmatprep.subr.bf16.mxu0 0
        %1899 = vmatpush1.bf16.msra.mxu0 %v1157
        %1900 = vmatprep.subr.bf16.mxu0 0
        %1901 = vmatpush1.bf16.msra.mxu0 %v1156
        %1902 = vmatprep.subr.bf16.mxu0 0
        %1903 = vmatpush1.bf16.msra.mxu0 %v1155
        %1904 = vmatprep.subr.bf16.mxu0 0
        %1905 = vmatpush1.bf16.msra.mxu0 %v1154
        %1906 = vmatprep.subr.bf16.mxu0 0
        %1907 = vmatpush2.bf16.msra.mxu0 0
        %1908 = vmatprep.subr.bf16.mxu0 0
        %1909 = vmatpush2.bf16.msra.mxu0 0
        %1910 = vmatprep.subr.bf16.mxu0 0
        %1911 = vmatpush2.bf16.msra.mxu0 0
        %1912 = vmatprep.subr.bf16.mxu0 0
        %1913 = vmatpush2.bf16.msra.mxu0 0
        %1914 = vmatprep.subr.bf16.mxu0 0
        %1915 = vmatpush2.bf16.msra.mxu0 0
        %1916 = vmatprep.subr.bf16.mxu0 0
        %1917 = vmatpush2.bf16.msra.mxu0 0
        %1918 = vmatprep.subr.bf16.mxu0 0
        %1919 = vmatpush2.bf16.msra.mxu0 0
        %1920 = vmatprep.subr.bf16.mxu0 0
        %1921 = vmatpush2.bf16.msra.mxu0 0
        %1922 = vmatprep.mubr.bf16.mxu0 0
        %1923 = vmatmul.mubr.bf16.gmra.mxu0 %v505
        %v1924 = vpop.f32.mrf.mxu0
        %v1925 = vadd.f32 0.0, %v1924
        %v1926 = vpop.f32.mrf.mxu0
        %v1927 = vpop.f32.mrf.mxu0
        %v1928 = vpop.f32.mrf.mxu0
        %1929 = vdwg.mxu0
        %1930 = vmatprep.subr.bf16.mxu0 0
        %1931 = vmatpush1.bf16.msra.mxu0 %v1169
        %1932 = vmatprep.subr.bf16.mxu0 0
        %1933 = vmatpush1.bf16.msra.mxu0 %v1168
        %1934 = vmatprep.subr.bf16.mxu0 0
        %1935 = vmatpush1.bf16.msra.mxu0 %v1167
        %1936 = vmatprep.subr.bf16.mxu0 0
        %1937 = vmatpush1.bf16.msra.mxu0 %v1166
        %1938 = vmatprep.subr.bf16.mxu0 0
        %1939 = vmatpush1.bf16.msra.mxu0 %v1165
        %1940 = vmatprep.subr.bf16.mxu0 0
        %1941 = vmatpush1.bf16.msra.mxu0 %v1164
        %1942 = vmatprep.subr.bf16.mxu0 0
        %1943 = vmatpush1.bf16.msra.mxu0 %v1163
        %1944 = vmatprep.subr.bf16.mxu0 0
        %1945 = vmatpush1.bf16.msra.mxu0 %v1162
        %1946 = vmatprep.subr.bf16.mxu0 0
        %1947 = vmatpush2.bf16.msra.mxu0 0
        %1948 = vmatprep.subr.bf16.mxu0 0
        %1949 = vmatpush2.bf16.msra.mxu0 0
        %1950 = vmatprep.subr.bf16.mxu0 0
        %1951 = vmatpush2.bf16.msra.mxu0 0
        %1952 = vmatprep.subr.bf16.mxu0 0
        %1953 = vmatpush2.bf16.msra.mxu0 0
        %1954 = vmatprep.subr.bf16.mxu0 0
        %1955 = vmatpush2.bf16.msra.mxu0 0
        %1956 = vmatprep.subr.bf16.mxu0 0
        %1957 = vmatpush2.bf16.msra.mxu0 0
        %1958 = vmatprep.subr.bf16.mxu0 0
        %1959 = vmatpush2.bf16.msra.mxu0 0
        %1960 = vmatprep.subr.bf16.mxu0 0
        %1961 = vmatpush2.bf16.msra.mxu0 0
        %1962 = vmatprep.mubr.bf16.mxu0 0
        %1963 = vmatmul.mubr.bf16.gmra.mxu0 %v506
        %v1964 = vpop.f32.mrf.mxu0
        %v1965 = vadd.f32 0.0, %v1964
        %v1966 = vpop.f32.mrf.mxu0
        %v1967 = vpop.f32.mrf.mxu0
        %v1968 = vpop.f32.mrf.mxu0
        %1969 = vdwg.mxu0
        %1970 = vmatprep.subr.bf16.mxu0 0
        %1971 = vmatpush1.bf16.msra.mxu0 %v1177
        %1972 = vmatprep.subr.bf16.mxu0 0
        %1973 = vmatpush1.bf16.msra.mxu0 %v1176
        %1974 = vmatprep.subr.bf16.mxu0 0
        %1975 = vmatpush1.bf16.msra.mxu0 %v1175
        %1976 = vmatprep.subr.bf16.mxu0 0
        %1977 = vmatpush1.bf16.msra.mxu0 %v1174
        %1978 = vmatprep.subr.bf16.mxu0 0
        %1979 = vmatpush1.bf16.msra.mxu0 %v1173
        %1980 = vmatprep.subr.bf16.mxu0 0
        %1981 = vmatpush1.bf16.msra.mxu0 %v1172
        %1982 = vmatprep.subr.bf16.mxu0 0
        %1983 = vmatpush1.bf16.msra.mxu0 %v1171
        %1984 = vmatprep.subr.bf16.mxu0 0
        %1985 = vmatpush1.bf16.msra.mxu0 %v1170
        %1986 = vmatprep.subr.bf16.mxu0 0
        %1987 = vmatpush2.bf16.msra.mxu0 0
        %1988 = vmatprep.subr.bf16.mxu0 0
        %1989 = vmatpush2.bf16.msra.mxu0 0
        %1990 = vmatprep.subr.bf16.mxu0 0
        %1991 = vmatpush2.bf16.msra.mxu0 0
        %1992 = vmatprep.subr.bf16.mxu0 0
        %1993 = vmatpush2.bf16.msra.mxu0 0
        %1994 = vmatprep.subr.bf16.mxu0 0
        %1995 = vmatpush2.bf16.msra.mxu0 0
        %1996 = vmatprep.subr.bf16.mxu0 0
        %1997 = vmatpush2.bf16.msra.mxu0 0
        %1998 = vmatprep.subr.bf16.mxu0 0
        %1999 = vmatpush2.bf16.msra.mxu0 0
        %2000 = vmatprep.subr.bf16.mxu0 0
        %2001 = vmatpush2.bf16.msra.mxu0 0
        %2002 = vmatprep.mubr.bf16.mxu0 0
        %2003 = vmatmul.mubr.bf16.gmra.mxu0 %v507
        %v2004 = vpop.f32.mrf.mxu0
        %v2005 = vadd.f32 0.0, %v2004
        %v2006 = vpop.f32.mrf.mxu0
        %v2007 = vpop.f32.mrf.mxu0
        %v2008 = vpop.f32.mrf.mxu0
        %2009 = vdwg.mxu0
        %2010 = vmatprep.subr.bf16.mxu0 0
        %2011 = vmatpush1.bf16.msra.mxu0 %v1185
        %2012 = vmatprep.subr.bf16.mxu0 0
        %2013 = vmatpush1.bf16.msra.mxu0 %v1184
        %2014 = vmatprep.subr.bf16.mxu0 0
        %2015 = vmatpush1.bf16.msra.mxu0 %v1183
        %2016 = vmatprep.subr.bf16.mxu0 0
        %2017 = vmatpush1.bf16.msra.mxu0 %v1182
        %2018 = vmatprep.subr.bf16.mxu0 0
        %2019 = vmatpush1.bf16.msra.mxu0 %v1181
        %2020 = vmatprep.subr.bf16.mxu0 0
        %2021 = vmatpush1.bf16.msra.mxu0 %v1180
        %2022 = vmatprep.subr.bf16.mxu0 0
        %2023 = vmatpush1.bf16.msra.mxu0 %v1179
        %2024 = vmatprep.subr.bf16.mxu0 0
        %2025 = vmatpush1.bf16.msra.mxu0 %v1178
        %2026 = vmatprep.subr.bf16.mxu0 0
        %2027 = vmatpush2.bf16.msra.mxu0 0
        %2028 = vmatprep.subr.bf16.mxu0 0
        %2029 = vmatpush2.bf16.msra.mxu0 0
        %2030 = vmatprep.subr.bf16.mxu0 0
        %2031 = vmatpush2.bf16.msra.mxu0 0
        %2032 = vmatprep.subr.bf16.mxu0 0
        %2033 = vmatpush2.bf16.msra.mxu0 0
        %2034 = vmatprep.subr.bf16.mxu0 0
        %2035 = vmatpush2.bf16.msra.mxu0 0
        %2036 = vmatprep.subr.bf16.mxu0 0
        %2037 = vmatpush2.bf16.msra.mxu0 0
        %2038 = vmatprep.subr.bf16.mxu0 0
        %2039 = vmatpush2.bf16.msra.mxu0 0
        %2040 = vmatprep.subr.bf16.mxu0 0
        %2041 = vmatpush2.bf16.msra.mxu0 0
        %2042 = vmatprep.mubr.bf16.mxu0 0
        %2043 = vmatmul.mubr.bf16.gmra.mxu0 %v508
        %v2044 = vpop.f32.mrf.mxu0
        %v2045 = vadd.f32 0.0, %v2044
        %v2046 = vpop.f32.mrf.mxu0
        %v2047 = vpop.f32.mrf.mxu0
        %v2048 = vpop.f32.mrf.mxu0
        %2049 = vdwg.mxu0
        %2050 = vmatprep.subr.bf16.mxu0 0
        %2051 = vmatpush1.bf16.msra.mxu0 %v1193
        %2052 = vmatprep.subr.bf16.mxu0 0
        %2053 = vmatpush1.bf16.msra.mxu0 %v1192
        %2054 = vmatprep.subr.bf16.mxu0 0
        %2055 = vmatpush1.bf16.msra.mxu0 %v1191
        %2056 = vmatprep.subr.bf16.mxu0 0
        %2057 = vmatpush1.bf16.msra.mxu0 %v1190
        %2058 = vmatprep.subr.bf16.mxu0 0
        %2059 = vmatpush1.bf16.msra.mxu0 %v1189
        %2060 = vmatprep.subr.bf16.mxu0 0
        %2061 = vmatpush1.bf16.msra.mxu0 %v1188
        %2062 = vmatprep.subr.bf16.mxu0 0
        %2063 = vmatpush1.bf16.msra.mxu0 %v1187
        %2064 = vmatprep.subr.bf16.mxu0 0
        %2065 = vmatpush1.bf16.msra.mxu0 %v1186
        %2066 = vmatprep.subr.bf16.mxu0 0
        %2067 = vmatpush2.bf16.msra.mxu0 0
        %2068 = vmatprep.subr.bf16.mxu0 0
        %2069 = vmatpush2.bf16.msra.mxu0 0
        %2070 = vmatprep.subr.bf16.mxu0 0
        %2071 = vmatpush2.bf16.msra.mxu0 0
        %2072 = vmatprep.subr.bf16.mxu0 0
        %2073 = vmatpush2.bf16.msra.mxu0 0
        %2074 = vmatprep.subr.bf16.mxu0 0
        %2075 = vmatpush2.bf16.msra.mxu0 0
        %2076 = vmatprep.subr.bf16.mxu0 0
        %2077 = vmatpush2.bf16.msra.mxu0 0
        %2078 = vmatprep.subr.bf16.mxu0 0
        %2079 = vmatpush2.bf16.msra.mxu0 0
        %2080 = vmatprep.subr.bf16.mxu0 0
        %2081 = vmatpush2.bf16.msra.mxu0 0
        %2082 = vmatprep.mubr.bf16.mxu0 0
        %2083 = vmatmul.mubr.bf16.gmra.mxu0 %v509
        %v2084 = vpop.f32.mrf.mxu0
        %v2085 = vadd.f32 0.0, %v2084
        %v2086 = vpop.f32.mrf.mxu0
        %v2087 = vpop.f32.mrf.mxu0
        %v2088 = vpop.f32.mrf.mxu0
        %2089 = vdwg.mxu0
        %2090 = vmatprep.subr.bf16.mxu0 0
        %2091 = vmatpush1.bf16.msra.mxu0 %v1201
        %2092 = vmatprep.subr.bf16.mxu0 0
        %2093 = vmatpush1.bf16.msra.mxu0 %v1200
        %2094 = vmatprep.subr.bf16.mxu0 0
        %2095 = vmatpush1.bf16.msra.mxu0 %v1199
        %2096 = vmatprep.subr.bf16.mxu0 0
        %2097 = vmatpush1.bf16.msra.mxu0 %v1198
        %2098 = vmatprep.subr.bf16.mxu0 0
        %2099 = vmatpush1.bf16.msra.mxu0 %v1197
        %2100 = vmatprep.subr.bf16.mxu0 0
        %2101 = vmatpush1.bf16.msra.mxu0 %v1196
        %2102 = vmatprep.subr.bf16.mxu0 0
        %2103 = vmatpush1.bf16.msra.mxu0 %v1195
        %2104 = vmatprep.subr.bf16.mxu0 0
        %2105 = vmatpush1.bf16.msra.mxu0 %v1194
        %2106 = vmatprep.subr.bf16.mxu0 0
        %2107 = vmatpush2.bf16.msra.mxu0 0
        %2108 = vmatprep.subr.bf16.mxu0 0
        %2109 = vmatpush2.bf16.msra.mxu0 0
        %2110 = vmatprep.subr.bf16.mxu0 0
        %2111 = vmatpush2.bf16.msra.mxu0 0
        %2112 = vmatprep.subr.bf16.mxu0 0
        %2113 = vmatpush2.bf16.msra.mxu0 0
        %2114 = vmatprep.subr.bf16.mxu0 0
        %2115 = vmatpush2.bf16.msra.mxu0 0
        %2116 = vmatprep.subr.bf16.mxu0 0
        %2117 = vmatpush2.bf16.msra.mxu0 0
        %2118 = vmatprep.subr.bf16.mxu0 0
        %2119 = vmatpush2.bf16.msra.mxu0 0
        %2120 = vmatprep.subr.bf16.mxu0 0
        %2121 = vmatpush2.bf16.msra.mxu0 0
        %2122 = vmatprep.mubr.bf16.mxu0 0
        %2123 = vmatmul.mubr.bf16.gmra.mxu0 %v510
        %v2124 = vpop.f32.mrf.mxu0
        %v2125 = vadd.f32 0.0, %v2124
        %v2126 = vpop.f32.mrf.mxu0
        %v2127 = vpop.f32.mrf.mxu0
        %v2128 = vpop.f32.mrf.mxu0
        %2129 = vdwg.mxu0
        %2130 = vmatprep.subr.bf16.mxu0 0
        %2131 = vmatpush1.bf16.msra.mxu0 %v1209
        %2132 = vmatprep.subr.bf16.mxu0 0
        %2133 = vmatpush1.bf16.msra.mxu0 %v1208
        %2134 = vmatprep.subr.bf16.mxu0 0
        %2135 = vmatpush1.bf16.msra.mxu0 %v1207
        %2136 = vmatprep.subr.bf16.mxu0 0
        %2137 = vmatpush1.bf16.msra.mxu0 %v1206
        %2138 = vmatprep.subr.bf16.mxu0 0
        %2139 = vmatpush1.bf16.msra.mxu0 %v1205
        %2140 = vmatprep.subr.bf16.mxu0 0
        %2141 = vmatpush1.bf16.msra.mxu0 %v1204
        %2142 = vmatprep.subr.bf16.mxu0 0
        %2143 = vmatpush1.bf16.msra.mxu0 %v1203
        %2144 = vmatprep.subr.bf16.mxu0 0
        %2145 = vmatpush1.bf16.msra.mxu0 %v1202
        %2146 = vmatprep.subr.bf16.mxu0 0
        %2147 = vmatpush2.bf16.msra.mxu0 0
        %2148 = vmatprep.subr.bf16.mxu0 0
        %2149 = vmatpush2.bf16.msra.mxu0 0
        %2150 = vmatprep.subr.bf16.mxu0 0
        %2151 = vmatpush2.bf16.msra.mxu0 0
        %2152 = vmatprep.subr.bf16.mxu0 0
        %2153 = vmatpush2.bf16.msra.mxu0 0
        %2154 = vmatprep.subr.bf16.mxu0 0
        %2155 = vmatpush2.bf16.msra.mxu0 0
        %2156 = vmatprep.subr.bf16.mxu0 0
        %2157 = vmatpush2.bf16.msra.mxu0 0
        %2158 = vmatprep.subr.bf16.mxu0 0
        %2159 = vmatpush2.bf16.msra.mxu0 0
        %2160 = vmatprep.subr.bf16.mxu0 0
        %2161 = vmatpush2.bf16.msra.mxu0 0
        %2162 = vmatprep.mubr.bf16.mxu0 0
        %2163 = vmatmul.mubr.bf16.gmra.mxu0 %v511
        %v2164 = vpop.f32.mrf.mxu0
        %v2165 = vadd.f32 0.0, %v2164
        %v2166 = vpop.f32.mrf.mxu0
        %v2167 = vpop.f32.mrf.mxu0
        %v2168 = vpop.f32.mrf.mxu0
        %2169 = vdwg.mxu0
        %2170 = vmatprep.subr.bf16.mxu0 0
        %2171 = vmatpush1.bf16.msra.mxu0 %v1217
        %2172 = vmatprep.subr.bf16.mxu0 0
        %2173 = vmatpush1.bf16.msra.mxu0 %v1216
        %2174 = vmatprep.subr.bf16.mxu0 0
        %2175 = vmatpush1.bf16.msra.mxu0 %v1215
        %2176 = vmatprep.subr.bf16.mxu0 0
        %2177 = vmatpush1.bf16.msra.mxu0 %v1214
        %2178 = vmatprep.subr.bf16.mxu0 0
        %2179 = vmatpush1.bf16.msra.mxu0 %v1213
        %2180 = vmatprep.subr.bf16.mxu0 0
        %2181 = vmatpush1.bf16.msra.mxu0 %v1212
        %2182 = vmatprep.subr.bf16.mxu0 0
        %2183 = vmatpush1.bf16.msra.mxu0 %v1211
        %2184 = vmatprep.subr.bf16.mxu0 0
        %2185 = vmatpush1.bf16.msra.mxu0 %v1210
        %2186 = vmatprep.subr.bf16.mxu0 0
        %2187 = vmatpush2.bf16.msra.mxu0 0
        %2188 = vmatprep.subr.bf16.mxu0 0
        %2189 = vmatpush2.bf16.msra.mxu0 0
        %2190 = vmatprep.subr.bf16.mxu0 0
        %2191 = vmatpush2.bf16.msra.mxu0 0
        %2192 = vmatprep.subr.bf16.mxu0 0
        %2193 = vmatpush2.bf16.msra.mxu0 0
        %2194 = vmatprep.subr.bf16.mxu0 0
        %2195 = vmatpush2.bf16.msra.mxu0 0
        %2196 = vmatprep.subr.bf16.mxu0 0
        %2197 = vmatpush2.bf16.msra.mxu0 0
        %2198 = vmatprep.subr.bf16.mxu0 0
        %2199 = vmatpush2.bf16.msra.mxu0 0
        %2200 = vmatprep.subr.bf16.mxu0 0
        %2201 = vmatpush2.bf16.msra.mxu0 0
        %2202 = vmatprep.mubr.bf16.mxu0 0
        %2203 = vmatmul.mubr.bf16.gmra.mxu0 %v512
        %v2204 = vpop.f32.mrf.mxu0
        %v2205 = vadd.f32 0.0, %v2204
        %v2206 = vpop.f32.mrf.mxu0
        %v2207 = vpop.f32.mrf.mxu0
        %v2208 = vpop.f32.mrf.mxu0
        %2209 = vdwg.mxu0
        %2210 = vmatprep.subr.bf16.mxu0 0
        %2211 = vmatpush1.bf16.msra.mxu0 %v1225
        %2212 = vmatprep.subr.bf16.mxu0 0
        %2213 = vmatpush1.bf16.msra.mxu0 %v1224
        %2214 = vmatprep.subr.bf16.mxu0 0
        %2215 = vmatpush1.bf16.msra.mxu0 %v1223
        %2216 = vmatprep.subr.bf16.mxu0 0
        %2217 = vmatpush1.bf16.msra.mxu0 %v1222
        %2218 = vmatprep.subr.bf16.mxu0 0
        %2219 = vmatpush1.bf16.msra.mxu0 %v1221
        %2220 = vmatprep.subr.bf16.mxu0 0
        %2221 = vmatpush1.bf16.msra.mxu0 %v1220
        %2222 = vmatprep.subr.bf16.mxu0 0
        %2223 = vmatpush1.bf16.msra.mxu0 %v1219
        %2224 = vmatprep.subr.bf16.mxu0 0
        %2225 = vmatpush1.bf16.msra.mxu0 %v1218
        %2226 = vmatprep.subr.bf16.mxu0 0
        %2227 = vmatpush2.bf16.msra.mxu0 0
        %2228 = vmatprep.subr.bf16.mxu0 0
        %2229 = vmatpush2.bf16.msra.mxu0 0
        %2230 = vmatprep.subr.bf16.mxu0 0
        %2231 = vmatpush2.bf16.msra.mxu0 0
        %2232 = vmatprep.subr.bf16.mxu0 0
        %2233 = vmatpush2.bf16.msra.mxu0 0
        %2234 = vmatprep.subr.bf16.mxu0 0
        %2235 = vmatpush2.bf16.msra.mxu0 0
        %2236 = vmatprep.subr.bf16.mxu0 0
        %2237 = vmatpush2.bf16.msra.mxu0 0
        %2238 = vmatprep.subr.bf16.mxu0 0
        %2239 = vmatpush2.bf16.msra.mxu0 0
        %2240 = vmatprep.subr.bf16.mxu0 0
        %2241 = vmatpush2.bf16.msra.mxu0 0
        %2242 = vmatprep.mubr.bf16.mxu0 0
        %2243 = vmatmul.mubr.bf16.gmra.mxu0 %v513
        %v2244 = vpop.f32.mrf.mxu0
        %v2245 = vadd.f32 0.0, %v2244
        %v2246 = vpop.f32.mrf.mxu0
        %v2247 = vpop.f32.mrf.mxu0
        %v2248 = vpop.f32.mrf.mxu0
        %2249 = vdwg.mxu0
        %2250 = vmatprep.subr.bf16.mxu0 0
        %2251 = vmatpush1.bf16.msra.mxu0 %v1233
        %2252 = vmatprep.subr.bf16.mxu0 0
        %2253 = vmatpush1.bf16.msra.mxu0 %v1232
        %2254 = vmatprep.subr.bf16.mxu0 0
        %2255 = vmatpush1.bf16.msra.mxu0 %v1231
        %2256 = vmatprep.subr.bf16.mxu0 0
        %2257 = vmatpush1.bf16.msra.mxu0 %v1230
        %2258 = vmatprep.subr.bf16.mxu0 0
        %2259 = vmatpush1.bf16.msra.mxu0 %v1229
        %2260 = vmatprep.subr.bf16.mxu0 0
        %2261 = vmatpush1.bf16.msra.mxu0 %v1228
        %2262 = vmatprep.subr.bf16.mxu0 0
        %2263 = vmatpush1.bf16.msra.mxu0 %v1227
        %2264 = vmatprep.subr.bf16.mxu0 0
        %2265 = vmatpush1.bf16.msra.mxu0 %v1226
        %2266 = vmatprep.subr.bf16.mxu0 0
        %2267 = vmatpush2.bf16.msra.mxu0 0
        %2268 = vmatprep.subr.bf16.mxu0 0
        %2269 = vmatpush2.bf16.msra.mxu0 0
        %2270 = vmatprep.subr.bf16.mxu0 0
        %2271 = vmatpush2.bf16.msra.mxu0 0
        %2272 = vmatprep.subr.bf16.mxu0 0
        %2273 = vmatpush2.bf16.msra.mxu0 0
        %2274 = vmatprep.subr.bf16.mxu0 0
        %2275 = vmatpush2.bf16.msra.mxu0 0
        %2276 = vmatprep.subr.bf16.mxu0 0
        %2277 = vmatpush2.bf16.msra.mxu0 0
        %2278 = vmatprep.subr.bf16.mxu0 0
        %2279 = vmatpush2.bf16.msra.mxu0 0
        %2280 = vmatprep.subr.bf16.mxu0 0
        %2281 = vmatpush2.bf16.msra.mxu0 0
        %2282 = vmatprep.mubr.bf16.mxu0 0
        %2283 = vmatmul.mubr.bf16.gmra.mxu0 %v514
        %v2284 = vpop.f32.mrf.mxu0
        %v2285 = vadd.f32 0.0, %v2284
        %v2286 = vpop.f32.mrf.mxu0
        %v2287 = vpop.f32.mrf.mxu0
        %v2288 = vpop.f32.mrf.mxu0
        %2289 = vdwg.mxu0
        %2290 = vmatprep.subr.bf16.mxu0 0
        %2291 = vmatpush1.bf16.msra.mxu0 %v1241
        %2292 = vmatprep.subr.bf16.mxu0 0
        %2293 = vmatpush1.bf16.msra.mxu0 %v1240
        %2294 = vmatprep.subr.bf16.mxu0 0
        %2295 = vmatpush1.bf16.msra.mxu0 %v1239
        %2296 = vmatprep.subr.bf16.mxu0 0
        %2297 = vmatpush1.bf16.msra.mxu0 %v1238
        %2298 = vmatprep.subr.bf16.mxu0 0
        %2299 = vmatpush1.bf16.msra.mxu0 %v1237
        %2300 = vmatprep.subr.bf16.mxu0 0
        %2301 = vmatpush1.bf16.msra.mxu0 %v1236
        %2302 = vmatprep.subr.bf16.mxu0 0
        %2303 = vmatpush1.bf16.msra.mxu0 %v1235
        %2304 = vmatprep.subr.bf16.mxu0 0
        %2305 = vmatpush1.bf16.msra.mxu0 %v1234
        %2306 = vmatprep.subr.bf16.mxu0 0
        %2307 = vmatpush2.bf16.msra.mxu0 0
        %2308 = vmatprep.subr.bf16.mxu0 0
        %2309 = vmatpush2.bf16.msra.mxu0 0
        %2310 = vmatprep.subr.bf16.mxu0 0
        %2311 = vmatpush2.bf16.msra.mxu0 0
        %2312 = vmatprep.subr.bf16.mxu0 0
        %2313 = vmatpush2.bf16.msra.mxu0 0
        %2314 = vmatprep.subr.bf16.mxu0 0
        %2315 = vmatpush2.bf16.msra.mxu0 0
        %2316 = vmatprep.subr.bf16.mxu0 0
        %2317 = vmatpush2.bf16.msra.mxu0 0
        %2318 = vmatprep.subr.bf16.mxu0 0
        %2319 = vmatpush2.bf16.msra.mxu0 0
        %2320 = vmatprep.subr.bf16.mxu0 0
        %2321 = vmatpush2.bf16.msra.mxu0 0
        %2322 = vmatprep.mubr.bf16.mxu0 0
        %2323 = vmatmul.mubr.bf16.gmra.mxu0 %v515
        %v2324 = vpop.f32.mrf.mxu0
        %v2325 = vadd.f32 0.0, %v2324
        %v2326 = vpop.f32.mrf.mxu0
        %v2327 = vpop.f32.mrf.mxu0
        %v2328 = vpop.f32.mrf.mxu0
        %2329 = vdwg.mxu0
        %2330 = vmatprep.subr.bf16.mxu0 0
        %2331 = vmatpush1.bf16.msra.mxu0 %v1249
        %2332 = vmatprep.subr.bf16.mxu0 0
        %2333 = vmatpush1.bf16.msra.mxu0 %v1248
        %2334 = vmatprep.subr.bf16.mxu0 0
        %2335 = vmatpush1.bf16.msra.mxu0 %v1247
        %2336 = vmatprep.subr.bf16.mxu0 0
        %2337 = vmatpush1.bf16.msra.mxu0 %v1246
        %2338 = vmatprep.subr.bf16.mxu0 0
        %2339 = vmatpush1.bf16.msra.mxu0 %v1245
        %2340 = vmatprep.subr.bf16.mxu0 0
        %2341 = vmatpush1.bf16.msra.mxu0 %v1244
        %2342 = vmatprep.subr.bf16.mxu0 0
        %2343 = vmatpush1.bf16.msra.mxu0 %v1243
        %2344 = vmatprep.subr.bf16.mxu0 0
        %2345 = vmatpush1.bf16.msra.mxu0 %v1242
        %2346 = vmatprep.subr.bf16.mxu0 0
        %2347 = vmatpush2.bf16.msra.mxu0 0
        %2348 = vmatprep.subr.bf16.mxu0 0
        %2349 = vmatpush2.bf16.msra.mxu0 0
        %2350 = vmatprep.subr.bf16.mxu0 0
        %2351 = vmatpush2.bf16.msra.mxu0 0
        %2352 = vmatprep.subr.bf16.mxu0 0
        %2353 = vmatpush2.bf16.msra.mxu0 0
        %2354 = vmatprep.subr.bf16.mxu0 0
        %2355 = vmatpush2.bf16.msra.mxu0 0
        %2356 = vmatprep.subr.bf16.mxu0 0
        %2357 = vmatpush2.bf16.msra.mxu0 0
        %2358 = vmatprep.subr.bf16.mxu0 0
        %2359 = vmatpush2.bf16.msra.mxu0 0
        %2360 = vmatprep.subr.bf16.mxu0 0
        %2361 = vmatpush2.bf16.msra.mxu0 0
        %2362 = vmatprep.mubr.bf16.mxu0 0
        %2363 = vmatmul.mubr.bf16.gmra.mxu0 %v516
        %v2364 = vpop.f32.mrf.mxu0
        %v2365 = vadd.f32 0.0, %v2364
        %v2366 = vpop.f32.mrf.mxu0
        %v2367 = vpop.f32.mrf.mxu0
        %v2368 = vpop.f32.mrf.mxu0
        %2369 = vdwg.mxu0
        %2370 = vmatprep.subr.bf16.mxu0 0
        %2371 = vmatpush1.bf16.msra.mxu0 %v1257
        %2372 = vmatprep.subr.bf16.mxu0 0
        %2373 = vmatpush1.bf16.msra.mxu0 %v1256
        %2374 = vmatprep.subr.bf16.mxu0 0
        %2375 = vmatpush1.bf16.msra.mxu0 %v1255
        %2376 = vmatprep.subr.bf16.mxu0 0
        %2377 = vmatpush1.bf16.msra.mxu0 %v1254
        %2378 = vmatprep.subr.bf16.mxu0 0
        %2379 = vmatpush1.bf16.msra.mxu0 %v1253
        %2380 = vmatprep.subr.bf16.mxu0 0
        %2381 = vmatpush1.bf16.msra.mxu0 %v1252
        %2382 = vmatprep.subr.bf16.mxu0 0
        %2383 = vmatpush1.bf16.msra.mxu0 %v1251
        %2384 = vmatprep.subr.bf16.mxu0 0
        %2385 = vmatpush1.bf16.msra.mxu0 %v1250
        %2386 = vmatprep.subr.bf16.mxu0 0
        %2387 = vmatpush2.bf16.msra.mxu0 0
        %2388 = vmatprep.subr.bf16.mxu0 0
        %2389 = vmatpush2.bf16.msra.mxu0 0
        %2390 = vmatprep.subr.bf16.mxu0 0
        %2391 = vmatpush2.bf16.msra.mxu0 0
        %2392 = vmatprep.subr.bf16.mxu0 0
        %2393 = vmatpush2.bf16.msra.mxu0 0
        %2394 = vmatprep.subr.bf16.mxu0 0
        %2395 = vmatpush2.bf16.msra.mxu0 0
        %2396 = vmatprep.subr.bf16.mxu0 0
        %2397 = vmatpush2.bf16.msra.mxu0 0
        %2398 = vmatprep.subr.bf16.mxu0 0
        %2399 = vmatpush2.bf16.msra.mxu0 0
        %2400 = vmatprep.subr.bf16.mxu0 0
        %2401 = vmatpush2.bf16.msra.mxu0 0
        %2402 = vmatprep.mubr.bf16.mxu0 0
        %2403 = vmatmul.mubr.bf16.gmra.mxu0 %v517
        %v2404 = vpop.f32.mrf.mxu0
        %v2405 = vadd.f32 0.0, %v2404
        %v2406 = vpop.f32.mrf.mxu0
        %v2407 = vpop.f32.mrf.mxu0
        %v2408 = vpop.f32.mrf.mxu0
        %2409 = vdwg.mxu0
        %2410 = vmatprep.subr.bf16.mxu0 0
        %2411 = vmatpush1.bf16.msra.mxu0 %v1265
        %2412 = vmatprep.subr.bf16.mxu0 0
        %2413 = vmatpush1.bf16.msra.mxu0 %v1264
        %2414 = vmatprep.subr.bf16.mxu0 0
        %2415 = vmatpush1.bf16.msra.mxu0 %v1263
        %2416 = vmatprep.subr.bf16.mxu0 0
        %2417 = vmatpush1.bf16.msra.mxu0 %v1262
        %2418 = vmatprep.subr.bf16.mxu0 0
        %2419 = vmatpush1.bf16.msra.mxu0 %v1261
        %2420 = vmatprep.subr.bf16.mxu0 0
        %2421 = vmatpush1.bf16.msra.mxu0 %v1260
        %2422 = vmatprep.subr.bf16.mxu0 0
        %2423 = vmatpush1.bf16.msra.mxu0 %v1259
        %2424 = vmatprep.subr.bf16.mxu0 0
        %2425 = vmatpush1.bf16.msra.mxu0 %v1258
        %2426 = vmatprep.subr.bf16.mxu0 0
        %2427 = vmatpush2.bf16.msra.mxu0 0
        %2428 = vmatprep.subr.bf16.mxu0 0
        %2429 = vmatpush2.bf16.msra.mxu0 0
        %2430 = vmatprep.subr.bf16.mxu0 0
        %2431 = vmatpush2.bf16.msra.mxu0 0
        %2432 = vmatprep.subr.bf16.mxu0 0
        %2433 = vmatpush2.bf16.msra.mxu0 0
        %2434 = vmatprep.subr.bf16.mxu0 0
        %2435 = vmatpush2.bf16.msra.mxu0 0
        %2436 = vmatprep.subr.bf16.mxu0 0
        %2437 = vmatpush2.bf16.msra.mxu0 0
        %2438 = vmatprep.subr.bf16.mxu0 0
        %2439 = vmatpush2.bf16.msra.mxu0 0
        %2440 = vmatprep.subr.bf16.mxu0 0
        %2441 = vmatpush2.bf16.msra.mxu0 0
        %2442 = vmatprep.mubr.bf16.mxu0 0
        %2443 = vmatmul.mubr.bf16.gmra.mxu0 %v518
        %v2444 = vpop.f32.mrf.mxu0
        %v2445 = vadd.f32 0.0, %v2444
        %v2446 = vpop.f32.mrf.mxu0
        %v2447 = vpop.f32.mrf.mxu0
        %v2448 = vpop.f32.mrf.mxu0
        %2449 = vdwg.mxu0
        %2450 = vmatprep.subr.bf16.mxu0 0
        %2451 = vmatpush1.bf16.msra.mxu0 %v1273
        %2452 = vmatprep.subr.bf16.mxu0 0
        %2453 = vmatpush1.bf16.msra.mxu0 %v1272
        %2454 = vmatprep.subr.bf16.mxu0 0
        %2455 = vmatpush1.bf16.msra.mxu0 %v1271
        %2456 = vmatprep.subr.bf16.mxu0 0
        %2457 = vmatpush1.bf16.msra.mxu0 %v1270
        %2458 = vmatprep.subr.bf16.mxu0 0
        %2459 = vmatpush1.bf16.msra.mxu0 %v1269
        %2460 = vmatprep.subr.bf16.mxu0 0
        %2461 = vmatpush1.bf16.msra.mxu0 %v1268
        %2462 = vmatprep.subr.bf16.mxu0 0
        %2463 = vmatpush1.bf16.msra.mxu0 %v1267
        %2464 = vmatprep.subr.bf16.mxu0 0
        %2465 = vmatpush1.bf16.msra.mxu0 %v1266
        %2466 = vmatprep.subr.bf16.mxu0 0
        %2467 = vmatpush2.bf16.msra.mxu0 0
        %2468 = vmatprep.subr.bf16.mxu0 0
        %2469 = vmatpush2.bf16.msra.mxu0 0
        %2470 = vmatprep.subr.bf16.mxu0 0
        %2471 = vmatpush2.bf16.msra.mxu0 0
        %2472 = vmatprep.subr.bf16.mxu0 0
        %2473 = vmatpush2.bf16.msra.mxu0 0
        %2474 = vmatprep.subr.bf16.mxu0 0
        %2475 = vmatpush2.bf16.msra.mxu0 0
        %2476 = vmatprep.subr.bf16.mxu0 0
        %2477 = vmatpush2.bf16.msra.mxu0 0
        %2478 = vmatprep.subr.bf16.mxu0 0
        %2479 = vmatpush2.bf16.msra.mxu0 0
        %2480 = vmatprep.subr.bf16.mxu0 0
        %2481 = vmatpush2.bf16.msra.mxu0 0
        %2482 = vmatprep.mubr.bf16.mxu0 0
        %2483 = vmatmul.mubr.bf16.gmra.mxu0 %v519
        %v2484 = vpop.f32.mrf.mxu0
        %v2485 = vadd.f32 0.0, %v2484
        %v2486 = vpop.f32.mrf.mxu0
        %v2487 = vpop.f32.mrf.mxu0
        %v2488 = vpop.f32.mrf.mxu0
        %2489 = vdwg.mxu0
        %2490 = vmatprep.subr.bf16.mxu0 0
        %2491 = vmatpush1.bf16.msra.mxu0 %v1281
        %2492 = vmatprep.subr.bf16.mxu0 0
        %2493 = vmatpush1.bf16.msra.mxu0 %v1280
        %2494 = vmatprep.subr.bf16.mxu0 0
        %2495 = vmatpush1.bf16.msra.mxu0 %v1279
        %2496 = vmatprep.subr.bf16.mxu0 0
        %2497 = vmatpush1.bf16.msra.mxu0 %v1278
        %2498 = vmatprep.subr.bf16.mxu0 0
        %2499 = vmatpush1.bf16.msra.mxu0 %v1277
        %2500 = vmatprep.subr.bf16.mxu0 0
        %2501 = vmatpush1.bf16.msra.mxu0 %v1276
        %2502 = vmatprep.subr.bf16.mxu0 0
        %2503 = vmatpush1.bf16.msra.mxu0 %v1275
        %2504 = vmatprep.subr.bf16.mxu0 0
        %2505 = vmatpush1.bf16.msra.mxu0 %v1274
        %2506 = vmatprep.subr.bf16.mxu0 0
        %2507 = vmatpush2.bf16.msra.mxu0 0
        %2508 = vmatprep.subr.bf16.mxu0 0
        %2509 = vmatpush2.bf16.msra.mxu0 0
        %2510 = vmatprep.subr.bf16.mxu0 0
        %2511 = vmatpush2.bf16.msra.mxu0 0
        %2512 = vmatprep.subr.bf16.mxu0 0
        %2513 = vmatpush2.bf16.msra.mxu0 0
        %2514 = vmatprep.subr.bf16.mxu0 0
        %2515 = vmatpush2.bf16.msra.mxu0 0
        %2516 = vmatprep.subr.bf16.mxu0 0
        %2517 = vmatpush2.bf16.msra.mxu0 0
        %2518 = vmatprep.subr.bf16.mxu0 0
        %2519 = vmatpush2.bf16.msra.mxu0 0
        %2520 = vmatprep.subr.bf16.mxu0 0
        %2521 = vmatpush2.bf16.msra.mxu0 0
        %2522 = vmatprep.mubr.bf16.mxu0 0
        %2523 = vmatmul.mubr.bf16.gmra.mxu0 %v520
        %v2524 = vpop.f32.mrf.mxu0
        %v2525 = vadd.f32 0.0, %v2524
        %v2526 = vpop.f32.mrf.mxu0
        %v2527 = vpop.f32.mrf.mxu0
        %v2528 = vpop.f32.mrf.mxu0
        %2529 = vdwg.mxu0
        %2530 = vmatprep.subr.bf16.mxu0 0
        %2531 = vmatpush1.bf16.msra.mxu0 %v1289
        %2532 = vmatprep.subr.bf16.mxu0 0
        %2533 = vmatpush1.bf16.msra.mxu0 %v1288
        %2534 = vmatprep.subr.bf16.mxu0 0
        %2535 = vmatpush1.bf16.msra.mxu0 %v1287
        %2536 = vmatprep.subr.bf16.mxu0 0
        %2537 = vmatpush1.bf16.msra.mxu0 %v1286
        %2538 = vmatprep.subr.bf16.mxu0 0
        %2539 = vmatpush1.bf16.msra.mxu0 %v1285
        %2540 = vmatprep.subr.bf16.mxu0 0
        %2541 = vmatpush1.bf16.msra.mxu0 %v1284
        %2542 = vmatprep.subr.bf16.mxu0 0
        %2543 = vmatpush1.bf16.msra.mxu0 %v1283
        %2544 = vmatprep.subr.bf16.mxu0 0
        %2545 = vmatpush1.bf16.msra.mxu0 %v1282
        %2546 = vmatprep.subr.bf16.mxu0 0
        %2547 = vmatpush2.bf16.msra.mxu0 0
        %2548 = vmatprep.subr.bf16.mxu0 0
        %2549 = vmatpush2.bf16.msra.mxu0 0
        %2550 = vmatprep.subr.bf16.mxu0 0
        %2551 = vmatpush2.bf16.msra.mxu0 0
        %2552 = vmatprep.subr.bf16.mxu0 0
        %2553 = vmatpush2.bf16.msra.mxu0 0
        %2554 = vmatprep.subr.bf16.mxu0 0
        %2555 = vmatpush2.bf16.msra.mxu0 0
        %2556 = vmatprep.subr.bf16.mxu0 0
        %2557 = vmatpush2.bf16.msra.mxu0 0
        %2558 = vmatprep.subr.bf16.mxu0 0
        %2559 = vmatpush2.bf16.msra.mxu0 0
        %2560 = vmatprep.subr.bf16.mxu0 0
        %2561 = vmatpush2.bf16.msra.mxu0 0
        %2562 = vmatprep.mubr.bf16.mxu0 0
        %2563 = vmatmul.mubr.bf16.gmra.mxu0 %v521
        %v2564 = vpop.f32.mrf.mxu0
        %v2565 = vadd.f32 0.0, %v2564
        %v2566 = vpop.f32.mrf.mxu0
        %v2567 = vpop.f32.mrf.mxu0
        %v2568 = vpop.f32.mrf.mxu0
        %2569 = vdwg.mxu0
        %v2570 = vld [vmem:[#allocation3] sm:$0xff]
        %v2571 = vadd.f32 %v1325, %v1365
        %v2572 = vadd.f32 %v2571, %v1405
        %v2573 = vadd.f32 %v2572, %v1445
        %v2574 = vadd.f32 %v2573, %v1485
        %v2575 = vadd.f32 %v2574, %v1525
        %v2576 = vadd.f32 %v2575, %v1565
        %v2577 = vadd.f32 %v2576, %v1605
        %v2578 = vadd.f32 %v2577, %v1645
        %v2579 = vadd.f32 %v2578, %v1685
        %v2580 = vadd.f32 %v2579, %v1725
        %v2581 = vadd.f32 %v2580, %v1765
        %v2582 = vadd.f32 %v2581, %v1805
        %v2583 = vadd.f32 %v2582, %v1845
        %v2584 = vadd.f32 %v2583, %v1885
        %v2585 = vadd.f32 %v2584, %v1925
        %v2586 = vadd.f32 %v2585, %v1965
        %v2587 = vadd.f32 %v2586, %v2005
        %v2588 = vadd.f32 %v2587, %v2045
        %v2589 = vadd.f32 %v2588, %v2085
        %v2590 = vadd.f32 %v2589, %v2125
        %v2591 = vadd.f32 %v2590, %v2165
        %v2592 = vadd.f32 %v2591, %v2205
        %v2593 = vadd.f32 %v2592, %v2245
        %v2594 = vadd.f32 %v2593, %v2285
        %v2595 = vadd.f32 %v2594, %v2325
        %v2596 = vadd.f32 %v2595, %v2365
        %v2597 = vadd.f32 %v2596, %v2405
        %v2598 = vadd.f32 %v2597, %v2445
        %v2599 = vadd.f32 %v2598, %v2485
        %v2600 = vadd.f32 %v2599, %v2525
        %v2601 = vadd.f32 %v2600, %v2565
        %v2602 = vadd.f32 %v2570, %v2601
        %2603 = vst [vmem:[#allocation3] sm:$0xff] %v2602
        %p2604 = scmp.eq.s32.totalorder %s17, 3
        // Predicated region
        $region41: #{tucker_forward.2} parent=31 // pred_check
          %p2605 = pneg %p2604
        $region42: #{tucker_forward.2} parent=31 // pred_check_branch
          %2607 = sbr.rel (%p2605) target = $region44
        $region43: #{tucker_forward.2} parent=31 // pred_region
          %v2608 = vld [vmem:[#allocation3] sm:$0xff]
          %v2609 = vrot.slane %v2608, 4
          %v2610 = vadd.f32 %v2608, %v2609
          %v2611 = vrot.slane %v2610, 2
          %v2612 = vadd.f32 %v2610, %v2611
          %v2613 = vrot.slane %v2612, 1
          %v2614 = vadd.f32 %v2612, %v2613
          %v2615 = vmul.f32 %v2614, 0.125
          %v2616 = vmul.f32 %v2608, %v2608
          %v2617 = vrot.slane %v2616, 4
          %v2618 = vadd.f32 %v2616, %v2617
          %v2619 = vrot.slane %v2618, 2
          %v2620 = vadd.f32 %v2618, %v2619
          %v2621 = vrot.slane %v2620, 1
          %v2622 = vadd.f32 %v2620, %v2621
          %v2623 = vmul.f32 %v2622, 0.125
          %v2624 = vmul.f32 %v2615, %v2615
          %v2625 = vsub.f32 %v2623, %v2624
          %v2626 = vsub.f32 %v2608, %v2615
          %v2627 = vadd.f32 %v2625, 1e-05
          %v2628 = vrsqrt.pop %v2627
          %v2629 = vmul.f32 %v2626, %v2628
          %2630 = vst [vmem:[%s3] sm:$0xff] %v2629
        $region44: #{tucker_forward.2} parent=31 // pred_fallthru
          _
        // Predicated region
        $region45: #{tucker_forward.2} parent=31 // pred_check
          %p2631 = pneg %p103
        $region46: #{tucker_forward.2} parent=31 // pred_check_branch
          %2633 = sbr.rel (%p2631) target = $region48
        $region47: #{tucker_forward.2} parent=31 // pred_region
          _
        $region48: #{tucker_forward.2} parent=31 // pred_fallthru
          _
        // Predicated region
        $region49: #{tucker_forward.2} parent=31 // pred_check
          %p2634 = pneg %p103
        $region50: #{tucker_forward.2} parent=31 // pred_check_branch
          %2636 = sbr.rel (%p2634) target = $region52
        $region51: #{tucker_forward.2} parent=31 // pred_region
          _
        $region52: #{tucker_forward.2} parent=31 // pred_fallthru
          _
      $region32: #{tucker_forward.2} parent=5 // pred_fallthru
        _
      %p2637 = scmp.le.s32.totalorder 2, %s12
      // Predicated region
      $region53: #{tucker_forward.2} parent=5 // pred_check
        %p2638 = pneg %p2637
      $region54: #{tucker_forward.2} parent=5 // pred_check_branch
        %2640 = sbr.rel (%p2638) target = $region56
      $region55: #{tucker_forward.2} parent=5 // pred_region
        %s2641 = ssub.s32 %s12, 2
      $region56: #{tucker_forward.2} parent=5 // pred_fallthru
        _
    $region6: #{tucker_forward.2} parent=1 // loop_footer
      %s16 = sadd.s32 1, %s12
    $region7: #{tucker_forward.2} parent=1 // loop_footer_branch
      %11 = sbr.rel target = $region3
    $region8: #{tucker_forward.2} parent=1 // loop_exit
      _
    %2642 = vsyncpa [#allocation5], 1
    %s2643 = scalar_lea.sflag [#allocation5], 1
    %2644 = vsyncpa %s2643, 1

</llo_original>
